<compile_context>
chip_gen: v5e
topology: v5e:2x2
jax: 0.10.0
libtpu: 0.0.40
codegen_flags: <defaults>
</compile_context>

<pallas_src>
import jax
import jax.numpy as jnp
from jax.experimental import pallas as pl
from jax.experimental.pallas import tpu as pltpu

# ----------------------- small ViT-style CLIP visual config -----------------------
IMG = 16            # image height/width
PATCH = 8           # conv1 kernel & stride
CIN = 3             # RGB
WIDTH = 32          # transformer width (d_model)
HEADS = 4
HEAD_DIM = WIDTH // HEADS
LAYERS = 2
MLP_DIM = 4 * WIDTH
EMBED = 32          # visual projection dim ("num_filters" in the PyTorch module)
NUM_CLASSES = 10
GRIDSZ = IMG // PATCH
NPATCH = GRIDSZ * GRIDSZ
SEQ = NPATCH + 1    # +1 class token
CPP = CIN * PATCH * PATCH

LANE = 128          # lane-dense padded classifier width
_NEG_INF = -1e9

# vector-table row layout
_N_VEC32 = 4 + 6 * LAYERS          # ln_pre g/b, ln_post g/b, per-layer 6 rows
_N_VEC128 = 2 * LAYERS + 1         # per-layer qkv_b, fc_b; final row cls_b


# --------------------------------- fused kernel ------------------------------------
def _ln_rows(x, g, b):
    """Row-wise LayerNorm in f32 (eps=1e-5). x: (M, D); g, b: (1, D)."""
    mu = jnp.mean(x, axis=-1, keepdims=True)
    var = jnp.mean(jnp.square(x - mu), axis=-1, keepdims=True)
    return (x - mu) * jax.lax.rsqrt(var + 1e-5) * g + b


def _clip_fused_kernel(
    patches_ref,      # (BB*SEQ, CPP)       bf16, per-block (zero rows at cls slots)
    cls_pos_ref,      # (BB*SEQ, WIDTH)     f32, constant
    attn_bias_ref,    # (BB*SEQ, BB*SEQ)    f32, constant (0 in-image, -1e9 across)
    wp_ref,           # (CPP, WIDTH)        bf16
    vec32_ref,        # (_N_VEC32, WIDTH)   f32 gain/bias table
    vec128_ref,       # (_N_VEC128, 128)    f32 wide-bias table
    qkv_w_ref,        # (LAYERS, WIDTH, 3*WIDTH) bf16 (q cols pre-scaled by 1/sqrt(d))
    out_w_ref,        # (LAYERS, WIDTH, WIDTH)   bf16
    fc_w_ref,         # (LAYERS, WIDTH, MLP_DIM) bf16
    proj_w_ref,       # (LAYERS, MLP_DIM, WIDTH) bf16
    vis_proj_ref,     # (WIDTH, EMBED)      bf16
    cls_w_ref,        # (EMBED, LANE)       f32 (zero-padded classifier weight)
    o_ref,            # (BB, LANE)          f32 logits block
):
    rows = patches_ref.shape[0]          # BB * SEQ
    nimg = rows // SEQ                   # BB

    ln_pre_g = vec32_ref[0:1, :]
    ln_pre_b = vec32_ref[1:2, :]
    ln_post_g = vec32_ref[2:3, :]
    ln_post_b = vec32_ref[3:4, :]

    # ---- patch embedding (conv as matmul) + class token / positional embedding ----
    h = jnp.dot(patches_ref[...], wp_ref[...],
                preferred_element_type=jnp.float32)                  # (rows, W) f32
    h = h + cls_pos_ref[...]

    # ln_pre
    h = _ln_rows(h, ln_pre_g, ln_pre_b)

    attn_bias = attn_bias_ref[...]

    # per-head lane masks (0/1 f32) — hoisted, built once at trace time
    lane_ids = jax.lax.broadcasted_iota(jnp.int32, (rows, WIDTH), 1)
    head_masks = []
    for hh in range(HEADS):
        m = (lane_ids >= hh * HEAD_DIM) & (lane_ids < (hh + 1) * HEAD_DIM)
        head_masks.append(m.astype(jnp.float32))

    for l in range(LAYERS):
        base = 4 + 6 * l
        ln1_g = vec32_ref[base + 0:base + 1, :]
        ln1_b = vec32_ref[base + 1:base + 2, :]
        out_b = vec32_ref[base + 2:base + 3, :]
        ln2_g = vec32_ref[base + 3:base + 4, :]
        ln2_b = vec32_ref[base + 4:base + 5, :]
        proj_b = vec32_ref[base + 5:base + 6, :]
        qkv_b = vec128_ref[2 * l:2 * l + 1, :3 * WIDTH]
        fc_b = vec128_ref[2 * l + 1:2 * l + 2, :]

        # --------------------- multi-head self-attention -------------------------
        xn = _ln_rows(h, ln1_g, ln1_b)
        xb = xn.astype(jnp.bfloat16)
        qkv = jnp.dot(xb, qkv_w_ref[l],
                      preferred_element_type=jnp.float32) + qkv_b    # (rows, 96) f32
        q = qkv[:, :WIDTH]                 # 1/sqrt(head_dim) already folded in
        k = qkv[:, WIDTH:2 * WIDTH]
        v = qkv[:, 2 * WIDTH:]
        kb = k.astype(jnp.bfloat16)        # no K-side mask needed (Q mask suffices)

        attn_out = None
        for hh in range(HEADS):
            qh = (q * head_masks[hh]).astype(jnp.bfloat16)
            vh = (v * head_masks[hh]).astype(jnp.bfloat16)
            s = jax.lax.dot_general(qh, kb, (((1,), (1,)), ((), ())),
                                    preferred_element_type=jnp.float32)
            s = s + attn_bias                               # block cross-image keys
            s = s - jnp.max(s, axis=-1, keepdims=True)
            p = jnp.exp(s)
            inv = pl.reciprocal(jnp.sum(p, axis=-1, keepdims=True), approx=True)
            p = (p * inv).astype(jnp.bfloat16)
            oh = jnp.dot(p, vh, preferred_element_type=jnp.float32)  # head lanes only
            attn_out = oh if attn_out is None else attn_out + oh

        proj = jnp.dot(attn_out.astype(jnp.bfloat16), out_w_ref[l],
                       preferred_element_type=jnp.float32) + out_b
        h = h + proj

        # --------------------------- MLP (QuickGELU) ------------------------------
        xn = _ln_rows(h, ln2_g, ln2_b)
        m = jnp.dot(xn.astype(jnp.bfloat16), fc_w_ref[l],
                    preferred_element_type=jnp.float32) + fc_b
        m = m * jax.nn.sigmoid(1.702 * m)                   # QuickGELU (f32, EUP)
        m = jnp.dot(m.astype(jnp.bfloat16), proj_w_ref[l],
                    preferred_element_type=jnp.float32) + proj_b
        h = h + m

    # ---- class-token gather (bf16 0/1 matmul), ln_post, projection, classifier ----
    r_ids = jax.lax.broadcasted_iota(jnp.int32, (nimg, rows), 0)
    c_ids = jax.lax.broadcasted_iota(jnp.int32, (nimg, rows), 1)
    cls_sel = (c_ids == r_ids * SEQ).astype(jnp.bfloat16)
    cls_tok = jnp.dot(cls_sel, h.astype(jnp.bfloat16),
                      preferred_element_type=jnp.float32)            # (BB, W)
    cls_tok = _ln_rows(cls_tok, ln_post_g, ln_post_b)
    feats = jnp.dot(cls_tok.astype(jnp.bfloat16), vis_proj_ref[...],
                    preferred_element_type=jnp.float32)   # mirrors .flatten(1).float()
    logits = jnp.dot(feats, cls_w_ref[...],
                     preferred_element_type=jnp.float32)
    logits = logits + vec128_ref[2 * LAYERS:2 * LAYERS + 1, :]
    o_ref[...] = logits                                    # (BB, 128) dense store


# --------------------------------- parameters --------------------------------------
def init_params(key):
    std = 0.02
    ks = jax.random.split(key, 8 + LAYERS)
    p = {
        "conv_w": jax.random.normal(ks[0], (WIDTH, CIN, PATCH, PATCH), jnp.float32) * std,
        "class_emb": jax.random.normal(ks[1], (WIDTH,), jnp.float32) * std,
        "pos_emb": jax.random.normal(ks[2], (SEQ, WIDTH), jnp.float32) * std,
        "ln_pre_g": jnp.ones((WIDTH,), jnp.float32),
        "ln_pre_b": jnp.zeros((WIDTH,), jnp.float32),
        "ln_post_g": jnp.ones((WIDTH,), jnp.float32),
        "ln_post_b": jnp.zeros((WIDTH,), jnp.float32),
        "vis_proj": jax.random.normal(ks[3], (WIDTH, EMBED), jnp.float32) * std,
        "cls_w": jax.random.normal(ks[4], (EMBED, NUM_CLASSES), jnp.float32) * std,
        "cls_b": jnp.zeros((NUM_CLASSES,), jnp.float32),
    }
    blocks = []
    for l in range(LAYERS):
        kk = jax.random.split(ks[8 + l], 4)
        blocks.append(dict(
            ln1_g=jnp.ones((WIDTH,), jnp.float32), ln1_b=jnp.zeros((WIDTH,), jnp.float32),
            qkv_w=jax.random.normal(kk[0], (WIDTH, 3 * WIDTH), jnp.float32) * std,
            qkv_b=jnp.zeros((3 * WIDTH,), jnp.float32),
            out_w=jax.random.normal(kk[1], (WIDTH, WIDTH), jnp.float32) * std,
            out_b=jnp.zeros((WIDTH,), jnp.float32),
            ln2_g=jnp.ones((WIDTH,), jnp.float32), ln2_b=jnp.zeros((WIDTH,), jnp.float32),
            fc_w=jax.random.normal(kk[2], (WIDTH, MLP_DIM), jnp.float32) * std,
            fc_b=jnp.zeros((MLP_DIM,), jnp.float32),
            proj_w=jax.random.normal(kk[3], (MLP_DIM, WIDTH), jnp.float32) * std,
            proj_b=jnp.zeros((WIDTH,), jnp.float32),
        ))
    p["blocks"] = blocks
    return p


# ----------------------------------- forward ---------------------------------------
def _prep_inputs(params, x, bb):
    """Param packing / layout prep (plain JAX); all hot compute is in the kernel."""
    half = jnp.bfloat16
    f32 = jnp.float32
    B = x.shape[0]
    num_blocks = -(-B // bb)
    b_pad = num_blocks * bb
    rows = bb * SEQ
    scale = 1.0 / float(HEAD_DIM) ** 0.5

    # image -> flattened non-overlapping patches, with a zero row per class-token slot
    xh = x.astype(half)                                   # mimics x.type(torch.float16)
    patches = xh.reshape(B, CIN, GRIDSZ, PATCH, GRIDSZ, PATCH)
    patches = patches.transpose(0, 2, 4, 1, 3, 5).reshape(B, NPATCH, CPP)
    patches = jnp.pad(patches, ((0, b_pad - B), (0, 0), (0, 0)))
    patches_sel = jnp.pad(patches, ((0, 0), (1, 0), (0, 0))).reshape(b_pad * SEQ, CPP)

    wp = params["conv_w"].reshape(WIDTH, CPP).T.astype(half)          # (CPP, WIDTH)

    # class-token embedding + positional embedding, tiled for one batch block
    per_seq = jnp.concatenate(
        [(params["class_emb"] + params["pos_emb"][0])[None, :], params["pos_emb"][1:]],
        axis=0)
    cls_pos = jnp.tile(per_seq, (bb, 1)).astype(f32)                  # (rows, WIDTH)

    # intra-block additive attention bias: 0 within an image, -1e9 across images
    img_idx = jnp.arange(rows) // SEQ
    attn_bias = jnp.where(img_idx[:, None] == img_idx[None, :], 0.0, _NEG_INF).astype(f32)

    # ------- packed weight stacks + gain/bias tables -------
    vec32_rows = [params["ln_pre_g"], params["ln_pre_b"],
                  params["ln_post_g"], params["ln_post_b"]]
    vec128_rows = []
    qkv_ws, out_ws, fc_ws, proj_ws = [], [], [], []
    qscale = jnp.concatenate(
        [jnp.full((WIDTH,), scale, f32), jnp.ones((2 * WIDTH,), f32)])
    for blk in params["blocks"]:
        qkv_ws.append((blk["qkv_w"] * qscale[None, :]).astype(half))  # scale folded in
        out_ws.append(blk["out_w"].astype(half))
        fc_ws.append(blk["fc_w"].astype(half))
        proj_ws.append(blk["proj_w"].astype(half))
        vec32_rows += [blk["ln1_g"], blk["ln1_b"], blk["out_b"],
                       blk["ln2_g"], blk["ln2_b"], blk["proj_b"]]
        vec128_rows.append(jnp.pad(blk["qkv_b"] * qscale, (0, LANE - 3 * WIDTH)))
        vec128_rows.append(blk["fc_b"])
    cls_b_pad = jnp.zeros((LANE,), f32).at[:NUM_CLASSES].set(params["cls_b"])
    vec128_rows.append(cls_b_pad)

    vec32 = jnp.stack([r.astype(f32) for r in vec32_rows], axis=0)    # (_N_VEC32, 32)
    vec128 = jnp.stack([r.astype(f32) for r in vec128_rows], axis=0)  # (_N_VEC128, 128)
    qkv_w_st = jnp.stack(qkv_ws, axis=0)                              # (L, 32, 96)
    out_w_st = jnp.stack(out_ws, axis=0)                              # (L, 32, 32)
    fc_w_st = jnp.stack(fc_ws, axis=0)                                # (L, 32, 128)
    proj_w_st = jnp.stack(proj_ws, axis=0)                            # (L, 128, 32)

    vis_proj = params["vis_proj"].astype(half)
    cls_w_pad = jnp.zeros((EMBED, LANE), f32).at[:, :NUM_CLASSES].set(params["cls_w"])

    args = (patches_sel, cls_pos, attn_bias, wp, vec32, vec128,
            qkv_w_st, out_w_st, fc_w_st, proj_w_st, vis_proj, cls_w_pad)
    return args, num_blocks


def clip_finetune_forward(params, x):
    """x: (B, 3, IMG, IMG) float32 NCHW -> logits (B, NUM_CLASSES) float32."""
    B = x.shape[0]
    # batch block: 8 images (40 rows) for tiny batches; 32 images (160 rows) to fill
    # the MXU M dimension for real batches.
    bb = 8 if B <= 8 else 32
    args, num_blocks = _prep_inputs(params, x, bb)
    rows = bb * SEQ

    const2 = lambda i: (0, 0)
    const3 = lambda i: (0, 0, 0)
    in_specs = [
        pl.BlockSpec((rows, CPP), lambda i: (i, 0)),           # patches (per block)
        pl.BlockSpec((rows, WIDTH), const2),                   # cls_pos
        pl.BlockSpec((rows, rows), const2),                    # attn_bias
        pl.BlockSpec((CPP, WIDTH), const2),                    # wp
        pl.BlockSpec((_N_VEC32, WIDTH), const2),               # vec32 table
        pl.BlockSpec((_N_VEC128, LANE), const2),               # vec128 table
        pl.BlockSpec((LAYERS, WIDTH, 3 * WIDTH), const3),      # qkv_w stack
        pl.BlockSpec((LAYERS, WIDTH, WIDTH), const3),          # out_w stack
        pl.BlockSpec((LAYERS, WIDTH, MLP_DIM), const3),        # fc_w stack
        pl.BlockSpec((LAYERS, MLP_DIM, WIDTH), const3),        # proj_w stack
        pl.BlockSpec((WIDTH, EMBED), const2),                  # vis_proj
        pl.BlockSpec((EMBED, LANE), const2),                   # cls_w (padded)
    ]
    out_spec = pl.BlockSpec((bb, LANE), lambda i: (i, 0))

    logits_pad = pl.pallas_call(
        _clip_fused_kernel,
        out_shape=jax.ShapeDtypeStruct((num_blocks * bb, LANE), jnp.float32),
        grid_spec=pltpu.PrefetchScalarGridSpec(
            num_scalar_prefetch=0,
            grid=(num_blocks,),
            in_specs=in_specs,
            out_specs=out_spec,
        ),
        compiler_params=pltpu.CompilerParams(
            dimension_semantics=("parallel",)),
    )(*args)
    return logits_pad[:B, :NUM_CLASSES]


# ------------------------------------ main ------------------------------------------
if __name__ == "__main__":
    key = jax.random.PRNGKey(0)
    pkey, xkey = jax.random.split(key)
    params = init_params(pkey)
    x = jax.random.normal(xkey, (2, CIN, IMG, IMG), jnp.float32)

    fwd = jax.jit(clip_finetune_forward)
    logits = fwd(params, x)
    jax.block_until_ready(logits)

    assert logits.shape == (2, NUM_CLASSES) and logits.dtype == jnp.float32
    print("KERNEL_OK")
</pallas_src>

<mosaic_0001>
module attributes {stable_mosaic.version = 11 : i64} {
  func.func @_clip_fused_kernel(%arg0: i32, %arg1: memref<40x192xbf16, #tpu.memory_space<vmem>>, %arg2: memref<40x32xf32, #tpu.memory_space<vmem>>, %arg3: memref<40x40xf32, #tpu.memory_space<vmem>>, %arg4: memref<192x32xbf16, #tpu.memory_space<vmem>>, %arg5: memref<16x32xf32, #tpu.memory_space<vmem>>, %arg6: memref<5x128xf32, #tpu.memory_space<vmem>>, %arg7: memref<2x32x96xbf16, #tpu.memory_space<vmem>>, %arg8: memref<2x32x32xbf16, #tpu.memory_space<vmem>>, %arg9: memref<2x32x128xbf16, #tpu.memory_space<vmem>>, %arg10: memref<2x128x32xbf16, #tpu.memory_space<vmem>>, %arg11: memref<32x32xbf16, #tpu.memory_space<vmem>>, %arg12: memref<32x128xf32, #tpu.memory_space<vmem>>, %arg13: memref<8x128xf32, #tpu.memory_space<vmem>>) attributes {dimension_semantics = [#tpu.dimension_semantics<parallel>], iteration_bounds = array<i64: 1>, scalar_prefetch = 0 : i64, scratch_operands = 0 : i64, tpu.core_type = #tpu.core_type<tc>, window_params = [{transform_indices = @transform_0, window_bounds = array<i64: 40, 192>}, {pipeline_mode = #tpu.pipeline_mode<synchronous>, transform_indices = @transform_1, window_bounds = array<i64: 40, 32>}, {pipeline_mode = #tpu.pipeline_mode<synchronous>, transform_indices = @transform_2, window_bounds = array<i64: 40, 40>}, {pipeline_mode = #tpu.pipeline_mode<synchronous>, transform_indices = @transform_3, window_bounds = array<i64: 192, 32>}, {pipeline_mode = #tpu.pipeline_mode<synchronous>, transform_indices = @transform_4, window_bounds = array<i64: 16, 32>}, {pipeline_mode = #tpu.pipeline_mode<synchronous>, transform_indices = @transform_5, window_bounds = array<i64: 5, 128>}, {pipeline_mode = #tpu.pipeline_mode<synchronous>, transform_indices = @transform_6, window_bounds = array<i64: 2, 32, 96>}, {pipeline_mode = #tpu.pipeline_mode<synchronous>, transform_indices = @transform_7, window_bounds = array<i64: 2, 32, 32>}, {pipeline_mode = #tpu.pipeline_mode<synchronous>, transform_indices = @transform_8, window_bounds = array<i64: 2, 32, 128>}, {pipeline_mode = #tpu.pipeline_mode<synchronous>, transform_indices = @transform_9, window_bounds = array<i64: 2, 128, 32>}, {pipeline_mode = #tpu.pipeline_mode<synchronous>, transform_indices = @transform_10, window_bounds = array<i64: 32, 32>}, {pipeline_mode = #tpu.pipeline_mode<synchronous>, transform_indices = @transform_11, window_bounds = array<i64: 32, 128>}, {transform_indices = @transform_12, window_bounds = array<i64: 8, 128>}]} {
    %c0 = arith.constant 0 : index
    %c0_0 = arith.constant 0 : index
    %0 = vector.load %arg5[%c0, %c0_0] : memref<16x32xf32, #tpu.memory_space<vmem>>, vector<1x32xf32>
    %c1 = arith.constant 1 : index
    %c0_1 = arith.constant 0 : index
    %1 = vector.load %arg5[%c1, %c0_1] : memref<16x32xf32, #tpu.memory_space<vmem>>, vector<1x32xf32>
    %c2 = arith.constant 2 : index
    %c0_2 = arith.constant 0 : index
    %2 = vector.load %arg5[%c2, %c0_2] : memref<16x32xf32, #tpu.memory_space<vmem>>, vector<1x32xf32>
    %c3 = arith.constant 3 : index
    %c0_3 = arith.constant 0 : index
    %3 = vector.load %arg5[%c3, %c0_3] : memref<16x32xf32, #tpu.memory_space<vmem>>, vector<1x32xf32>
    %c0_4 = arith.constant 0 : index
    %c0_5 = arith.constant 0 : index
    %4 = vector.load %arg1[%c0_4, %c0_5] : memref<40x192xbf16, #tpu.memory_space<vmem>>, vector<40x192xbf16>
    %c0_6 = arith.constant 0 : index
    %c0_7 = arith.constant 0 : index
    %5 = vector.load %arg4[%c0_6, %c0_7] : memref<192x32xbf16, #tpu.memory_space<vmem>>, vector<192x32xbf16>
    %cst = arith.constant dense<0.000000e+00> : vector<40x32xf32>
    %6 = tpu.matmul %4, %5, %cst {dimension_numbers = #tpu.dot_dimension_numbers<[1], [0], [0], [1], [0, 0, 1, 1], [], []>} : vector<40x192xbf16>, vector<192x32xbf16>, vector<40x32xf32> -> vector<40x32xf32>
    %c0_8 = arith.constant 0 : index
    %c0_9 = arith.constant 0 : index
    %7 = vector.load %arg2[%c0_8, %c0_9] : memref<40x32xf32, #tpu.memory_space<vmem>>, vector<40x32xf32>
    %8 = arith.addf %6, %7 : vector<40x32xf32>
    %cst_10 = arith.constant dense<0.000000e+00> : vector<40xf32>
    %9 = vector.multi_reduction <add>, %8, %cst_10 [1] : vector<40x32xf32> to vector<40xf32>
    %10 = vector.shape_cast %9 : vector<40xf32> to vector<40x1xf32>
    %cst_11 = arith.constant 3.200000e+01 : f32
    %11 = vector.broadcast %cst_11 : f32 to vector<40x1xf32>
    %12 = arith.divf %10, %11 : vector<40x1xf32>
    %13 = vector.broadcast %12 : vector<40x1xf32> to vector<40x32xf32>
    %14 = arith.subf %8, %13 : vector<40x32xf32>
    %15 = arith.mulf %14, %14 : vector<40x32xf32>
    %cst_12 = arith.constant dense<0.000000e+00> : vector<40xf32>
    %16 = vector.multi_reduction <add>, %15, %cst_12 [1] : vector<40x32xf32> to vector<40xf32>
    %17 = vector.shape_cast %16 : vector<40xf32> to vector<40x1xf32>
    %cst_13 = arith.constant 3.200000e+01 : f32
    %18 = vector.broadcast %cst_13 : f32 to vector<40x1xf32>
    %19 = arith.divf %17, %18 : vector<40x1xf32>
    %20 = vector.broadcast %12 : vector<40x1xf32> to vector<40x32xf32>
    %21 = arith.subf %8, %20 : vector<40x32xf32>
    %cst_14 = arith.constant 9.99999974E-6 : f32
    %22 = vector.broadcast %cst_14 : f32 to vector<40x1xf32>
    %23 = arith.addf %19, %22 : vector<40x1xf32>
    %24 = math.rsqrt %23 : vector<40x1xf32>
    %25 = vector.broadcast %24 : vector<40x1xf32> to vector<40x32xf32>
    %26 = arith.mulf %21, %25 : vector<40x32xf32>
    %27 = vector.broadcast %0 : vector<1x32xf32> to vector<40x32xf32>
    %28 = arith.mulf %26, %27 : vector<40x32xf32>
    %29 = vector.broadcast %1 : vector<1x32xf32> to vector<40x32xf32>
    %30 = arith.addf %28, %29 : vector<40x32xf32>
    %c0_15 = arith.constant 0 : index
    %c0_16 = arith.constant 0 : index
    %31 = vector.load %arg3[%c0_15, %c0_16] : memref<40x40xf32, #tpu.memory_space<vmem>>, vector<40x40xf32>
    %32 = tpu.iota {dimensions = array<i32: 1>} : vector<40x32xi32>
    %c0_i32 = arith.constant 0 : i32
    %33 = vector.broadcast %c0_i32 : i32 to vector<40x32xi32>
    %34 = arith.cmpi sge, %32, %33 : vector<40x32xi32>
    %c8_i32 = arith.constant 8 : i32
    %35 = vector.broadcast %c8_i32 : i32 to vector<40x32xi32>
    %36 = arith.cmpi slt, %32, %35 : vector<40x32xi32>
    %37 = arith.andi %34, %36 : vector<40x32xi1>
    %38 = arith.extui %37 : vector<40x32xi1> to vector<40x32xi32>
    %39 = arith.sitofp %38 : vector<40x32xi32> to vector<40x32xf32>
    %c8_i32_17 = arith.constant 8 : i32
    %40 = vector.broadcast %c8_i32_17 : i32 to vector<40x32xi32>
    %41 = arith.cmpi sge, %32, %40 : vector<40x32xi32>
    %c16_i32 = arith.constant 16 : i32
    %42 = vector.broadcast %c16_i32 : i32 to vector<40x32xi32>
    %43 = arith.cmpi slt, %32, %42 : vector<40x32xi32>
    %44 = arith.andi %41, %43 : vector<40x32xi1>
    %45 = arith.extui %44 : vector<40x32xi1> to vector<40x32xi32>
    %46 = arith.sitofp %45 : vector<40x32xi32> to vector<40x32xf32>
    %c16_i32_18 = arith.constant 16 : i32
    %47 = vector.broadcast %c16_i32_18 : i32 to vector<40x32xi32>
    %48 = arith.cmpi sge, %32, %47 : vector<40x32xi32>
    %c24_i32 = arith.constant 24 : i32
    %49 = vector.broadcast %c24_i32 : i32 to vector<40x32xi32>
    %50 = arith.cmpi slt, %32, %49 : vector<40x32xi32>
    %51 = arith.andi %48, %50 : vector<40x32xi1>
    %52 = arith.extui %51 : vector<40x32xi1> to vector<40x32xi32>
    %53 = arith.sitofp %52 : vector<40x32xi32> to vector<40x32xf32>
    %c24_i32_19 = arith.constant 24 : i32
    %54 = vector.broadcast %c24_i32_19 : i32 to vector<40x32xi32>
    %55 = arith.cmpi sge, %32, %54 : vector<40x32xi32>
    %c32_i32 = arith.constant 32 : i32
    %56 = vector.broadcast %c32_i32 : i32 to vector<40x32xi32>
    %57 = arith.cmpi slt, %32, %56 : vector<40x32xi32>
    %58 = arith.andi %55, %57 : vector<40x32xi1>
    %59 = arith.extui %58 : vector<40x32xi1> to vector<40x32xi32>
    %60 = arith.sitofp %59 : vector<40x32xi32> to vector<40x32xf32>
    %c4 = arith.constant 4 : index
    %c0_20 = arith.constant 0 : index
    %61 = vector.load %arg5[%c4, %c0_20] : memref<16x32xf32, #tpu.memory_space<vmem>>, vector<1x32xf32>
    %c5 = arith.constant 5 : index
    %c0_21 = arith.constant 0 : index
    %62 = vector.load %arg5[%c5, %c0_21] : memref<16x32xf32, #tpu.memory_space<vmem>>, vector<1x32xf32>
    %c6 = arith.constant 6 : index
    %c0_22 = arith.constant 0 : index
    %63 = vector.load %arg5[%c6, %c0_22] : memref<16x32xf32, #tpu.memory_space<vmem>>, vector<1x32xf32>
    %c7 = arith.constant 7 : index
    %c0_23 = arith.constant 0 : index
    %64 = vector.load %arg5[%c7, %c0_23] : memref<16x32xf32, #tpu.memory_space<vmem>>, vector<1x32xf32>
    %c8 = arith.constant 8 : index
    %c0_24 = arith.constant 0 : index
    %65 = vector.load %arg5[%c8, %c0_24] : memref<16x32xf32, #tpu.memory_space<vmem>>, vector<1x32xf32>
    %c9 = arith.constant 9 : index
    %c0_25 = arith.constant 0 : index
    %66 = vector.load %arg5[%c9, %c0_25] : memref<16x32xf32, #tpu.memory_space<vmem>>, vector<1x32xf32>
    %c0_26 = arith.constant 0 : index
    %c0_27 = arith.constant 0 : index
    %67 = vector.load %arg6[%c0_26, %c0_27] : memref<5x128xf32, #tpu.memory_space<vmem>>, vector<1x96xf32>
    %c1_28 = arith.constant 1 : index
    %c0_29 = arith.constant 0 : index
    %68 = vector.load %arg6[%c1_28, %c0_29] : memref<5x128xf32, #tpu.memory_space<vmem>>, vector<1x128xf32>
    %cst_30 = arith.constant dense<0.000000e+00> : vector<40xf32>
    %69 = vector.multi_reduction <add>, %30, %cst_30 [1] : vector<40x32xf32> to vector<40xf32>
    %70 = vector.shape_cast %69 : vector<40xf32> to vector<40x1xf32>
    %cst_31 = arith.constant 3.200000e+01 : f32
    %71 = vector.broadcast %cst_31 : f32 to vector<40x1xf32>
    %72 = arith.divf %70, %71 : vector<40x1xf32>
    %73 = vector.broadcast %72 : vector<40x1xf32> to vector<40x32xf32>
    %74 = arith.subf %30, %73 : vector<40x32xf32>
    %75 = arith.mulf %74, %74 : vector<40x32xf32>
    %cst_32 = arith.constant dense<0.000000e+00> : vector<40xf32>
    %76 = vector.multi_reduction <add>, %75, %cst_32 [1] : vector<40x32xf32> to vector<40xf32>
    %77 = vector.shape_cast %76 : vector<40xf32> to vector<40x1xf32>
    %cst_33 = arith.constant 3.200000e+01 : f32
    %78 = vector.broadcast %cst_33 : f32 to vector<40x1xf32>
    %79 = arith.divf %77, %78 : vector<40x1xf32>
    %80 = vector.broadcast %72 : vector<40x1xf32> to vector<40x32xf32>
    %81 = arith.subf %30, %80 : vector<40x32xf32>
    %cst_34 = arith.constant 9.99999974E-6 : f32
    %82 = vector.broadcast %cst_34 : f32 to vector<40x1xf32>
    %83 = arith.addf %79, %82 : vector<40x1xf32>
    %84 = math.rsqrt %83 : vector<40x1xf32>
    %85 = vector.broadcast %84 : vector<40x1xf32> to vector<40x32xf32>
    %86 = arith.mulf %81, %85 : vector<40x32xf32>
    %87 = vector.broadcast %61 : vector<1x32xf32> to vector<40x32xf32>
    %88 = arith.mulf %86, %87 : vector<40x32xf32>
    %89 = vector.broadcast %62 : vector<1x32xf32> to vector<40x32xf32>
    %90 = arith.addf %88, %89 : vector<40x32xf32>
    %91 = arith.truncf %90 : vector<40x32xf32> to vector<40x32xbf16>
    %c0_35 = arith.constant 0 : index
    %c0_36 = arith.constant 0 : index
    %c0_37 = arith.constant 0 : index
    %92 = vector.load %arg7[%c0_35, %c0_36, %c0_37] : memref<2x32x96xbf16, #tpu.memory_space<vmem>>, vector<1x32x96xbf16>
    %93 = vector.shape_cast %92 : vector<1x32x96xbf16> to vector<32x96xbf16>
    %cst_38 = arith.constant dense<0.000000e+00> : vector<40x96xf32>
    %94 = tpu.matmul %91, %93, %cst_38 {dimension_numbers = #tpu.dot_dimension_numbers<[1], [0], [0], [1], [0, 0, 1, 1], [], []>} : vector<40x32xbf16>, vector<32x96xbf16>, vector<40x96xf32> -> vector<40x96xf32>
    %95 = vector.broadcast %67 : vector<1x96xf32> to vector<40x96xf32>
    %96 = arith.addf %94, %95 : vector<40x96xf32>
    %97 = vector.extract_strided_slice %96 {offsets = [0, 0], sizes = [40, 32], strides = [1, 1]} : vector<40x96xf32> to vector<40x32xf32>
    %98 = vector.extract_strided_slice %96 {offsets = [0, 32], sizes = [40, 32], strides = [1, 1]} : vector<40x96xf32> to vector<40x32xf32>
    %99 = vector.extract_strided_slice %96 {offsets = [0, 64], sizes = [40, 32], strides = [1, 1]} : vector<40x96xf32> to vector<40x32xf32>
    %100 = arith.truncf %98 : vector<40x32xf32> to vector<40x32xbf16>
    %101 = arith.mulf %97, %39 : vector<40x32xf32>
    %102 = arith.truncf %101 : vector<40x32xf32> to vector<40x32xbf16>
    %103 = arith.mulf %99, %39 : vector<40x32xf32>
    %104 = arith.truncf %103 : vector<40x32xf32> to vector<40x32xbf16>
    %cst_39 = arith.constant dense<0.000000e+00> : vector<40x40xf32>
    %105 = tpu.matmul %102, %100, %cst_39 {dimension_numbers = #tpu.dot_dimension_numbers<[1], [1], [0], [0], [0, 0, 1, 0], [], []>} : vector<40x32xbf16>, vector<40x32xbf16>, vector<40x40xf32> -> vector<40x40xf32>
    %106 = arith.addf %105, %31 : vector<40x40xf32>
    %cst_40 = arith.constant dense<0xFF800000> : vector<40xf32>
    %107 = vector.multi_reduction <maximumf>, %106, %cst_40 [1] : vector<40x40xf32> to vector<40xf32>
    %108 = vector.shape_cast %107 : vector<40xf32> to vector<40x1xf32>
    %109 = vector.broadcast %108 : vector<40x1xf32> to vector<40x40xf32>
    %110 = arith.subf %106, %109 : vector<40x40xf32>
    %111 = math.exp %110 : vector<40x40xf32>
    %cst_41 = arith.constant dense<0.000000e+00> : vector<40xf32>
    %112 = vector.multi_reduction <add>, %111, %cst_41 [1] : vector<40x40xf32> to vector<40xf32>
    %113 = vector.shape_cast %112 : vector<40xf32> to vector<40x1xf32>
    %114 = tpu.reciprocal %113 {approx = true} : vector<40x1xf32> -> vector<40x1xf32>
    %115 = vector.broadcast %114 : vector<40x1xf32> to vector<40x40xf32>
    %116 = arith.mulf %111, %115 : vector<40x40xf32>
    %117 = arith.truncf %116 : vector<40x40xf32> to vector<40x40xbf16>
    %cst_42 = arith.constant dense<0.000000e+00> : vector<40x32xf32>
    %118 = tpu.matmul %117, %104, %cst_42 {dimension_numbers = #tpu.dot_dimension_numbers<[1], [0], [0], [1], [0, 0, 1, 1], [], []>} : vector<40x40xbf16>, vector<40x32xbf16>, vector<40x32xf32> -> vector<40x32xf32>
    %119 = arith.mulf %97, %46 : vector<40x32xf32>
    %120 = arith.truncf %119 : vector<40x32xf32> to vector<40x32xbf16>
    %121 = arith.mulf %99, %46 : vector<40x32xf32>
    %122 = arith.truncf %121 : vector<40x32xf32> to vector<40x32xbf16>
    %cst_43 = arith.constant dense<0.000000e+00> : vector<40x40xf32>
    %123 = tpu.matmul %120, %100, %cst_43 {dimension_numbers = #tpu.dot_dimension_numbers<[1], [1], [0], [0], [0, 0, 1, 0], [], []>} : vector<40x32xbf16>, vector<40x32xbf16>, vector<40x40xf32> -> vector<40x40xf32>
    %124 = arith.addf %123, %31 : vector<40x40xf32>
    %cst_44 = arith.constant dense<0xFF800000> : vector<40xf32>
    %125 = vector.multi_reduction <maximumf>, %124, %cst_44 [1] : vector<40x40xf32> to vector<40xf32>
    %126 = vector.shape_cast %125 : vector<40xf32> to vector<40x1xf32>
    %127 = vector.broadcast %126 : vector<40x1xf32> to vector<40x40xf32>
    %128 = arith.subf %124, %127 : vector<40x40xf32>
    %129 = math.exp %128 : vector<40x40xf32>
    %cst_45 = arith.constant dense<0.000000e+00> : vector<40xf32>
    %130 = vector.multi_reduction <add>, %129, %cst_45 [1] : vector<40x40xf32> to vector<40xf32>
    %131 = vector.shape_cast %130 : vector<40xf32> to vector<40x1xf32>
    %132 = tpu.reciprocal %131 {approx = true} : vector<40x1xf32> -> vector<40x1xf32>
    %133 = vector.broadcast %132 : vector<40x1xf32> to vector<40x40xf32>
    %134 = arith.mulf %129, %133 : vector<40x40xf32>
    %135 = arith.truncf %134 : vector<40x40xf32> to vector<40x40xbf16>
    %cst_46 = arith.constant dense<0.000000e+00> : vector<40x32xf32>
    %136 = tpu.matmul %135, %122, %cst_46 {dimension_numbers = #tpu.dot_dimension_numbers<[1], [0], [0], [1], [0, 0, 1, 1], [], []>} : vector<40x40xbf16>, vector<40x32xbf16>, vector<40x32xf32> -> vector<40x32xf32>
    %137 = arith.addf %118, %136 : vector<40x32xf32>
    %138 = arith.mulf %97, %53 : vector<40x32xf32>
    %139 = arith.truncf %138 : vector<40x32xf32> to vector<40x32xbf16>
    %140 = arith.mulf %99, %53 : vector<40x32xf32>
    %141 = arith.truncf %140 : vector<40x32xf32> to vector<40x32xbf16>
    %cst_47 = arith.constant dense<0.000000e+00> : vector<40x40xf32>
    %142 = tpu.matmul %139, %100, %cst_47 {dimension_numbers = #tpu.dot_dimension_numbers<[1], [1], [0], [0], [0, 0, 1, 0], [], []>} : vector<40x32xbf16>, vector<40x32xbf16>, vector<40x40xf32> -> vector<40x40xf32>
    %143 = arith.addf %142, %31 : vector<40x40xf32>
    %cst_48 = arith.constant dense<0xFF800000> : vector<40xf32>
    %144 = vector.multi_reduction <maximumf>, %143, %cst_48 [1] : vector<40x40xf32> to vector<40xf32>
    %145 = vector.shape_cast %144 : vector<40xf32> to vector<40x1xf32>
    %146 = vector.broadcast %145 : vector<40x1xf32> to vector<40x40xf32>
    %147 = arith.subf %143, %146 : vector<40x40xf32>
    %148 = math.exp %147 : vector<40x40xf32>
    %cst_49 = arith.constant dense<0.000000e+00> : vector<40xf32>
    %149 = vector.multi_reduction <add>, %148, %cst_49 [1] : vector<40x40xf32> to vector<40xf32>
    %150 = vector.shape_cast %149 : vector<40xf32> to vector<40x1xf32>
    %151 = tpu.reciprocal %150 {approx = true} : vector<40x1xf32> -> vector<40x1xf32>
    %152 = vector.broadcast %151 : vector<40x1xf32> to vector<40x40xf32>
    %153 = arith.mulf %148, %152 : vector<40x40xf32>
    %154 = arith.truncf %153 : vector<40x40xf32> to vector<40x40xbf16>
    %cst_50 = arith.constant dense<0.000000e+00> : vector<40x32xf32>
    %155 = tpu.matmul %154, %141, %cst_50 {dimension_numbers = #tpu.dot_dimension_numbers<[1], [0], [0], [1], [0, 0, 1, 1], [], []>} : vector<40x40xbf16>, vector<40x32xbf16>, vector<40x32xf32> -> vector<40x32xf32>
    %156 = arith.addf %137, %155 : vector<40x32xf32>
    %157 = arith.mulf %97, %60 : vector<40x32xf32>
    %158 = arith.truncf %157 : vector<40x32xf32> to vector<40x32xbf16>
    %159 = arith.mulf %99, %60 : vector<40x32xf32>
    %160 = arith.truncf %159 : vector<40x32xf32> to vector<40x32xbf16>
    %cst_51 = arith.constant dense<0.000000e+00> : vector<40x40xf32>
    %161 = tpu.matmul %158, %100, %cst_51 {dimension_numbers = #tpu.dot_dimension_numbers<[1], [1], [0], [0], [0, 0, 1, 0], [], []>} : vector<40x32xbf16>, vector<40x32xbf16>, vector<40x40xf32> -> vector<40x40xf32>
    %162 = arith.addf %161, %31 : vector<40x40xf32>
    %cst_52 = arith.constant dense<0xFF800000> : vector<40xf32>
    %163 = vector.multi_reduction <maximumf>, %162, %cst_52 [1] : vector<40x40xf32> to vector<40xf32>
    %164 = vector.shape_cast %163 : vector<40xf32> to vector<40x1xf32>
    %165 = vector.broadcast %164 : vector<40x1xf32> to vector<40x40xf32>
    %166 = arith.subf %162, %165 : vector<40x40xf32>
    %167 = math.exp %166 : vector<40x40xf32>
    %cst_53 = arith.constant dense<0.000000e+00> : vector<40xf32>
    %168 = vector.multi_reduction <add>, %167, %cst_53 [1] : vector<40x40xf32> to vector<40xf32>
    %169 = vector.shape_cast %168 : vector<40xf32> to vector<40x1xf32>
    %170 = tpu.reciprocal %169 {approx = true} : vector<40x1xf32> -> vector<40x1xf32>
    %171 = vector.broadcast %170 : vector<40x1xf32> to vector<40x40xf32>
    %172 = arith.mulf %167, %171 : vector<40x40xf32>
    %173 = arith.truncf %172 : vector<40x40xf32> to vector<40x40xbf16>
    %cst_54 = arith.constant dense<0.000000e+00> : vector<40x32xf32>
    %174 = tpu.matmul %173, %160, %cst_54 {dimension_numbers = #tpu.dot_dimension_numbers<[1], [0], [0], [1], [0, 0, 1, 1], [], []>} : vector<40x40xbf16>, vector<40x32xbf16>, vector<40x32xf32> -> vector<40x32xf32>
    %175 = arith.addf %156, %174 : vector<40x32xf32>
    %176 = arith.truncf %175 : vector<40x32xf32> to vector<40x32xbf16>
    %c0_55 = arith.constant 0 : index
    %c0_56 = arith.constant 0 : index
    %c0_57 = arith.constant 0 : index
    %177 = vector.load %arg8[%c0_55, %c0_56, %c0_57] : memref<2x32x32xbf16, #tpu.memory_space<vmem>>, vector<1x32x32xbf16>
    %178 = vector.shape_cast %177 : vector<1x32x32xbf16> to vector<32x32xbf16>
    %cst_58 = arith.constant dense<0.000000e+00> : vector<40x32xf32>
    %179 = tpu.matmul %176, %178, %cst_58 {dimension_numbers = #tpu.dot_dimension_numbers<[1], [0], [0], [1], [0, 0, 1, 1], [], []>} : vector<40x32xbf16>, vector<32x32xbf16>, vector<40x32xf32> -> vector<40x32xf32>
    %180 = vector.broadcast %63 : vector<1x32xf32> to vector<40x32xf32>
    %181 = arith.addf %179, %180 : vector<40x32xf32>
    %182 = arith.addf %30, %181 : vector<40x32xf32>
    %cst_59 = arith.constant dense<0.000000e+00> : vector<40xf32>
    %183 = vector.multi_reduction <add>, %182, %cst_59 [1] : vector<40x32xf32> to vector<40xf32>
    %184 = vector.shape_cast %183 : vector<40xf32> to vector<40x1xf32>
    %cst_60 = arith.constant 3.200000e+01 : f32
    %185 = vector.broadcast %cst_60 : f32 to vector<40x1xf32>
    %186 = arith.divf %184, %185 : vector<40x1xf32>
    %187 = vector.broadcast %186 : vector<40x1xf32> to vector<40x32xf32>
    %188 = arith.subf %182, %187 : vector<40x32xf32>
    %189 = arith.mulf %188, %188 : vector<40x32xf32>
    %cst_61 = arith.constant dense<0.000000e+00> : vector<40xf32>
    %190 = vector.multi_reduction <add>, %189, %cst_61 [1] : vector<40x32xf32> to vector<40xf32>
    %191 = vector.shape_cast %190 : vector<40xf32> to vector<40x1xf32>
    %cst_62 = arith.constant 3.200000e+01 : f32
    %192 = vector.broadcast %cst_62 : f32 to vector<40x1xf32>
    %193 = arith.divf %191, %192 : vector<40x1xf32>
    %194 = vector.broadcast %186 : vector<40x1xf32> to vector<40x32xf32>
    %195 = arith.subf %182, %194 : vector<40x32xf32>
    %cst_63 = arith.constant 9.99999974E-6 : f32
    %196 = vector.broadcast %cst_63 : f32 to vector<40x1xf32>
    %197 = arith.addf %193, %196 : vector<40x1xf32>
    %198 = math.rsqrt %197 : vector<40x1xf32>
    %199 = vector.broadcast %198 : vector<40x1xf32> to vector<40x32xf32>
    %200 = arith.mulf %195, %199 : vector<40x32xf32>
    %201 = vector.broadcast %64 : vector<1x32xf32> to vector<40x32xf32>
    %202 = arith.mulf %200, %201 : vector<40x32xf32>
    %203 = vector.broadcast %65 : vector<1x32xf32> to vector<40x32xf32>
    %204 = arith.addf %202, %203 : vector<40x32xf32>
    %205 = arith.truncf %204 : vector<40x32xf32> to vector<40x32xbf16>
    %c0_64 = arith.constant 0 : index
    %c0_65 = arith.constant 0 : index
    %c0_66 = arith.constant 0 : index
    %206 = vector.load %arg9[%c0_64, %c0_65, %c0_66] : memref<2x32x128xbf16, #tpu.memory_space<vmem>>, vector<1x32x128xbf16>
    %207 = vector.shape_cast %206 : vector<1x32x128xbf16> to vector<32x128xbf16>
    %cst_67 = arith.constant dense<0.000000e+00> : vector<40x128xf32>
    %208 = tpu.matmul %205, %207, %cst_67 {dimension_numbers = #tpu.dot_dimension_numbers<[1], [0], [0], [1], [0, 0, 1, 1], [], []>} : vector<40x32xbf16>, vector<32x128xbf16>, vector<40x128xf32> -> vector<40x128xf32>
    %209 = vector.broadcast %68 : vector<1x128xf32> to vector<40x128xf32>
    %210 = arith.addf %208, %209 : vector<40x128xf32>
    %cst_68 = arith.constant 1.702000e+00 : f32
    %211 = vector.broadcast %cst_68 : f32 to vector<40x128xf32>
    %212 = arith.mulf %211, %210 : vector<40x128xf32>
    %213 = arith.negf %212 : vector<40x128xf32>
    %214 = math.exp %213 : vector<40x128xf32>
    %cst_69 = arith.constant 1.000000e+00 : f32
    %215 = vector.broadcast %cst_69 : f32 to vector<40x128xf32>
    %216 = arith.addf %215, %214 : vector<40x128xf32>
    %217 = arith.divf %215, %216 : vector<40x128xf32>
    %218 = arith.mulf %210, %217 : vector<40x128xf32>
    %219 = arith.truncf %218 : vector<40x128xf32> to vector<40x128xbf16>
    %c0_70 = arith.constant 0 : index
    %c0_71 = arith.constant 0 : index
    %c0_72 = arith.constant 0 : index
    %220 = vector.load %arg10[%c0_70, %c0_71, %c0_72] : memref<2x128x32xbf16, #tpu.memory_space<vmem>>, vector<1x128x32xbf16>
    %221 = vector.shape_cast %220 : vector<1x128x32xbf16> to vector<128x32xbf16>
    %cst_73 = arith.constant dense<0.000000e+00> : vector<40x32xf32>
    %222 = tpu.matmul %219, %221, %cst_73 {dimension_numbers = #tpu.dot_dimension_numbers<[1], [0], [0], [1], [0, 0, 1, 1], [], []>} : vector<40x128xbf16>, vector<128x32xbf16>, vector<40x32xf32> -> vector<40x32xf32>
    %223 = vector.broadcast %66 : vector<1x32xf32> to vector<40x32xf32>
    %224 = arith.addf %222, %223 : vector<40x32xf32>
    %225 = arith.addf %182, %224 : vector<40x32xf32>
    %c10 = arith.constant 10 : index
    %c0_74 = arith.constant 0 : index
    %226 = vector.load %arg5[%c10, %c0_74] : memref<16x32xf32, #tpu.memory_space<vmem>>, vector<1x32xf32>
    %c11 = arith.constant 11 : index
    %c0_75 = arith.constant 0 : index
    %227 = vector.load %arg5[%c11, %c0_75] : memref<16x32xf32, #tpu.memory_space<vmem>>, vector<1x32xf32>
    %c12 = arith.constant 12 : index
    %c0_76 = arith.constant 0 : index
    %228 = vector.load %arg5[%c12, %c0_76] : memref<16x32xf32, #tpu.memory_space<vmem>>, vector<1x32xf32>
    %c13 = arith.constant 13 : index
    %c0_77 = arith.constant 0 : index
    %229 = vector.load %arg5[%c13, %c0_77] : memref<16x32xf32, #tpu.memory_space<vmem>>, vector<1x32xf32>
    %c14 = arith.constant 14 : index
    %c0_78 = arith.constant 0 : index
    %230 = vector.load %arg5[%c14, %c0_78] : memref<16x32xf32, #tpu.memory_space<vmem>>, vector<1x32xf32>
    %c15 = arith.constant 15 : index
    %c0_79 = arith.constant 0 : index
    %231 = vector.load %arg5[%c15, %c0_79] : memref<16x32xf32, #tpu.memory_space<vmem>>, vector<1x32xf32>
    %c2_80 = arith.constant 2 : index
    %c0_81 = arith.constant 0 : index
    %232 = vector.load %arg6[%c2_80, %c0_81] : memref<5x128xf32, #tpu.memory_space<vmem>>, vector<1x96xf32>
    %c3_82 = arith.constant 3 : index
    %c0_83 = arith.constant 0 : index
    %233 = vector.load %arg6[%c3_82, %c0_83] : memref<5x128xf32, #tpu.memory_space<vmem>>, vector<1x128xf32>
    %cst_84 = arith.constant dense<0.000000e+00> : vector<40xf32>
    %234 = vector.multi_reduction <add>, %225, %cst_84 [1] : vector<40x32xf32> to vector<40xf32>
    %235 = vector.shape_cast %234 : vector<40xf32> to vector<40x1xf32>
    %cst_85 = arith.constant 3.200000e+01 : f32
    %236 = vector.broadcast %cst_85 : f32 to vector<40x1xf32>
    %237 = arith.divf %235, %236 : vector<40x1xf32>
    %238 = vector.broadcast %237 : vector<40x1xf32> to vector<40x32xf32>
    %239 = arith.subf %225, %238 : vector<40x32xf32>
    %240 = arith.mulf %239, %239 : vector<40x32xf32>
    %cst_86 = arith.constant dense<0.000000e+00> : vector<40xf32>
    %241 = vector.multi_reduction <add>, %240, %cst_86 [1] : vector<40x32xf32> to vector<40xf32>
    %242 = vector.shape_cast %241 : vector<40xf32> to vector<40x1xf32>
    %cst_87 = arith.constant 3.200000e+01 : f32
    %243 = vector.broadcast %cst_87 : f32 to vector<40x1xf32>
    %244 = arith.divf %242, %243 : vector<40x1xf32>
    %245 = vector.broadcast %237 : vector<40x1xf32> to vector<40x32xf32>
    %246 = arith.subf %225, %245 : vector<40x32xf32>
    %cst_88 = arith.constant 9.99999974E-6 : f32
    %247 = vector.broadcast %cst_88 : f32 to vector<40x1xf32>
    %248 = arith.addf %244, %247 : vector<40x1xf32>
    %249 = math.rsqrt %248 : vector<40x1xf32>
    %250 = vector.broadcast %249 : vector<40x1xf32> to vector<40x32xf32>
    %251 = arith.mulf %246, %250 : vector<40x32xf32>
    %252 = vector.broadcast %226 : vector<1x32xf32> to vector<40x32xf32>
    %253 = arith.mulf %251, %252 : vector<40x32xf32>
    %254 = vector.broadcast %227 : vector<1x32xf32> to vector<40x32xf32>
    %255 = arith.addf %253, %254 : vector<40x32xf32>
    %256 = arith.truncf %255 : vector<40x32xf32> to vector<40x32xbf16>
    %c1_89 = arith.constant 1 : index
    %c0_90 = arith.constant 0 : index
    %c0_91 = arith.constant 0 : index
    %257 = vector.load %arg7[%c1_89, %c0_90, %c0_91] : memref<2x32x96xbf16, #tpu.memory_space<vmem>>, vector<1x32x96xbf16>
    %258 = vector.shape_cast %257 : vector<1x32x96xbf16> to vector<32x96xbf16>
    %cst_92 = arith.constant dense<0.000000e+00> : vector<40x96xf32>
    %259 = tpu.matmul %256, %258, %cst_92 {dimension_numbers = #tpu.dot_dimension_numbers<[1], [0], [0], [1], [0, 0, 1, 1], [], []>} : vector<40x32xbf16>, vector<32x96xbf16>, vector<40x96xf32> -> vector<40x96xf32>
    %260 = vector.broadcast %232 : vector<1x96xf32> to vector<40x96xf32>
    %261 = arith.addf %259, %260 : vector<40x96xf32>
    %262 = vector.extract_strided_slice %261 {offsets = [0, 0], sizes = [40, 32], strides = [1, 1]} : vector<40x96xf32> to vector<40x32xf32>
    %263 = vector.extract_strided_slice %261 {offsets = [0, 32], sizes = [40, 32], strides = [1, 1]} : vector<40x96xf32> to vector<40x32xf32>
    %264 = vector.extract_strided_slice %261 {offsets = [0, 64], sizes = [40, 32], strides = [1, 1]} : vector<40x96xf32> to vector<40x32xf32>
    %265 = arith.truncf %263 : vector<40x32xf32> to vector<40x32xbf16>
    %266 = arith.mulf %262, %39 : vector<40x32xf32>
    %267 = arith.truncf %266 : vector<40x32xf32> to vector<40x32xbf16>
    %268 = arith.mulf %264, %39 : vector<40x32xf32>
    %269 = arith.truncf %268 : vector<40x32xf32> to vector<40x32xbf16>
    %cst_93 = arith.constant dense<0.000000e+00> : vector<40x40xf32>
    %270 = tpu.matmul %267, %265, %cst_93 {dimension_numbers = #tpu.dot_dimension_numbers<[1], [1], [0], [0], [0, 0, 1, 0], [], []>} : vector<40x32xbf16>, vector<40x32xbf16>, vector<40x40xf32> -> vector<40x40xf32>
    %271 = arith.addf %270, %31 : vector<40x40xf32>
    %cst_94 = arith.constant dense<0xFF800000> : vector<40xf32>
    %272 = vector.multi_reduction <maximumf>, %271, %cst_94 [1] : vector<40x40xf32> to vector<40xf32>
    %273 = vector.shape_cast %272 : vector<40xf32> to vector<40x1xf32>
    %274 = vector.broadcast %273 : vector<40x1xf32> to vector<40x40xf32>
    %275 = arith.subf %271, %274 : vector<40x40xf32>
    %276 = math.exp %275 : vector<40x40xf32>
    %cst_95 = arith.constant dense<0.000000e+00> : vector<40xf32>
    %277 = vector.multi_reduction <add>, %276, %cst_95 [1] : vector<40x40xf32> to vector<40xf32>
    %278 = vector.shape_cast %277 : vector<40xf32> to vector<40x1xf32>
    %279 = tpu.reciprocal %278 {approx = true} : vector<40x1xf32> -> vector<40x1xf32>
    %280 = vector.broadcast %279 : vector<40x1xf32> to vector<40x40xf32>
    %281 = arith.mulf %276, %280 : vector<40x40xf32>
    %282 = arith.truncf %281 : vector<40x40xf32> to vector<40x40xbf16>
    %cst_96 = arith.constant dense<0.000000e+00> : vector<40x32xf32>
    %283 = tpu.matmul %282, %269, %cst_96 {dimension_numbers = #tpu.dot_dimension_numbers<[1], [0], [0], [1], [0, 0, 1, 1], [], []>} : vector<40x40xbf16>, vector<40x32xbf16>, vector<40x32xf32> -> vector<40x32xf32>
    %284 = arith.mulf %262, %46 : vector<40x32xf32>
    %285 = arith.truncf %284 : vector<40x32xf32> to vector<40x32xbf16>
    %286 = arith.mulf %264, %46 : vector<40x32xf32>
    %287 = arith.truncf %286 : vector<40x32xf32> to vector<40x32xbf16>
    %cst_97 = arith.constant dense<0.000000e+00> : vector<40x40xf32>
    %288 = tpu.matmul %285, %265, %cst_97 {dimension_numbers = #tpu.dot_dimension_numbers<[1], [1], [0], [0], [0, 0, 1, 0], [], []>} : vector<40x32xbf16>, vector<40x32xbf16>, vector<40x40xf32> -> vector<40x40xf32>
    %289 = arith.addf %288, %31 : vector<40x40xf32>
    %cst_98 = arith.constant dense<0xFF800000> : vector<40xf32>
    %290 = vector.multi_reduction <maximumf>, %289, %cst_98 [1] : vector<40x40xf32> to vector<40xf32>
    %291 = vector.shape_cast %290 : vector<40xf32> to vector<40x1xf32>
    %292 = vector.broadcast %291 : vector<40x1xf32> to vector<40x40xf32>
    %293 = arith.subf %289, %292 : vector<40x40xf32>
    %294 = math.exp %293 : vector<40x40xf32>
    %cst_99 = arith.constant dense<0.000000e+00> : vector<40xf32>
    %295 = vector.multi_reduction <add>, %294, %cst_99 [1] : vector<40x40xf32> to vector<40xf32>
    %296 = vector.shape_cast %295 : vector<40xf32> to vector<40x1xf32>
    %297 = tpu.reciprocal %296 {approx = true} : vector<40x1xf32> -> vector<40x1xf32>
    %298 = vector.broadcast %297 : vector<40x1xf32> to vector<40x40xf32>
    %299 = arith.mulf %294, %298 : vector<40x40xf32>
    %300 = arith.truncf %299 : vector<40x40xf32> to vector<40x40xbf16>
    %cst_100 = arith.constant dense<0.000000e+00> : vector<40x32xf32>
    %301 = tpu.matmul %300, %287, %cst_100 {dimension_numbers = #tpu.dot_dimension_numbers<[1], [0], [0], [1], [0, 0, 1, 1], [], []>} : vector<40x40xbf16>, vector<40x32xbf16>, vector<40x32xf32> -> vector<40x32xf32>
    %302 = arith.addf %283, %301 : vector<40x32xf32>
    %303 = arith.mulf %262, %53 : vector<40x32xf32>
    %304 = arith.truncf %303 : vector<40x32xf32> to vector<40x32xbf16>
    %305 = arith.mulf %264, %53 : vector<40x32xf32>
    %306 = arith.truncf %305 : vector<40x32xf32> to vector<40x32xbf16>
    %cst_101 = arith.constant dense<0.000000e+00> : vector<40x40xf32>
    %307 = tpu.matmul %304, %265, %cst_101 {dimension_numbers = #tpu.dot_dimension_numbers<[1], [1], [0], [0], [0, 0, 1, 0], [], []>} : vector<40x32xbf16>, vector<40x32xbf16>, vector<40x40xf32> -> vector<40x40xf32>
    %308 = arith.addf %307, %31 : vector<40x40xf32>
    %cst_102 = arith.constant dense<0xFF800000> : vector<40xf32>
    %309 = vector.multi_reduction <maximumf>, %308, %cst_102 [1] : vector<40x40xf32> to vector<40xf32>
    %310 = vector.shape_cast %309 : vector<40xf32> to vector<40x1xf32>
    %311 = vector.broadcast %310 : vector<40x1xf32> to vector<40x40xf32>
    %312 = arith.subf %308, %311 : vector<40x40xf32>
    %313 = math.exp %312 : vector<40x40xf32>
    %cst_103 = arith.constant dense<0.000000e+00> : vector<40xf32>
    %314 = vector.multi_reduction <add>, %313, %cst_103 [1] : vector<40x40xf32> to vector<40xf32>
    %315 = vector.shape_cast %314 : vector<40xf32> to vector<40x1xf32>
    %316 = tpu.reciprocal %315 {approx = true} : vector<40x1xf32> -> vector<40x1xf32>
    %317 = vector.broadcast %316 : vector<40x1xf32> to vector<40x40xf32>
    %318 = arith.mulf %313, %317 : vector<40x40xf32>
    %319 = arith.truncf %318 : vector<40x40xf32> to vector<40x40xbf16>
    %cst_104 = arith.constant dense<0.000000e+00> : vector<40x32xf32>
    %320 = tpu.matmul %319, %306, %cst_104 {dimension_numbers = #tpu.dot_dimension_numbers<[1], [0], [0], [1], [0, 0, 1, 1], [], []>} : vector<40x40xbf16>, vector<40x32xbf16>, vector<40x32xf32> -> vector<40x32xf32>
    %321 = arith.addf %302, %320 : vector<40x32xf32>
    %322 = arith.mulf %262, %60 : vector<40x32xf32>
    %323 = arith.truncf %322 : vector<40x32xf32> to vector<40x32xbf16>
    %324 = arith.mulf %264, %60 : vector<40x32xf32>
    %325 = arith.truncf %324 : vector<40x32xf32> to vector<40x32xbf16>
    %cst_105 = arith.constant dense<0.000000e+00> : vector<40x40xf32>
    %326 = tpu.matmul %323, %265, %cst_105 {dimension_numbers = #tpu.dot_dimension_numbers<[1], [1], [0], [0], [0, 0, 1, 0], [], []>} : vector<40x32xbf16>, vector<40x32xbf16>, vector<40x40xf32> -> vector<40x40xf32>
    %327 = arith.addf %326, %31 : vector<40x40xf32>
    %cst_106 = arith.constant dense<0xFF800000> : vector<40xf32>
    %328 = vector.multi_reduction <maximumf>, %327, %cst_106 [1] : vector<40x40xf32> to vector<40xf32>
    %329 = vector.shape_cast %328 : vector<40xf32> to vector<40x1xf32>
    %330 = vector.broadcast %329 : vector<40x1xf32> to vector<40x40xf32>
    %331 = arith.subf %327, %330 : vector<40x40xf32>
    %332 = math.exp %331 : vector<40x40xf32>
    %cst_107 = arith.constant dense<0.000000e+00> : vector<40xf32>
    %333 = vector.multi_reduction <add>, %332, %cst_107 [1] : vector<40x40xf32> to vector<40xf32>
    %334 = vector.shape_cast %333 : vector<40xf32> to vector<40x1xf32>
    %335 = tpu.reciprocal %334 {approx = true} : vector<40x1xf32> -> vector<40x1xf32>
    %336 = vector.broadcast %335 : vector<40x1xf32> to vector<40x40xf32>
    %337 = arith.mulf %332, %336 : vector<40x40xf32>
    %338 = arith.truncf %337 : vector<40x40xf32> to vector<40x40xbf16>
    %cst_108 = arith.constant dense<0.000000e+00> : vector<40x32xf32>
    %339 = tpu.matmul %338, %325, %cst_108 {dimension_numbers = #tpu.dot_dimension_numbers<[1], [0], [0], [1], [0, 0, 1, 1], [], []>} : vector<40x40xbf16>, vector<40x32xbf16>, vector<40x32xf32> -> vector<40x32xf32>
    %340 = arith.addf %321, %339 : vector<40x32xf32>
    %341 = arith.truncf %340 : vector<40x32xf32> to vector<40x32xbf16>
    %c1_109 = arith.constant 1 : index
    %c0_110 = arith.constant 0 : index
    %c0_111 = arith.constant 0 : index
    %342 = vector.load %arg8[%c1_109, %c0_110, %c0_111] : memref<2x32x32xbf16, #tpu.memory_space<vmem>>, vector<1x32x32xbf16>
    %343 = vector.shape_cast %342 : vector<1x32x32xbf16> to vector<32x32xbf16>
    %cst_112 = arith.constant dense<0.000000e+00> : vector<40x32xf32>
    %344 = tpu.matmul %341, %343, %cst_112 {dimension_numbers = #tpu.dot_dimension_numbers<[1], [0], [0], [1], [0, 0, 1, 1], [], []>} : vector<40x32xbf16>, vector<32x32xbf16>, vector<40x32xf32> -> vector<40x32xf32>
    %345 = vector.broadcast %228 : vector<1x32xf32> to vector<40x32xf32>
    %346 = arith.addf %344, %345 : vector<40x32xf32>
    %347 = arith.addf %225, %346 : vector<40x32xf32>
    %cst_113 = arith.constant dense<0.000000e+00> : vector<40xf32>
    %348 = vector.multi_reduction <add>, %347, %cst_113 [1] : vector<40x32xf32> to vector<40xf32>
    %349 = vector.shape_cast %348 : vector<40xf32> to vector<40x1xf32>
    %cst_114 = arith.constant 3.200000e+01 : f32
    %350 = vector.broadcast %cst_114 : f32 to vector<40x1xf32>
    %351 = arith.divf %349, %350 : vector<40x1xf32>
    %352 = vector.broadcast %351 : vector<40x1xf32> to vector<40x32xf32>
    %353 = arith.subf %347, %352 : vector<40x32xf32>
    %354 = arith.mulf %353, %353 : vector<40x32xf32>
    %cst_115 = arith.constant dense<0.000000e+00> : vector<40xf32>
    %355 = vector.multi_reduction <add>, %354, %cst_115 [1] : vector<40x32xf32> to vector<40xf32>
    %356 = vector.shape_cast %355 : vector<40xf32> to vector<40x1xf32>
    %cst_116 = arith.constant 3.200000e+01 : f32
    %357 = vector.broadcast %cst_116 : f32 to vector<40x1xf32>
    %358 = arith.divf %356, %357 : vector<40x1xf32>
    %359 = vector.broadcast %351 : vector<40x1xf32> to vector<40x32xf32>
    %360 = arith.subf %347, %359 : vector<40x32xf32>
    %cst_117 = arith.constant 9.99999974E-6 : f32
    %361 = vector.broadcast %cst_117 : f32 to vector<40x1xf32>
    %362 = arith.addf %358, %361 : vector<40x1xf32>
    %363 = math.rsqrt %362 : vector<40x1xf32>
    %364 = vector.broadcast %363 : vector<40x1xf32> to vector<40x32xf32>
    %365 = arith.mulf %360, %364 : vector<40x32xf32>
    %366 = vector.broadcast %229 : vector<1x32xf32> to vector<40x32xf32>
    %367 = arith.mulf %365, %366 : vector<40x32xf32>
    %368 = vector.broadcast %230 : vector<1x32xf32> to vector<40x32xf32>
    %369 = arith.addf %367, %368 : vector<40x32xf32>
    %370 = arith.truncf %369 : vector<40x32xf32> to vector<40x32xbf16>
    %c1_118 = arith.constant 1 : index
    %c0_119 = arith.constant 0 : index
    %c0_120 = arith.constant 0 : index
    %371 = vector.load %arg9[%c1_118, %c0_119, %c0_120] : memref<2x32x128xbf16, #tpu.memory_space<vmem>>, vector<1x32x128xbf16>
    %372 = vector.shape_cast %371 : vector<1x32x128xbf16> to vector<32x128xbf16>
    %cst_121 = arith.constant dense<0.000000e+00> : vector<40x128xf32>
    %373 = tpu.matmul %370, %372, %cst_121 {dimension_numbers = #tpu.dot_dimension_numbers<[1], [0], [0], [1], [0, 0, 1, 1], [], []>} : vector<40x32xbf16>, vector<32x128xbf16>, vector<40x128xf32> -> vector<40x128xf32>
    %374 = vector.broadcast %233 : vector<1x128xf32> to vector<40x128xf32>
    %375 = arith.addf %373, %374 : vector<40x128xf32>
    %cst_122 = arith.constant 1.702000e+00 : f32
    %376 = vector.broadcast %cst_122 : f32 to vector<40x128xf32>
    %377 = arith.mulf %376, %375 : vector<40x128xf32>
    %378 = arith.negf %377 : vector<40x128xf32>
    %379 = math.exp %378 : vector<40x128xf32>
    %cst_123 = arith.constant 1.000000e+00 : f32
    %380 = vector.broadcast %cst_123 : f32 to vector<40x128xf32>
    %381 = arith.addf %380, %379 : vector<40x128xf32>
    %382 = arith.divf %380, %381 : vector<40x128xf32>
    %383 = arith.mulf %375, %382 : vector<40x128xf32>
    %384 = arith.truncf %383 : vector<40x128xf32> to vector<40x128xbf16>
    %c1_124 = arith.constant 1 : index
    %c0_125 = arith.constant 0 : index
    %c0_126 = arith.constant 0 : index
    %385 = vector.load %arg10[%c1_124, %c0_125, %c0_126] : memref<2x128x32xbf16, #tpu.memory_space<vmem>>, vector<1x128x32xbf16>
    %386 = vector.shape_cast %385 : vector<1x128x32xbf16> to vector<128x32xbf16>
    %cst_127 = arith.constant dense<0.000000e+00> : vector<40x32xf32>
    %387 = tpu.matmul %384, %386, %cst_127 {dimension_numbers = #tpu.dot_dimension_numbers<[1], [0], [0], [1], [0, 0, 1, 1], [], []>} : vector<40x128xbf16>, vector<128x32xbf16>, vector<40x32xf32> -> vector<40x32xf32>
    %388 = vector.broadcast %231 : vector<1x32xf32> to vector<40x32xf32>
    %389 = arith.addf %387, %388 : vector<40x32xf32>
    %390 = arith.addf %347, %389 : vector<40x32xf32>
    %391 = tpu.iota {dimensions = array<i32: 0>} : vector<8x40xi32>
    %392 = tpu.iota {dimensions = array<i32: 1>} : vector<8x40xi32>
    %c5_i32 = arith.constant 5 : i32
    %393 = vector.broadcast %c5_i32 : i32 to vector<8x40xi32>
    %394 = arith.muli %391, %393 : vector<8x40xi32>
    %395 = arith.cmpi eq, %392, %394 : vector<8x40xi32>
    %396 = arith.extui %395 : vector<8x40xi1> to vector<8x40xi32>
    %397 = arith.sitofp %396 : vector<8x40xi32> to vector<8x40xf32>
    %398 = arith.truncf %397 : vector<8x40xf32> to vector<8x40xbf16>
    %399 = arith.truncf %390 : vector<40x32xf32> to vector<40x32xbf16>
    %cst_128 = arith.constant dense<0.000000e+00> : vector<8x32xf32>
    %400 = tpu.matmul %398, %399, %cst_128 {dimension_numbers = #tpu.dot_dimension_numbers<[1], [0], [0], [1], [0, 0, 1, 1], [], []>} : vector<8x40xbf16>, vector<40x32xbf16>, vector<8x32xf32> -> vector<8x32xf32>
    %cst_129 = arith.constant dense<0.000000e+00> : vector<8xf32>
    %401 = vector.multi_reduction <add>, %400, %cst_129 [1] : vector<8x32xf32> to vector<8xf32>
    %402 = vector.shape_cast %401 : vector<8xf32> to vector<8x1xf32>
    %cst_130 = arith.constant 3.200000e+01 : f32
    %403 = vector.broadcast %cst_130 : f32 to vector<8x1xf32>
    %404 = arith.divf %402, %403 : vector<8x1xf32>
    %405 = vector.broadcast %404 : vector<8x1xf32> to vector<8x32xf32>
    %406 = arith.subf %400, %405 : vector<8x32xf32>
    %407 = arith.mulf %406, %406 : vector<8x32xf32>
    %cst_131 = arith.constant dense<0.000000e+00> : vector<8xf32>
    %408 = vector.multi_reduction <add>, %407, %cst_131 [1] : vector<8x32xf32> to vector<8xf32>
    %409 = vector.shape_cast %408 : vector<8xf32> to vector<8x1xf32>
    %cst_132 = arith.constant 3.200000e+01 : f32
    %410 = vector.broadcast %cst_132 : f32 to vector<8x1xf32>
    %411 = arith.divf %409, %410 : vector<8x1xf32>
    %412 = vector.broadcast %404 : vector<8x1xf32> to vector<8x32xf32>
    %413 = arith.subf %400, %412 : vector<8x32xf32>
    %cst_133 = arith.constant 9.99999974E-6 : f32
    %414 = vector.broadcast %cst_133 : f32 to vector<8x1xf32>
    %415 = arith.addf %411, %414 : vector<8x1xf32>
    %416 = math.rsqrt %415 : vector<8x1xf32>
    %417 = vector.broadcast %416 : vector<8x1xf32> to vector<8x32xf32>
    %418 = arith.mulf %413, %417 : vector<8x32xf32>
    %419 = vector.broadcast %2 : vector<1x32xf32> to vector<8x32xf32>
    %420 = arith.mulf %418, %419 : vector<8x32xf32>
    %421 = vector.broadcast %3 : vector<1x32xf32> to vector<8x32xf32>
    %422 = arith.addf %420, %421 : vector<8x32xf32>
    %423 = arith.truncf %422 : vector<8x32xf32> to vector<8x32xbf16>
    %c0_134 = arith.constant 0 : index
    %c0_135 = arith.constant 0 : index
    %424 = vector.load %arg11[%c0_134, %c0_135] : memref<32x32xbf16, #tpu.memory_space<vmem>>, vector<32x32xbf16>
    %cst_136 = arith.constant dense<0.000000e+00> : vector<8x32xf32>
    %425 = tpu.matmul %423, %424, %cst_136 {dimension_numbers = #tpu.dot_dimension_numbers<[1], [0], [0], [1], [0, 0, 1, 1], [], []>} : vector<8x32xbf16>, vector<32x32xbf16>, vector<8x32xf32> -> vector<8x32xf32>
    %c0_137 = arith.constant 0 : index
    %c0_138 = arith.constant 0 : index
    %426 = vector.load %arg12[%c0_137, %c0_138] : memref<32x128xf32, #tpu.memory_space<vmem>>, vector<32x128xf32>
    %cst_139 = arith.constant dense<0.000000e+00> : vector<8x128xf32>
    %427 = tpu.matmul %425, %426, %cst_139 {dimension_numbers = #tpu.dot_dimension_numbers<[1], [0], [0], [1], [0, 0, 1, 1], [], []>} : vector<8x32xf32>, vector<32x128xf32>, vector<8x128xf32> -> vector<8x128xf32>
    %c4_140 = arith.constant 4 : index
    %c0_141 = arith.constant 0 : index
    %428 = vector.load %arg6[%c4_140, %c0_141] : memref<5x128xf32, #tpu.memory_space<vmem>>, vector<1x128xf32>
    %429 = vector.broadcast %428 : vector<1x128xf32> to vector<8x128xf32>
    %430 = arith.addf %427, %429 : vector<8x128xf32>
    %c0_142 = arith.constant 0 : index
    %c0_143 = arith.constant 0 : index
    %431 = vector.load %arg13[%c0_142, %c0_143] : memref<8x128xf32, #tpu.memory_space<vmem>>, vector<8x128xf32>
    tpu.vector_store %arg13[%c0_142, %c0_143], %430 {strides = array<i32>} : memref<8x128xf32, #tpu.memory_space<vmem>>, vector<8x128xf32>,
    return
  }
  func.func @transform_0(%arg0: i32) -> (i32, i32) {
    %c0_i32 = arith.constant 0 : i32
    %c0_i32_0 = arith.constant 0 : i32
    return %arg0, %c0_i32 : i32, i32
  }
  func.func @transform_1(%arg0: i32) -> (i32, i32) {
    %c0_i32 = arith.constant 0 : i32
    %c0_i32_0 = arith.constant 0 : i32
    %c0_i32_1 = arith.constant 0 : i32
    return %c0_i32, %c0_i32_0 : i32, i32
  }
  func.func @transform_2(%arg0: i32) -> (i32, i32) {
    %c0_i32 = arith.constant 0 : i32
    %c0_i32_0 = arith.constant 0 : i32
    %c0_i32_1 = arith.constant 0 : i32
    return %c0_i32, %c0_i32_0 : i32, i32
  }
  func.func @transform_3(%arg0: i32) -> (i32, i32) {
    %c0_i32 = arith.constant 0 : i32
    %c0_i32_0 = arith.constant 0 : i32
    %c0_i32_1 = arith.constant 0 : i32
    return %c0_i32, %c0_i32_0 : i32, i32
  }
  func.func @transform_4(%arg0: i32) -> (i32, i32) {
    %c0_i32 = arith.constant 0 : i32
    %c0_i32_0 = arith.constant 0 : i32
    %c0_i32_1 = arith.constant 0 : i32
    return %c0_i32, %c0_i32_0 : i32, i32
  }
  func.func @transform_5(%arg0: i32) -> (i32, i32) {
    %c0_i32 = arith.constant 0 : i32
    %c0_i32_0 = arith.constant 0 : i32
    %c0_i32_1 = arith.constant 0 : i32
    return %c0_i32, %c0_i32_0 : i32, i32
  }
  func.func @transform_6(%arg0: i32) -> (i32, i32, i32) {
    %c0_i32 = arith.constant 0 : i32
    %c0_i32_0 = arith.constant 0 : i32
    %c0_i32_1 = arith.constant 0 : i32
    %c0_i32_2 = arith.constant 0 : i32
    return %c0_i32, %c0_i32_0, %c0_i32_1 : i32, i32, i32
  }
  func.func @transform_7(%arg0: i32) -> (i32, i32, i32) {
    %c0_i32 = arith.constant 0 : i32
    %c0_i32_0 = arith.constant 0 : i32
    %c0_i32_1 = arith.constant 0 : i32
    %c0_i32_2 = arith.constant 0 : i32
    return %c0_i32, %c0_i32_0, %c0_i32_1 : i32, i32, i32
  }
  func.func @transform_8(%arg0: i32) -> (i32, i32, i32) {
    %c0_i32 = arith.constant 0 : i32
    %c0_i32_0 = arith.constant 0 : i32
    %c0_i32_1 = arith.constant 0 : i32
    %c0_i32_2 = arith.constant 0 : i32
    return %c0_i32, %c0_i32_0, %c0_i32_1 : i32, i32, i32
  }
  func.func @transform_9(%arg0: i32) -> (i32, i32, i32) {
    %c0_i32 = arith.constant 0 : i32
    %c0_i32_0 = arith.constant 0 : i32
    %c0_i32_1 = arith.constant 0 : i32
    %c0_i32_2 = arith.constant 0 : i32
    return %c0_i32, %c0_i32_0, %c0_i32_1 : i32, i32, i32
  }
  func.func @transform_10(%arg0: i32) -> (i32, i32) {
    %c0_i32 = arith.constant 0 : i32
    %c0_i32_0 = arith.constant 0 : i32
    %c0_i32_1 = arith.constant 0 : i32
    return %c0_i32, %c0_i32_0 : i32, i32
  }
  func.func @transform_11(%arg0: i32) -> (i32, i32) {
    %c0_i32 = arith.constant 0 : i32
    %c0_i32_0 = arith.constant 0 : i32
    %c0_i32_1 = arith.constant 0 : i32
    return %c0_i32, %c0_i32_0 : i32, i32
  }
  func.func @transform_12(%arg0: i32) -> (i32, i32) {
    %c0_i32 = arith.constant 0 : i32
    %c0_i32_0 = arith.constant 0 : i32
    return %arg0, %c0_i32 : i32, i32
  }
}

</mosaic_0001>

<llo_original>
// kernel: tile.9
$region0: #{tile.9}
  %s0 = inlined_call_operand.vmem [shape: f32[8,5,32], index: 0, kind: input, shape index: {}]
  %s1 = inlined_call_operand.vmem [shape: f32[40,32], index: 1, kind: output, shape index: {}]
  %v2 = vld [vmem:[%s0] sm:$0x1f]
  %vm3 = vcmask 261120
  %4 = vst.msk [vmem:[%s1] sm:$0x1f] %vm3, %v2
  %s5 = scalar_lea.vmem %s0, 8
  %v6 = vld [vmem:[%s5] sm:$0x1f]
  %vm7 = vcmask 261120
  %s8 = scalar_lea.vmem %s1, 5
  %9 = vst.msk [vmem:[%s8] sm:$0x1f] %vm7, %v6
  %s10 = scalar_lea.vmem %s0, 16
  %v11 = vld [vmem:[%s10] sm:$0x1f]
  %vm12 = vcmask 261120
  %s13 = scalar_lea.vmem %s1, 10
  %14 = vst.msk [vmem:[%s13] sm:$0x1f] %vm12, %v11
  %s15 = scalar_lea.vmem %s0, 24
  %v16 = vld [vmem:[%s15] sm:$0x1f]
  %vm17 = vcmask 261120
  %s18 = scalar_lea.vmem %s1, 15
  %19 = vst.msk [vmem:[%s18] sm:$0x1f] %vm17, %v16
  %s20 = scalar_lea.vmem %s0, 32
  %v21 = vld [vmem:[%s20] sm:$0x1f]
  %vm22 = vcmask 261120
  %s23 = scalar_lea.vmem %s1, 20
  %24 = vst.msk [vmem:[%s23] sm:$0x1f] %vm22, %v21
  %s25 = scalar_lea.vmem %s0, 40
  %v26 = vld [vmem:[%s25] sm:$0x1f]
  %vm27 = vcmask 261120
  %s28 = scalar_lea.vmem %s1, 25
  %29 = vst.msk [vmem:[%s28] sm:$0x1f] %vm27, %v26
  %s30 = scalar_lea.vmem %s0, 48
  %v31 = vld [vmem:[%s30] sm:$0x1f]
  %vm32 = vcmask 261120
  %s33 = scalar_lea.vmem %s1, 30
  %34 = vst.msk [vmem:[%s33] sm:$0x1f] %vm32, %v31
  %s35 = scalar_lea.vmem %s0, 56
  %v36 = vld [vmem:[%s35] sm:$0x1f]
  %vm37 = vcmask 261120
  %s38 = scalar_lea.vmem %s1, 35
  %39 = vst.msk [vmem:[%s38] sm:$0x1f] %vm37, %v36

// kernel: clip_finetune_forward.1
$region0: #{clip_finetune_forward.1}
  #allocation0 [shape = 'u32[]', space=smem, size = 0x4, offset = 0x4, fixed_abs, tag = 'smem constant byte address 0x4 - core index']
  #allocation1 [shape = 'u32[72,128]{1,0:T(1,128)}', space=vmem, size = 0x9000, scoped, tag = 'internal scratch']
  %s0 = inlined_call_operand.vmem [shape: bf16[40,192], index: 0, kind: input, shape index: {}]
  %s1 = inlined_call_operand.vmem [shape: f32[40,32], index: 1, kind: input, shape index: {}]
  %s2 = inlined_call_operand.vmem [shape: f32[40,40], index: 2, kind: input, shape index: {}]
  %s3 = inlined_call_operand.vmem [shape: bf16[192,32], index: 3, kind: input, shape index: {}]
  %s4 = inlined_call_operand.vmem [shape: f32[16,32], index: 4, kind: input, shape index: {}]
  %s5 = inlined_call_operand.vmem [shape: f32[5,128], index: 5, kind: input, shape index: {}]
  %s6 = inlined_call_operand.vmem [shape: bf16[2,32,96], index: 6, kind: input, shape index: {}]
  %s7 = inlined_call_operand.vmem [shape: bf16[2,32,32], index: 7, kind: input, shape index: {}]
  %s8 = inlined_call_operand.vmem [shape: bf16[2,32,128], index: 8, kind: input, shape index: {}]
  %s9 = inlined_call_operand.vmem [shape: bf16[2,128,32], index: 9, kind: input, shape index: {}]
  %s10 = inlined_call_operand.vmem [shape: bf16[32,32], index: 10, kind: input, shape index: {}]
  %s11 = inlined_call_operand.vmem [shape: f32[32,128], index: 11, kind: input, shape index: {}]
  %s12 = inlined_call_operand.vmem [shape: f32[8,128], index: 12, kind: output, shape index: {}]
  %s13 = sld [smem:[#allocation0]]
  $region58: #{clip_finetune_forward.1} parent=0
    _
  %s15 = ssub.s32 1, %s13
  %s16 = scalar_select 0, %s15, %s13
  // Predicated region
  $region2: #{clip_finetune_forward.1} parent=0 // pred_check
    _
  $region3: #{clip_finetune_forward.1} parent=0 // pred_check_branch
    %18 = sbr.rel (0) target = $region5
  $region4: #{clip_finetune_forward.1} parent=0 // pred_region
    _
  $region5: #{clip_finetune_forward.1} parent=0 // pred_fallthru
    _
  // Predicated region
  $region6: #{clip_finetune_forward.1} parent=0 // pred_check
    _
  $region7: #{clip_finetune_forward.1} parent=0 // pred_check_branch
    %20 = sbr.rel (0) target = $region9
  $region8: #{clip_finetune_forward.1} parent=0 // pred_region
    _
  $region9: #{clip_finetune_forward.1} parent=0 // pred_fallthru
    _
  // Predicated region
  $region10: #{clip_finetune_forward.1} parent=0 // pred_check
    _
  $region11: #{clip_finetune_forward.1} parent=0 // pred_check_branch
    %22 = sbr.rel (0) target = $region13
  $region12: #{clip_finetune_forward.1} parent=0 // pred_region
    _
  $region13: #{clip_finetune_forward.1} parent=0 // pred_fallthru
    _
  // Predicated region
  $region14: #{clip_finetune_forward.1} parent=0 // pred_check
    _
  $region15: #{clip_finetune_forward.1} parent=0 // pred_check_branch
    %24 = sbr.rel (0) target = $region17
  $region16: #{clip_finetune_forward.1} parent=0 // pred_region
    _
  $region17: #{clip_finetune_forward.1} parent=0 // pred_fallthru
    _
  // Predicated region
  $region18: #{clip_finetune_forward.1} parent=0 // pred_check
    _
  $region19: #{clip_finetune_forward.1} parent=0 // pred_check_branch
    %26 = sbr.rel (0) target = $region21
  $region20: #{clip_finetune_forward.1} parent=0 // pred_region
    _
  $region21: #{clip_finetune_forward.1} parent=0 // pred_fallthru
    _
  // Predicated region
  $region22: #{clip_finetune_forward.1} parent=0 // pred_check
    _
  $region23: #{clip_finetune_forward.1} parent=0 // pred_check_branch
    %28 = sbr.rel (0) target = $region25
  $region24: #{clip_finetune_forward.1} parent=0 // pred_region
    _
  $region25: #{clip_finetune_forward.1} parent=0 // pred_fallthru
    _
  // Predicated region
  $region26: #{clip_finetune_forward.1} parent=0 // pred_check
    _
  $region27: #{clip_finetune_forward.1} parent=0 // pred_check_branch
    %30 = sbr.rel (0) target = $region29
  $region28: #{clip_finetune_forward.1} parent=0 // pred_region
    _
  $region29: #{clip_finetune_forward.1} parent=0 // pred_fallthru
    _
  // Predicated region
  $region30: #{clip_finetune_forward.1} parent=0 // pred_check
    _
  $region31: #{clip_finetune_forward.1} parent=0 // pred_check_branch
    %32 = sbr.rel (0) target = $region33
  $region32: #{clip_finetune_forward.1} parent=0 // pred_region
    _
  $region33: #{clip_finetune_forward.1} parent=0 // pred_fallthru
    _
  // Predicated region
  $region34: #{clip_finetune_forward.1} parent=0 // pred_check
    _
  $region35: #{clip_finetune_forward.1} parent=0 // pred_check_branch
    %34 = sbr.rel (0) target = $region37
  $region36: #{clip_finetune_forward.1} parent=0 // pred_region
    _
  $region37: #{clip_finetune_forward.1} parent=0 // pred_fallthru
    _
  // Predicated region
  $region38: #{clip_finetune_forward.1} parent=0 // pred_check
    _
  $region39: #{clip_finetune_forward.1} parent=0 // pred_check_branch
    %36 = sbr.rel (0) target = $region41
  $region40: #{clip_finetune_forward.1} parent=0 // pred_region
    _
  $region41: #{clip_finetune_forward.1} parent=0 // pred_fallthru
    _
  // Predicated region
  $region42: #{clip_finetune_forward.1} parent=0 // pred_check
    _
  $region43: #{clip_finetune_forward.1} parent=0 // pred_check_branch
    %38 = sbr.rel (0) target = $region45
  $region44: #{clip_finetune_forward.1} parent=0 // pred_region
    _
  $region45: #{clip_finetune_forward.1} parent=0 // pred_fallthru
    _
  // Predicated region
  $region46: #{clip_finetune_forward.1} parent=0 // pred_check
    _
  $region47: #{clip_finetune_forward.1} parent=0 // pred_check_branch
    %40 = sbr.rel (0) target = $region49
  $region48: #{clip_finetune_forward.1} parent=0 // pred_region
    _
  $region49: #{clip_finetune_forward.1} parent=0 // pred_fallthru
    _
  %v42 = vld [vmem:[%s4] sm:$0x1]
  %v43 = vld [vmem:[%s4 + $0x1] sm:$0x1]
  %v44 = vld [vmem:[%s4 + $0x2] sm:$0x1]
  %v45 = vld [vmem:[%s4 + $0x3] sm:$0x1]
  %v46 = vld [vmem:[%s0] sm:$0xff]
  %v47 = vld [vmem:[%s0 + $0x8] sm:$0xff]
  %v48 = vld [vmem:[%s0 + $0x10] sm:$0xff]
  %v49 = vld [vmem:[%s0 + $0x18] sm:$0xff]
  %v50 = vld [vmem:[%s0 + $0x20] sm:$0xff]
  %v51 = vld [vmem:[%s3] sm:$0xf]
  %v52 = vld [vmem:[%s3 + $0x4] sm:$0xf]
  %v53 = vld [vmem:[%s3 + $0x8] sm:$0xf]
  %v54 = vld [vmem:[%s3 + $0xc] sm:$0xf]
  %v55 = vld [vmem:[%s3 + $0x10] sm:$0xf]
  %v56 = vld [vmem:[%s3 + $0x14] sm:$0xf]
  %v57 = vld [vmem:[%s3 + $0x18] sm:$0xf]
  %v58 = vld [vmem:[%s3 + $0x1c] sm:$0xf]
  %v59 = vld [vmem:[%s3 + $0x20] sm:$0xf]
  %v60 = vld [vmem:[%s3 + $0x24] sm:$0xf]
  %v61 = vld [vmem:[%s3 + $0x28] sm:$0xf]
  %v62 = vld [vmem:[%s3 + $0x2c] sm:$0xf]
  %v63 = vld [vmem:[%s3 + $0x30] sm:$0xf]
  %v64 = vld [vmem:[%s3 + $0x34] sm:$0xf]
  %v65 = vld [vmem:[%s3 + $0x38] sm:$0xf]
  %v66 = vld [vmem:[%s3 + $0x3c] sm:$0xf]
  %v67 = vld [vmem:[%s3 + $0x40] sm:$0xf]
  %v68 = vld [vmem:[%s3 + $0x44] sm:$0xf]
  %v69 = vld [vmem:[%s3 + $0x48] sm:$0xf]
  %v70 = vld [vmem:[%s3 + $0x4c] sm:$0xf]
  %v71 = vld [vmem:[%s3 + $0x50] sm:$0xf]
  %v72 = vld [vmem:[%s3 + $0x54] sm:$0xf]
  %v73 = vld [vmem:[%s3 + $0x58] sm:$0xf]
  %v74 = vld [vmem:[%s3 + $0x5c] sm:$0xf]
  %v75 = vld [vmem:[%s1] sm:$0xff]
  %v76 = vld [vmem:[%s1 + $0x8] sm:$0xff]
  %v77 = vld [vmem:[%s1 + $0x10] sm:$0xff]
  %v78 = vld [vmem:[%s1 + $0x18] sm:$0xff]
  %v79 = vld [vmem:[%s1 + $0x20] sm:$0xff]
  %v85 = vunpack.c.l.b16 %v46
  %v86 = vunpack.c.h.b16 %v46
  %v87 = vunpack.c.l.b16 %v47
  %v88 = vunpack.c.h.b16 %v47
  %v89 = vunpack.c.l.b16 %v48
  %v90 = vunpack.c.h.b16 %v48
  %v91 = vunpack.c.l.b16 %v49
  %v92 = vunpack.c.h.b16 %v49
  %v93 = vunpack.c.l.b16 %v50
  %v94 = vunpack.c.h.b16 %v50
  %v95 = vpack.c.b16 %v87, %v85
  %v96 = vpack.c.b16 %v88, %v86
  %v97 = vpack.c.b16 %v91, %v89
  %v98 = vpack.c.b16 %v92, %v90
  %v99 = vpack.c.b16 %v93, %v93
  %v100 = vpack.c.b16 %v94, %v94
  %v128 = vunpack.c.l.b16 %v51
  %v129 = vunpack.c.l.b16 %v52
  %v130 = vunpack.c.l.b16 %v53
  %v131 = vunpack.c.l.b16 %v54
  %v132 = vunpack.c.l.b16 %v55
  %v133 = vunpack.c.l.b16 %v56
  %v134 = vunpack.c.l.b16 %v57
  %v135 = vunpack.c.l.b16 %v58
  %v136 = vunpack.c.l.b16 %v59
  %v137 = vunpack.c.l.b16 %v60
  %v138 = vunpack.c.l.b16 %v61
  %v139 = vunpack.c.l.b16 %v62
  %v140 = vunpack.c.l.b16 %v63
  %v141 = vunpack.c.l.b16 %v64
  %v142 = vunpack.c.l.b16 %v65
  %v143 = vunpack.c.l.b16 %v66
  %v144 = vunpack.c.l.b16 %v67
  %v145 = vunpack.c.l.b16 %v68
  %v146 = vunpack.c.l.b16 %v69
  %v147 = vunpack.c.l.b16 %v70
  %v148 = vunpack.c.l.b16 %v71
  %v149 = vunpack.c.l.b16 %v72
  %v150 = vunpack.c.l.b16 %v73
  %v151 = vunpack.c.l.b16 %v74
  %v152 = vpack.c.b16 %v129, %v128
  %v153 = vpack.c.b16 %v131, %v130
  %v154 = vpack.c.b16 %v133, %v132
  %v155 = vpack.c.b16 %v135, %v134
  %v156 = vpack.c.b16 %v137, %v136
  %v157 = vpack.c.b16 %v139, %v138
  %v158 = vpack.c.b16 %v141, %v140
  %v159 = vpack.c.b16 %v143, %v142
  %v160 = vpack.c.b16 %v145, %v144
  %v161 = vpack.c.b16 %v147, %v146
  %v162 = vpack.c.b16 %v149, %v148
  %v163 = vpack.c.b16 %v151, %v150
  %vm176 = vcmask 523264
  %v178 = vsel %vm176, %v96, 0
  %v181 = vsel %vm176, %v98, 0
  %v184 = vsel %vm176, %v100, 0
  %186 = vmatpush.bf16.msra.mxu0 %v159
  %187 = vmatpush.bf16.msra.mxu0 %v158
  %188 = vmatpush.bf16.msra.mxu0 %v157
  %189 = vmatpush.bf16.msra.mxu0 %v156
  %190 = vmatpush.bf16.msra.mxu0 %v155
  %191 = vmatpush.bf16.msra.mxu0 %v154
  %192 = vmatpush.bf16.msra.mxu0 %v153
  %193 = vmatpush.bf16.msra.mxu0 %v152
  %194 = vmatmul.bf16.gmra.mxu0 %v95
  %v195 = vpop.f32.mrf.mxu0
  %v196 = vadd.f32 %v75, %v195
  %v197 = vpop.f32.mrf.mxu0
  %v198 = vadd.f32 %v76, %v197
  %199 = vmatmul.bf16.gmra.mxu0 %v97
  %v200 = vpop.f32.mrf.mxu0
  %v201 = vadd.f32 %v77, %v200
  %v202 = vpop.f32.mrf.mxu0
  %v203 = vadd.f32 %v78, %v202
  %204 = vmatmul.bf16.gmra.mxu0 %v99
  %v205 = vpop.f32.mrf.mxu0
  %v206 = vadd.f32 %v79, %v205
  %v207 = vpop.f32.mrf.mxu0
  %208 = vdwg.mxu0
  %209 = vmatpush.bf16.msra.mxu0 0
  %210 = vmatpush.bf16.msra.mxu0 0
  %211 = vmatpush.bf16.msra.mxu0 0
  %212 = vmatpush.bf16.msra.mxu0 0
  %213 = vmatpush.bf16.msra.mxu0 %v163
  %214 = vmatpush.bf16.msra.mxu0 %v162
  %215 = vmatpush.bf16.msra.mxu0 %v161
  %216 = vmatpush.bf16.msra.mxu0 %v160
  %217 = vmatmul.bf16.gmra.mxu0 %v178
  %v218 = vpop.f32.mrf.mxu0
  %v219 = vadd.f32 %v196, %v218
  %v220 = vpop.f32.mrf.mxu0
  %v221 = vadd.f32 %v198, %v220
  %222 = vmatmul.bf16.gmra.mxu0 %v181
  %v223 = vpop.f32.mrf.mxu0
  %v224 = vadd.f32 %v201, %v223
  %v225 = vpop.f32.mrf.mxu0
  %v226 = vadd.f32 %v203, %v225
  %227 = vmatmul.bf16.gmra.mxu0 %v184
  %v228 = vpop.f32.mrf.mxu0
  %v229 = vadd.f32 %v206, %v228
  %v230 = vpop.f32.mrf.mxu0
  %231 = vdwg.mxu0
  %vm232 = vcmask 261120
  %v233 = vsel %vm232, %v219, 0.0
  %234 = vadd.xlane.f32.xlu0 %v233
  %v235 = vpop.xlane.xlu0 %234
  %v236 = vsel %vm232, %v221, 0.0
  %237 = vadd.xlane.f32.xlu0 %v236
  %v238 = vpop.xlane.xlu0 %237
  %v239 = vsel %vm232, %v224, 0.0
  %240 = vadd.xlane.f32.xlu0 %v239
  %v241 = vpop.xlane.xlu0 %240
  %v242 = vsel %vm232, %v226, 0.0
  %243 = vadd.xlane.f32.xlu0 %v242
  %v244 = vpop.xlane.xlu0 %243
  %v245 = vsel %vm232, %v229, 0.0
  %246 = vadd.xlane.f32.xlu0 %v245
  %v247 = vpop.xlane.xlu0 %246
  %v248 = vrcp.pop 32.0
  %v249 = vmul.f32 32.0, %v248
  %v250 = vsub.f32 1.0, %v249
  %v251 = vmul.f32 %v248, %v250
  %v252 = vadd.f32 %v248, %v251
  %vm253 = vweird.f32 %v248
  %v254 = vsel %vm253, %v248, %v252
  %v255 = vmul.f32 %v235, %v254
  %v256 = vmul.f32 %v238, %v254
  %v257 = vmul.f32 %v241, %v254
  %v258 = vmul.f32 %v244, %v254
  %v259 = vmul.f32 %v247, %v254
  %v260 = vsub.f32 %v219, %v255
  %v261 = vsub.f32 %v221, %v256
  %v262 = vsub.f32 %v224, %v257
  %v263 = vsub.f32 %v226, %v258
  %v264 = vsub.f32 %v229, %v259
  %v265 = vmul.f32 %v260, %v260
  %v266 = vmul.f32 %v261, %v261
  %v267 = vmul.f32 %v262, %v262
  %v268 = vmul.f32 %v263, %v263
  %v269 = vmul.f32 %v264, %v264
  %v270 = vsel %vm232, %v265, 0.0
  %271 = vadd.xlane.f32.xlu0 %v270
  %v272 = vpop.xlane.xlu0 %271
  %v273 = vsel %vm232, %v266, 0.0
  %274 = vadd.xlane.f32.xlu0 %v273
  %v275 = vpop.xlane.xlu0 %274
  %v276 = vsel %vm232, %v267, 0.0
  %277 = vadd.xlane.f32.xlu0 %v276
  %v278 = vpop.xlane.xlu0 %277
  %v279 = vsel %vm232, %v268, 0.0
  %280 = vadd.xlane.f32.xlu0 %v279
  %v281 = vpop.xlane.xlu0 %280
  %v282 = vsel %vm232, %v269, 0.0
  %283 = vadd.xlane.f32.xlu0 %v282
  %v284 = vpop.xlane.xlu0 %283
  %v285 = vmul.f32 %v272, %v254
  %v286 = vmul.f32 %v275, %v254
  %v287 = vmul.f32 %v278, %v254
  %v288 = vmul.f32 %v281, %v254
  %v289 = vmul.f32 %v284, %v254
  %v290 = vadd.f32 %v285, 1e-05
  %v291 = vadd.f32 %v286, 1e-05
  %v292 = vadd.f32 %v287, 1e-05
  %v293 = vadd.f32 %v288, 1e-05
  %v294 = vadd.f32 %v289, 1e-05
  %v295 = vrsqrt.pop %v290
  %v296 = vmul.f32 %v295, %v290
  %v297 = vmul.f32 %v296, %v295
  %v298 = vmul.f32 0.5, %v297
  %v299 = vsub.f32 1.5, %v298
  %v300 = vmul.f32 %v295, %v299
  %vm301 = vweird.f32 %v290
  %vm302 = vweird.f32 %v295
  %vm303 = vmor %vm301, %vm302
  %v304 = vsel %vm303, %v295, %v300
  %v305 = vrsqrt.pop %v291
  %v306 = vmul.f32 %v305, %v291
  %v307 = vmul.f32 %v306, %v305
  %v308 = vmul.f32 0.5, %v307
  %v309 = vsub.f32 1.5, %v308
  %v310 = vmul.f32 %v305, %v309
  %vm311 = vweird.f32 %v291
  %vm312 = vweird.f32 %v305
  %vm313 = vmor %vm311, %vm312
  %v314 = vsel %vm313, %v305, %v310
  %v315 = vrsqrt.pop %v292
  %v316 = vmul.f32 %v315, %v292
  %v317 = vmul.f32 %v316, %v315
  %v318 = vmul.f32 0.5, %v317
  %v319 = vsub.f32 1.5, %v318
  %v320 = vmul.f32 %v315, %v319
  %vm321 = vweird.f32 %v292
  %vm322 = vweird.f32 %v315
  %vm323 = vmor %vm321, %vm322
  %v324 = vsel %vm323, %v315, %v320
  %v325 = vrsqrt.pop %v293
  %v326 = vmul.f32 %v325, %v293
  %v327 = vmul.f32 %v326, %v325
  %v328 = vmul.f32 0.5, %v327
  %v329 = vsub.f32 1.5, %v328
  %v330 = vmul.f32 %v325, %v329
  %vm331 = vweird.f32 %v293
  %vm332 = vweird.f32 %v325
  %vm333 = vmor %vm331, %vm332
  %v334 = vsel %vm333, %v325, %v330
  %v335 = vrsqrt.pop %v294
  %v336 = vmul.f32 %v335, %v294
  %v337 = vmul.f32 %v336, %v335
  %v338 = vmul.f32 0.5, %v337
  %v339 = vsub.f32 1.5, %v338
  %v340 = vmul.f32 %v335, %v339
  %vm341 = vweird.f32 %v294
  %vm342 = vweird.f32 %v335
  %vm343 = vmor %vm341, %vm342
  %v344 = vsel %vm343, %v335, %v340
  %v345 = vmul.f32 %v260, %v304
  %v346 = vmul.f32 %v261, %v314
  %v347 = vmul.f32 %v262, %v324
  %v348 = vmul.f32 %v263, %v334
  %v349 = vmul.f32 %v264, %v344
  %v350 = vperm.slane %v42, 0
  %v351 = vmul.f32 %v345, %v350
  %v352 = vmul.f32 %v346, %v350
  %v353 = vmul.f32 %v347, %v350
  %v354 = vmul.f32 %v348, %v350
  %v355 = vmul.f32 %v349, %v350
  %v356 = vperm.slane %v43, 0
  %v357 = vadd.f32 %v351, %v356
  %v358 = vadd.f32 %v352, %v356
  %v359 = vadd.f32 %v353, %v356
  %v360 = vadd.f32 %v354, %v356
  %v361 = vadd.f32 %v355, %v356
  %v362 = vld [vmem:[%s2] sm:$0xff]
  %v363 = vld [vmem:[%s2 + $0x8] sm:$0xff]
  %v364 = vld [vmem:[%s2 + $0x10] sm:$0xff]
  %v365 = vld [vmem:[%s2 + $0x18] sm:$0xff]
  %v366 = vld [vmem:[%s2 + $0x20] sm:$0xff]
  %v367 = vlaneseq
  %v368 = vand.u32 %v367, 127
  %vm369 = vcmp.ge.s32.totalorder %v368, 0
  %vm370 = vcmp.lt.s32.totalorder %v368, 8
  %vm371 = vmand %vm369, %vm370
  %v372 = vsel %vm371, 1, 0
  %v373 = vcvt.s32.f32 %v372
  %vm374 = vcmp.ge.s32.totalorder %v368, 8
  %vm375 = vcmp.lt.s32.totalorder %v368, 16
  %vm376 = vmand %vm374, %vm375
  %v377 = vsel %vm376, 1, 0
  %v378 = vcvt.s32.f32 %v377
  %vm379 = vcmp.ge.s32.totalorder %v368, 16
  %vm380 = vcmp.lt.s32.totalorder %v368, 24
  %vm381 = vmand %vm379, %vm380
  %v382 = vsel %vm381, 1, 0
  %v383 = vcvt.s32.f32 %v382
  %vm384 = vcmp.ge.s32.totalorder %v368, 24
  %vm385 = vcmp.lt.s32.totalorder %v368, 32
  %vm386 = vmand %vm384, %vm385
  %v387 = vsel %vm386, 1, 0
  %v388 = vcvt.s32.f32 %v387
  %v389 = vld [vmem:[%s4 + $0x4] sm:$0x1]
  %v390 = vld [vmem:[%s4 + $0x5] sm:$0x1]
  %v391 = vld [vmem:[%s4 + $0x6] sm:$0x1]
  %v392 = vld [vmem:[%s4 + $0x7] sm:$0x1]
  %v393 = vld [vmem:[%s4 + $0x8] sm:$0x1]
  %v394 = vld [vmem:[%s4 + $0x9] sm:$0x1]
  %v395 = vld [vmem:[%s5] sm:$0x1]
  %v396 = vld [vmem:[%s5 + $0x1] sm:$0x1]
  %v397 = vsel %vm232, %v357, 0.0
  %398 = vadd.xlane.f32.xlu0 %v397
  %v399 = vpop.xlane.xlu0 %398
  %v400 = vsel %vm232, %v358, 0.0
  %401 = vadd.xlane.f32.xlu0 %v400
  %v402 = vpop.xlane.xlu0 %401
  %v403 = vsel %vm232, %v359, 0.0
  %404 = vadd.xlane.f32.xlu0 %v403
  %v405 = vpop.xlane.xlu0 %404
  %v406 = vsel %vm232, %v360, 0.0
  %407 = vadd.xlane.f32.xlu0 %v406
  %v408 = vpop.xlane.xlu0 %407
  %v409 = vsel %vm232, %v361, 0.0
  %410 = vadd.xlane.f32.xlu0 %v409
  %v411 = vpop.xlane.xlu0 %410
  %v412 = vmul.f32 %v399, %v254
  %v413 = vmul.f32 %v402, %v254
  %v414 = vmul.f32 %v405, %v254
  %v415 = vmul.f32 %v408, %v254
  %v416 = vmul.f32 %v411, %v254
  %v417 = vsub.f32 %v357, %v412
  %v418 = vsub.f32 %v358, %v413
  %v419 = vsub.f32 %v359, %v414
  %v420 = vsub.f32 %v360, %v415
  %v421 = vsub.f32 %v361, %v416
  %v422 = vmul.f32 %v417, %v417
  %v423 = vmul.f32 %v418, %v418
  %v424 = vmul.f32 %v419, %v419
  %v425 = vmul.f32 %v420, %v420
  %v426 = vmul.f32 %v421, %v421
  %v427 = vsel %vm232, %v422, 0.0
  %428 = vadd.xlane.f32.xlu0 %v427
  %v429 = vpop.xlane.xlu0 %428
  %v430 = vsel %vm232, %v423, 0.0
  %431 = vadd.xlane.f32.xlu0 %v430
  %v432 = vpop.xlane.xlu0 %431
  %v433 = vsel %vm232, %v424, 0.0
  %434 = vadd.xlane.f32.xlu0 %v433
  %v435 = vpop.xlane.xlu0 %434
  %v436 = vsel %vm232, %v425, 0.0
  %437 = vadd.xlane.f32.xlu0 %v436
  %v438 = vpop.xlane.xlu0 %437
  %v439 = vsel %vm232, %v426, 0.0
  %440 = vadd.xlane.f32.xlu0 %v439
  %v441 = vpop.xlane.xlu0 %440
  %v442 = vmul.f32 %v429, %v254
  %v443 = vmul.f32 %v432, %v254
  %v444 = vmul.f32 %v435, %v254
  %v445 = vmul.f32 %v438, %v254
  %v446 = vmul.f32 %v441, %v254
  %v447 = vadd.f32 %v442, 1e-05
  %v448 = vadd.f32 %v443, 1e-05
  %v449 = vadd.f32 %v444, 1e-05
  %v450 = vadd.f32 %v445, 1e-05
  %v451 = vadd.f32 %v446, 1e-05
  %v452 = vrsqrt.pop %v447
  %v453 = vmul.f32 %v452, %v447
  %v454 = vmul.f32 %v453, %v452
  %v455 = vmul.f32 0.5, %v454
  %v456 = vsub.f32 1.5, %v455
  %v457 = vmul.f32 %v452, %v456
  %vm458 = vweird.f32 %v447
  %vm459 = vweird.f32 %v452
  %vm460 = vmor %vm458, %vm459
  %v461 = vsel %vm460, %v452, %v457
  %v462 = vrsqrt.pop %v448
  %v463 = vmul.f32 %v462, %v448
  %v464 = vmul.f32 %v463, %v462
  %v465 = vmul.f32 0.5, %v464
  %v466 = vsub.f32 1.5, %v465
  %v467 = vmul.f32 %v462, %v466
  %vm468 = vweird.f32 %v448
  %vm469 = vweird.f32 %v462
  %vm470 = vmor %vm468, %vm469
  %v471 = vsel %vm470, %v462, %v467
  %v472 = vrsqrt.pop %v449
  %v473 = vmul.f32 %v472, %v449
  %v474 = vmul.f32 %v473, %v472
  %v475 = vmul.f32 0.5, %v474
  %v476 = vsub.f32 1.5, %v475
  %v477 = vmul.f32 %v472, %v476
  %vm478 = vweird.f32 %v449
  %vm479 = vweird.f32 %v472
  %vm480 = vmor %vm478, %vm479
  %v481 = vsel %vm480, %v472, %v477
  %v482 = vrsqrt.pop %v450
  %v483 = vmul.f32 %v482, %v450
  %v484 = vmul.f32 %v483, %v482
  %v485 = vmul.f32 0.5, %v484
  %v486 = vsub.f32 1.5, %v485
  %v487 = vmul.f32 %v482, %v486
  %vm488 = vweird.f32 %v450
  %vm489 = vweird.f32 %v482
  %vm490 = vmor %vm488, %vm489
  %v491 = vsel %vm490, %v482, %v487
  %v492 = vrsqrt.pop %v451
  %v493 = vmul.f32 %v492, %v451
  %v494 = vmul.f32 %v493, %v492
  %v495 = vmul.f32 0.5, %v494
  %v496 = vsub.f32 1.5, %v495
  %v497 = vmul.f32 %v492, %v496
  %vm498 = vweird.f32 %v451
  %vm499 = vweird.f32 %v492
  %vm500 = vmor %vm498, %vm499
  %v501 = vsel %vm500, %v492, %v497
  %v502 = vmul.f32 %v417, %v461
  %v503 = vmul.f32 %v418, %v471
  %v504 = vmul.f32 %v419, %v481
  %v505 = vmul.f32 %v420, %v491
  %v506 = vmul.f32 %v421, %v501
  %v507 = vperm.slane %v389, 0
  %v508 = vmul.f32 %v502, %v507
  %v509 = vmul.f32 %v503, %v507
  %v510 = vmul.f32 %v504, %v507
  %v511 = vmul.f32 %v505, %v507
  %v512 = vmul.f32 %v506, %v507
  %v513 = vperm.slane %v390, 0
  %v514 = vadd.f32 %v508, %v513
  %v515 = vadd.f32 %v509, %v513
  %v516 = vadd.f32 %v510, %v513
  %v517 = vadd.f32 %v511, %v513
  %v518 = vadd.f32 %v512, %v513
  %v519 = vpack.c.bf16 %v515, %v514
  %v520 = vpack.c.bf16 %v517, %v516
  %v521 = vpack.c.bf16 %v518, %v518
  %v522 = vld [vmem:[%s6] sm:$0xf]
  %v523 = vld [vmem:[%s6 + $0x4] sm:$0xf]
  %v524 = vld [vmem:[%s6 + $0x8] sm:$0xf]
  %v525 = vld [vmem:[%s6 + $0xc] sm:$0xf]
  %v526 = vperm.slane %v395, 0
  %v531 = vunpack.c.l.b16 %v522
  %v532 = vunpack.c.l.b16 %v523
  %v533 = vunpack.c.l.b16 %v524
  %v534 = vunpack.c.l.b16 %v525
  %v535 = vpack.c.b16 %v532, %v531
  %v536 = vpack.c.b16 %v534, %v533
  %v540 = vsel %vm232, %v519, 0
  %v543 = vsel %vm232, %v520, 0
  %v546 = vsel %vm232, %v521, 0
  %548 = vmatpush.bf16.msra.mxu0 0
  %549 = vmatpush.bf16.msra.mxu0 0
  %550 = vmatpush.bf16.msra.mxu0 0
  %551 = vmatpush.bf16.msra.mxu0 0
  %552 = vmatpush.bf16.msra.mxu0 0
  %553 = vmatpush.bf16.msra.mxu0 0
  %554 = vmatpush.bf16.msra.mxu0 %v536
  %555 = vmatpush.bf16.msra.mxu0 %v535
  %556 = vmatmul.bf16.gmra.mxu0 %v540
  %v557 = vpop.f32.mrf.mxu0
  %v558 = vadd.f32 %v526, %v557
  %v559 = vpop.f32.mrf.mxu0
  %v560 = vadd.f32 %v526, %v559
  %561 = vmatmul.bf16.gmra.mxu0 %v543
  %v562 = vpop.f32.mrf.mxu0
  %v563 = vadd.f32 %v526, %v562
  %v564 = vpop.f32.mrf.mxu0
  %v565 = vadd.f32 %v526, %v564
  %566 = vmatmul.bf16.gmra.mxu0 %v546
  %v567 = vpop.f32.mrf.mxu0
  %v568 = vadd.f32 %v526, %v567
  %v569 = vpop.f32.mrf.mxu0
  %570 = vdwg.mxu0
  %v571 = vpack.c.bf16 %v560, %v558
  %v572 = vpack.c.bf16 %v565, %v563
  %v573 = vpack.c.bf16 %v568, %v568
  %v574 = vmul.f32 %v558, %v373
  %v575 = vmul.f32 %v560, %v373
  %v576 = vmul.f32 %v563, %v373
  %v577 = vmul.f32 %v565, %v373
  %v578 = vmul.f32 %v568, %v373
  %v579 = vpack.c.bf16 %v575, %v574
  %v580 = vpack.c.bf16 %v577, %v576
  %v581 = vpack.c.bf16 %v578, %v578
  %583 = vrot.lane.b32.xlu0 %v373, 64
  %v584 = vpop.permute.xlu0 %583
  %v586 = vmul.f32 %v558, %v584
  %v587 = vmul.f32 %v560, %v584
  %v588 = vmul.f32 %v563, %v584
  %v589 = vmul.f32 %v565, %v584
  %v590 = vmul.f32 %v568, %v584
  %v591 = vpack.c.bf16 %v587, %v586
  %v592 = vpack.c.bf16 %v589, %v588
  %v593 = vpack.c.bf16 %v590, %v590
  %597 = vrot.lane.b32.xlu0 %v571, 96
  %v598 = vpop.permute.xlu0 %597
  %599 = vrot.lane.b32.xlu0 %v572, 96
  %v600 = vpop.permute.xlu0 %599
  %601 = vrot.lane.b32.xlu0 %v573, 96
  %v602 = vpop.permute.xlu0 %601
  %v604 = vsel %vm232, %v579, 0
  %v607 = vsel %vm232, %v580, 0
  %v610 = vsel %vm232, %v581, 0
  %v613 = vsel %vm232, %v598, 0
  %v616 = vsel %vm232, %v600, 0
  %v619 = vsel %vm232, %v602, 0
  %621 = vmatpush.bf16.xpose.msra.mxu0 0
  %622 = vmatpush.bf16.xpose.msra.mxu0 0
  %623 = vmatpush.bf16.xpose.msra.mxu0 0
  %624 = vmatpush.bf16.xpose.msra.mxu0 0
  %625 = vmatpush.bf16.xpose.msra.mxu0 0
  %626 = vmatpush.bf16.xpose.msra.mxu0 %v619
  %627 = vmatpush.bf16.xpose.msra.mxu0 %v616
  %628 = vmatpush.bf16.xpose.msra.mxu0 %v613
  %629 = vmatmul.bf16.gmra.mxu0 %v604
  %v630 = vpop.f32.mrf.mxu0
  %v631 = vadd.f32 %v362, %v630
  %v632 = vpop.f32.mrf.mxu0
  %v633 = vadd.f32 %v363, %v632
  %634 = vmatmul.bf16.gmra.mxu0 %v607
  %v635 = vpop.f32.mrf.mxu0
  %v636 = vadd.f32 %v364, %v635
  %v637 = vpop.f32.mrf.mxu0
  %v638 = vadd.f32 %v365, %v637
  %639 = vmatmul.bf16.gmra.mxu0 %v610
  %v640 = vpop.f32.mrf.mxu0
  %v641 = vadd.f32 %v366, %v640
  %v642 = vpop.f32.mrf.mxu0
  %643 = vdwg.mxu0
  %vm644 = vcmask 326656
  %v645 = vsel %vm644, %v631, -inf
  %646 = vmax.xlane.f32.xlu0 %v645
  %v647 = vpop.xlane.xlu0 %646
  %v648 = vsel %vm644, %v633, -inf
  %649 = vmax.xlane.f32.xlu0 %v648
  %v650 = vpop.xlane.xlu0 %649
  %v651 = vsel %vm644, %v636, -inf
  %652 = vmax.xlane.f32.xlu0 %v651
  %v653 = vpop.xlane.xlu0 %652
  %v654 = vsel %vm644, %v638, -inf
  %655 = vmax.xlane.f32.xlu0 %v654
  %v656 = vpop.xlane.xlu0 %655
  %v657 = vsel %vm644, %v641, -inf
  %658 = vmax.xlane.f32.xlu0 %v657
  %v659 = vpop.xlane.xlu0 %658
  %v660 = vsub.f32 %v631, %v647
  %v661 = vsub.f32 %v633, %v650
  %v662 = vsub.f32 %v636, %v653
  %v663 = vsub.f32 %v638, %v656
  %v664 = vsub.f32 %v641, %v659
  %v665 = vmul.f32 %v660, 1.442695
  %v666 = vpow.pop %v665
  %v667 = vmul.f32 %v661, 1.442695
  %v668 = vpow.pop %v667
  %v669 = vmul.f32 %v662, 1.442695
  %v670 = vpow.pop %v669
  %v671 = vmul.f32 %v663, 1.442695
  %v672 = vpow.pop %v671
  %v673 = vmul.f32 %v664, 1.442695
  %v674 = vpow.pop %v673
  %v675 = vsel %vm644, %v666, 0.0
  %676 = vadd.xlane.f32.xlu0 %v675
  %v677 = vpop.xlane.xlu0 %676
  %v678 = vsel %vm644, %v668, 0.0
  %679 = vadd.xlane.f32.xlu0 %v678
  %v680 = vpop.xlane.xlu0 %679
  %v681 = vsel %vm644, %v670, 0.0
  %682 = vadd.xlane.f32.xlu0 %v681
  %v683 = vpop.xlane.xlu0 %682
  %v684 = vsel %vm644, %v672, 0.0
  %685 = vadd.xlane.f32.xlu0 %v684
  %v686 = vpop.xlane.xlu0 %685
  %v687 = vsel %vm644, %v674, 0.0
  %688 = vadd.xlane.f32.xlu0 %v687
  %v689 = vpop.xlane.xlu0 %688
  %v690 = vrcp.pop %v677
  %v691 = vrcp.pop %v680
  %v692 = vrcp.pop %v683
  %v693 = vrcp.pop %v686
  %v694 = vrcp.pop %v689
  %v695 = vmul.f32 %v666, %v690
  %v696 = vmul.f32 %v668, %v691
  %v697 = vmul.f32 %v670, %v692
  %v698 = vmul.f32 %v672, %v693
  %v699 = vmul.f32 %v674, %v694
  %v700 = vpack.c.bf16 %v696, %v695
  %v701 = vpack.c.bf16 %v698, %v697
  %v702 = vpack.c.bf16 %v699, %v699
  %v703 = vmul.f32 %v558, %v378
  %v704 = vmul.f32 %v560, %v378
  %v705 = vmul.f32 %v563, %v378
  %v706 = vmul.f32 %v565, %v378
  %v707 = vmul.f32 %v568, %v378
  %v708 = vpack.c.bf16 %v704, %v703
  %v709 = vpack.c.bf16 %v706, %v705
  %v710 = vpack.c.bf16 %v707, %v707
  %712 = vrot.lane.b32.xlu0 %v378, 64
  %v713 = vpop.permute.xlu0 %712
  %v715 = vmul.f32 %v558, %v713
  %v716 = vmul.f32 %v560, %v713
  %v717 = vmul.f32 %v563, %v713
  %v718 = vmul.f32 %v565, %v713
  %v719 = vmul.f32 %v568, %v713
  %v720 = vpack.c.bf16 %v716, %v715
  %v721 = vpack.c.bf16 %v718, %v717
  %v722 = vpack.c.bf16 %v719, %v719
  %v724 = vsel %vm232, %v708, 0
  %v727 = vsel %vm232, %v709, 0
  %v730 = vsel %vm232, %v710, 0
  %732 = vmatpush.bf16.xpose.msra.mxu0 0
  %733 = vmatpush.bf16.xpose.msra.mxu0 0
  %734 = vmatpush.bf16.xpose.msra.mxu0 0
  %735 = vmatpush.bf16.xpose.msra.mxu0 0
  %736 = vmatpush.bf16.xpose.msra.mxu0 0
  %737 = vmatpush.bf16.xpose.msra.mxu0 %v619
  %738 = vmatpush.bf16.xpose.msra.mxu0 %v616
  %739 = vmatpush.bf16.xpose.msra.mxu0 %v613
  %740 = vmatmul.bf16.gmra.mxu0 %v724
  %v741 = vpop.f32.mrf.mxu0
  %v742 = vadd.f32 %v362, %v741
  %v743 = vpop.f32.mrf.mxu0
  %v744 = vadd.f32 %v363, %v743
  %745 = vmatmul.bf16.gmra.mxu0 %v727
  %v746 = vpop.f32.mrf.mxu0
  %v747 = vadd.f32 %v364, %v746
  %v748 = vpop.f32.mrf.mxu0
  %v749 = vadd.f32 %v365, %v748
  %750 = vmatmul.bf16.gmra.mxu0 %v730
  %v751 = vpop.f32.mrf.mxu0
  %v752 = vadd.f32 %v366, %v751
  %v753 = vpop.f32.mrf.mxu0
  %754 = vdwg.mxu0
  %v755 = vsel %vm644, %v742, -inf
  %756 = vmax.xlane.f32.xlu0 %v755
  %v757 = vpop.xlane.xlu0 %756
  %v758 = vsel %vm644, %v744, -inf
  %759 = vmax.xlane.f32.xlu0 %v758
  %v760 = vpop.xlane.xlu0 %759
  %v761 = vsel %vm644, %v747, -inf
  %762 = vmax.xlane.f32.xlu0 %v761
  %v763 = vpop.xlane.xlu0 %762
  %v764 = vsel %vm644, %v749, -inf
  %765 = vmax.xlane.f32.xlu0 %v764
  %v766 = vpop.xlane.xlu0 %765
  %v767 = vsel %vm644, %v752, -inf
  %768 = vmax.xlane.f32.xlu0 %v767
  %v769 = vpop.xlane.xlu0 %768
  %v770 = vsub.f32 %v742, %v757
  %v771 = vsub.f32 %v744, %v760
  %v772 = vsub.f32 %v747, %v763
  %v773 = vsub.f32 %v749, %v766
  %v774 = vsub.f32 %v752, %v769
  %v775 = vmul.f32 %v770, 1.442695
  %v776 = vpow.pop %v775
  %v777 = vmul.f32 %v771, 1.442695
  %v778 = vpow.pop %v777
  %v779 = vmul.f32 %v772, 1.442695
  %v780 = vpow.pop %v779
  %v781 = vmul.f32 %v773, 1.442695
  %v782 = vpow.pop %v781
  %v783 = vmul.f32 %v774, 1.442695
  %v784 = vpow.pop %v783
  %v785 = vsel %vm644, %v776, 0.0
  %786 = vadd.xlane.f32.xlu0 %v785
  %v787 = vpop.xlane.xlu0 %786
  %v788 = vsel %vm644, %v778, 0.0
  %789 = vadd.xlane.f32.xlu0 %v788
  %v790 = vpop.xlane.xlu0 %789
  %v791 = vsel %vm644, %v780, 0.0
  %792 = vadd.xlane.f32.xlu0 %v791
  %v793 = vpop.xlane.xlu0 %792
  %v794 = vsel %vm644, %v782, 0.0
  %795 = vadd.xlane.f32.xlu0 %v794
  %v796 = vpop.xlane.xlu0 %795
  %v797 = vsel %vm644, %v784, 0.0
  %798 = vadd.xlane.f32.xlu0 %v797
  %v799 = vpop.xlane.xlu0 %798
  %v800 = vrcp.pop %v787
  %v801 = vrcp.pop %v790
  %v802 = vrcp.pop %v793
  %v803 = vrcp.pop %v796
  %v804 = vrcp.pop %v799
  %v805 = vmul.f32 %v776, %v800
  %v806 = vmul.f32 %v778, %v801
  %v807 = vmul.f32 %v780, %v802
  %v808 = vmul.f32 %v782, %v803
  %v809 = vmul.f32 %v784, %v804
  %v810 = vpack.c.bf16 %v806, %v805
  %v811 = vpack.c.bf16 %v808, %v807
  %v812 = vpack.c.bf16 %v809, %v809
  %816 = vrot.lane.b32.xlu0 %v720, 64
  %v817 = vpop.permute.xlu0 %816
  %818 = vrot.lane.b32.xlu0 %v721, 64
  %v819 = vpop.permute.xlu0 %818
  %820 = vrot.lane.b32.xlu0 %v722, 64
  %v821 = vpop.permute.xlu0 %820
  %v825 = vsel %vm644, %v810, 0
  %v828 = vsel %vm644, %v811, 0
  %v831 = vsel %vm644, %v812, 0
  %vm833 = vcmask 1043456
  %v835 = vsel %vm833, %v821, 0
  %837 = vmatpush.bf16.msra.mxu0 0
  %838 = vmatpush.bf16.msra.mxu0 0
  %839 = vmatpush.bf16.msra.mxu0 0
  %840 = vmatpush.bf16.msra.mxu0 0
  %841 = vmatpush.bf16.msra.mxu0 0
  %842 = vmatpush.bf16.msra.mxu0 %v835
  %843 = vmatpush.bf16.msra.mxu0 %v819
  %844 = vmatpush.bf16.msra.mxu0 %v817
  %845 = vmatmul.bf16.gmra.mxu0 %v825
  %v846 = vpop.f32.mrf.mxu0
  %v847 = vadd.f32 0.0, %v846
  %v848 = vpop.f32.mrf.mxu0
  %v849 = vadd.f32 0.0, %v848
  %850 = vmatmul.bf16.gmra.mxu0 %v828
  %v851 = vpop.f32.mrf.mxu0
  %v852 = vadd.f32 0.0, %v851
  %v853 = vpop.f32.mrf.mxu0
  %v854 = vadd.f32 0.0, %v853
  %855 = vmatmul.bf16.gmra.mxu0 %v831
  %v856 = vpop.f32.mrf.mxu0
  %v857 = vadd.f32 0.0, %v856
  %v858 = vpop.f32.mrf.mxu0
  %859 = vdwg.mxu0
  %863 = vrot.lane.b32.xlu0 %v591, 64
  %v864 = vpop.permute.xlu0 %863
  %865 = vrot.lane.b32.xlu0 %v592, 64
  %v866 = vpop.permute.xlu0 %865
  %867 = vrot.lane.b32.xlu0 %v593, 64
  %v868 = vpop.permute.xlu0 %867
  %v872 = vsel %vm644, %v700, 0
  %v875 = vsel %vm644, %v701, 0
  %v878 = vsel %vm644, %v702, 0
  %v881 = vsel %vm833, %v868, 0
  %883 = vmatpush.bf16.msra.mxu0 0
  %884 = vmatpush.bf16.msra.mxu0 0
  %885 = vmatpush.bf16.msra.mxu0 0
  %886 = vmatpush.bf16.msra.mxu0 0
  %887 = vmatpush.bf16.msra.mxu0 0
  %888 = vmatpush.bf16.msra.mxu0 %v881
  %889 = vmatpush.bf16.msra.mxu0 %v866
  %890 = vmatpush.bf16.msra.mxu0 %v864
  %891 = vmatmul.bf16.gmra.mxu0 %v872
  %v892 = vpop.f32.mrf.mxu0
  %v893 = vadd.f32 %v847, %v892
  %v894 = vpop.f32.mrf.mxu0
  %v895 = vadd.f32 %v849, %v894
  %896 = vmatmul.bf16.gmra.mxu0 %v875
  %v897 = vpop.f32.mrf.mxu0
  %v898 = vadd.f32 %v852, %v897
  %v899 = vpop.f32.mrf.mxu0
  %v900 = vadd.f32 %v854, %v899
  %901 = vmatmul.bf16.gmra.mxu0 %v878
  %v902 = vpop.f32.mrf.mxu0
  %v903 = vadd.f32 %v857, %v902
  %v904 = vpop.f32.mrf.mxu0
  %905 = vdwg.mxu0
  %v906 = vmul.f32 %v558, %v383
  %v907 = vmul.f32 %v560, %v383
  %v908 = vmul.f32 %v563, %v383
  %v909 = vmul.f32 %v565, %v383
  %v910 = vmul.f32 %v568, %v383
  %v911 = vpack.c.bf16 %v907, %v906
  %v912 = vpack.c.bf16 %v909, %v908
  %v913 = vpack.c.bf16 %v910, %v910
  %915 = vrot.lane.b32.xlu0 %v383, 64
  %v916 = vpop.permute.xlu0 %915
  %v918 = vmul.f32 %v558, %v916
  %v919 = vmul.f32 %v560, %v916
  %v920 = vmul.f32 %v563, %v916
  %v921 = vmul.f32 %v565, %v916
  %v922 = vmul.f32 %v568, %v916
  %v923 = vpack.c.bf16 %v919, %v918
  %v924 = vpack.c.bf16 %v921, %v920
  %v925 = vpack.c.bf16 %v922, %v922
  %v927 = vsel %vm232, %v911, 0
  %v930 = vsel %vm232, %v912, 0
  %v933 = vsel %vm232, %v913, 0
  %935 = vmatpush.bf16.xpose.msra.mxu0 0
  %936 = vmatpush.bf16.xpose.msra.mxu0 0
  %937 = vmatpush.bf16.xpose.msra.mxu0 0
  %938 = vmatpush.bf16.xpose.msra.mxu0 0
  %939 = vmatpush.bf16.xpose.msra.mxu0 0
  %940 = vmatpush.bf16.xpose.msra.mxu0 %v619
  %941 = vmatpush.bf16.xpose.msra.mxu0 %v616
  %942 = vmatpush.bf16.xpose.msra.mxu0 %v613
  %943 = vmatmul.bf16.gmra.mxu0 %v927
  %v944 = vpop.f32.mrf.mxu0
  %v945 = vadd.f32 %v362, %v944
  %v946 = vpop.f32.mrf.mxu0
  %v947 = vadd.f32 %v363, %v946
  %948 = vmatmul.bf16.gmra.mxu0 %v930
  %v949 = vpop.f32.mrf.mxu0
  %v950 = vadd.f32 %v364, %v949
  %v951 = vpop.f32.mrf.mxu0
  %v952 = vadd.f32 %v365, %v951
  %953 = vmatmul.bf16.gmra.mxu0 %v933
  %v954 = vpop.f32.mrf.mxu0
  %v955 = vadd.f32 %v366, %v954
  %v956 = vpop.f32.mrf.mxu0
  %957 = vdwg.mxu0
  %v958 = vsel %vm644, %v945, -inf
  %959 = vmax.xlane.f32.xlu0 %v958
  %v960 = vpop.xlane.xlu0 %959
  %v961 = vsel %vm644, %v947, -inf
  %962 = vmax.xlane.f32.xlu0 %v961
  %v963 = vpop.xlane.xlu0 %962
  %v964 = vsel %vm644, %v950, -inf
  %965 = vmax.xlane.f32.xlu0 %v964
  %v966 = vpop.xlane.xlu0 %965
  %v967 = vsel %vm644, %v952, -inf
  %968 = vmax.xlane.f32.xlu0 %v967
  %v969 = vpop.xlane.xlu0 %968
  %v970 = vsel %vm644, %v955, -inf
  %971 = vmax.xlane.f32.xlu0 %v970
  %v972 = vpop.xlane.xlu0 %971
  %v973 = vsub.f32 %v945, %v960
  %v974 = vsub.f32 %v947, %v963
  %v975 = vsub.f32 %v950, %v966
  %v976 = vsub.f32 %v952, %v969
  %v977 = vsub.f32 %v955, %v972
  %v978 = vmul.f32 %v973, 1.442695
  %v979 = vpow.pop %v978
  %v980 = vmul.f32 %v974, 1.442695
  %v981 = vpow.pop %v980
  %v982 = vmul.f32 %v975, 1.442695
  %v983 = vpow.pop %v982
  %v984 = vmul.f32 %v976, 1.442695
  %v985 = vpow.pop %v984
  %v986 = vmul.f32 %v977, 1.442695
  %v987 = vpow.pop %v986
  %v988 = vsel %vm644, %v979, 0.0
  %989 = vadd.xlane.f32.xlu0 %v988
  %v990 = vpop.xlane.xlu0 %989
  %v991 = vsel %vm644, %v981, 0.0
  %992 = vadd.xlane.f32.xlu0 %v991
  %v993 = vpop.xlane.xlu0 %992
  %v994 = vsel %vm644, %v983, 0.0
  %995 = vadd.xlane.f32.xlu0 %v994
  %v996 = vpop.xlane.xlu0 %995
  %v997 = vsel %vm644, %v985, 0.0
  %998 = vadd.xlane.f32.xlu0 %v997
  %v999 = vpop.xlane.xlu0 %998
  %v1000 = vsel %vm644, %v987, 0.0
  %1001 = vadd.xlane.f32.xlu0 %v1000
  %v1002 = vpop.xlane.xlu0 %1001
  %v1003 = vrcp.pop %v990
  %v1004 = vrcp.pop %v993
  %v1005 = vrcp.pop %v996
  %v1006 = vrcp.pop %v999
  %v1007 = vrcp.pop %v1002
  %v1008 = vmul.f32 %v979, %v1003
  %v1009 = vmul.f32 %v981, %v1004
  %v1010 = vmul.f32 %v983, %v1005
  %v1011 = vmul.f32 %v985, %v1006
  %v1012 = vmul.f32 %v987, %v1007
  %v1013 = vpack.c.bf16 %v1009, %v1008
  %v1014 = vpack.c.bf16 %v1011, %v1010
  %v1015 = vpack.c.bf16 %v1012, %v1012
  %1019 = vrot.lane.b32.xlu0 %v923, 64
  %v1020 = vpop.permute.xlu0 %1019
  %1021 = vrot.lane.b32.xlu0 %v924, 64
  %v1022 = vpop.permute.xlu0 %1021
  %1023 = vrot.lane.b32.xlu0 %v925, 64
  %v1024 = vpop.permute.xlu0 %1023
  %v1028 = vsel %vm644, %v1013, 0
  %v1031 = vsel %vm644, %v1014, 0
  %v1034 = vsel %vm644, %v1015, 0
  %v1037 = vsel %vm833, %v1024, 0
  %1039 = vmatpush.bf16.msra.mxu0 0
  %1040 = vmatpush.bf16.msra.mxu0 0
  %1041 = vmatpush.bf16.msra.mxu0 0
  %1042 = vmatpush.bf16.msra.mxu0 0
  %1043 = vmatpush.bf16.msra.mxu0 0
  %1044 = vmatpush.bf16.msra.mxu0 %v1037
  %1045 = vmatpush.bf16.msra.mxu0 %v1022
  %1046 = vmatpush.bf16.msra.mxu0 %v1020
  %1047 = vmatmul.bf16.gmra.mxu0 %v1028
  %v1048 = vpop.f32.mrf.mxu0
  %v1049 = vadd.f32 0.0, %v1048
  %v1050 = vpop.f32.mrf.mxu0
  %v1051 = vadd.f32 0.0, %v1050
  %1052 = vmatmul.bf16.gmra.mxu0 %v1031
  %v1053 = vpop.f32.mrf.mxu0
  %v1054 = vadd.f32 0.0, %v1053
  %v1055 = vpop.f32.mrf.mxu0
  %v1056 = vadd.f32 0.0, %v1055
  %1057 = vmatmul.bf16.gmra.mxu0 %v1034
  %v1058 = vpop.f32.mrf.mxu0
  %v1059 = vadd.f32 0.0, %v1058
  %v1060 = vpop.f32.mrf.mxu0
  %1061 = vdwg.mxu0
  %v1062 = vadd.f32 %v893, %v1049
  %v1063 = vadd.f32 %v895, %v1051
  %v1064 = vadd.f32 %v898, %v1054
  %v1065 = vadd.f32 %v900, %v1056
  %v1066 = vadd.f32 %v903, %v1059
  %v1067 = vmul.f32 %v558, %v388
  %v1068 = vmul.f32 %v560, %v388
  %v1069 = vmul.f32 %v563, %v388
  %v1070 = vmul.f32 %v565, %v388
  %v1071 = vmul.f32 %v568, %v388
  %v1072 = vpack.c.bf16 %v1068, %v1067
  %v1073 = vpack.c.bf16 %v1070, %v1069
  %v1074 = vpack.c.bf16 %v1071, %v1071
  %1076 = vrot.lane.b32.xlu0 %v388, 64
  %v1077 = vpop.permute.xlu0 %1076
  %v1079 = vmul.f32 %v558, %v1077
  %v1080 = vmul.f32 %v560, %v1077
  %v1081 = vmul.f32 %v563, %v1077
  %v1082 = vmul.f32 %v565, %v1077
  %v1083 = vmul.f32 %v568, %v1077
  %v1084 = vpack.c.bf16 %v1080, %v1079
  %v1085 = vpack.c.bf16 %v1082, %v1081
  %v1086 = vpack.c.bf16 %v1083, %v1083
  %v1088 = vsel %vm232, %v1072, 0
  %v1091 = vsel %vm232, %v1073, 0
  %v1094 = vsel %vm232, %v1074, 0
  %1096 = vmatpush.bf16.xpose.msra.mxu0 0
  %1097 = vmatpush.bf16.xpose.msra.mxu0 0
  %1098 = vmatpush.bf16.xpose.msra.mxu0 0
  %1099 = vmatpush.bf16.xpose.msra.mxu0 0
  %1100 = vmatpush.bf16.xpose.msra.mxu0 0
  %1101 = vmatpush.bf16.xpose.msra.mxu0 %v619
  %1102 = vmatpush.bf16.xpose.msra.mxu0 %v616
  %1103 = vmatpush.bf16.xpose.msra.mxu0 %v613
  %1104 = vmatmul.bf16.gmra.mxu0 %v1088
  %v1105 = vpop.f32.mrf.mxu0
  %v1106 = vadd.f32 %v362, %v1105
  %v1107 = vpop.f32.mrf.mxu0
  %v1108 = vadd.f32 %v363, %v1107
  %1109 = vmatmul.bf16.gmra.mxu0 %v1091
  %v1110 = vpop.f32.mrf.mxu0
  %v1111 = vadd.f32 %v364, %v1110
  %v1112 = vpop.f32.mrf.mxu0
  %v1113 = vadd.f32 %v365, %v1112
  %1114 = vmatmul.bf16.gmra.mxu0 %v1094
  %v1115 = vpop.f32.mrf.mxu0
  %v1116 = vadd.f32 %v366, %v1115
  %v1117 = vpop.f32.mrf.mxu0
  %1118 = vdwg.mxu0
  %v1119 = vsel %vm644, %v1106, -inf
  %1120 = vmax.xlane.f32.xlu0 %v1119
  %v1121 = vpop.xlane.xlu0 %1120
  %v1122 = vsel %vm644, %v1108, -inf
  %1123 = vmax.xlane.f32.xlu0 %v1122
  %v1124 = vpop.xlane.xlu0 %1123
  %v1125 = vsel %vm644, %v1111, -inf
  %1126 = vmax.xlane.f32.xlu0 %v1125
  %v1127 = vpop.xlane.xlu0 %1126
  %v1128 = vsel %vm644, %v1113, -inf
  %1129 = vmax.xlane.f32.xlu0 %v1128
  %v1130 = vpop.xlane.xlu0 %1129
  %v1131 = vsel %vm644, %v1116, -inf
  %1132 = vmax.xlane.f32.xlu0 %v1131
  %v1133 = vpop.xlane.xlu0 %1132
  %v1134 = vsub.f32 %v1106, %v1121
  %v1135 = vsub.f32 %v1108, %v1124
  %v1136 = vsub.f32 %v1111, %v1127
  %v1137 = vsub.f32 %v1113, %v1130
  %v1138 = vsub.f32 %v1116, %v1133
  %v1139 = vmul.f32 %v1134, 1.442695
  %v1140 = vpow.pop %v1139
  %v1141 = vmul.f32 %v1135, 1.442695
  %v1142 = vpow.pop %v1141
  %v1143 = vmul.f32 %v1136, 1.442695
  %v1144 = vpow.pop %v1143
  %v1145 = vmul.f32 %v1137, 1.442695
  %v1146 = vpow.pop %v1145
  %v1147 = vmul.f32 %v1138, 1.442695
  %v1148 = vpow.pop %v1147
  %v1149 = vsel %vm644, %v1140, 0.0
  %1150 = vadd.xlane.f32.xlu0 %v1149
  %v1151 = vpop.xlane.xlu0 %1150
  %v1152 = vsel %vm644, %v1142, 0.0
  %1153 = vadd.xlane.f32.xlu0 %v1152
  %v1154 = vpop.xlane.xlu0 %1153
  %v1155 = vsel %vm644, %v1144, 0.0
  %1156 = vadd.xlane.f32.xlu0 %v1155
  %v1157 = vpop.xlane.xlu0 %1156
  %v1158 = vsel %vm644, %v1146, 0.0
  %1159 = vadd.xlane.f32.xlu0 %v1158
  %v1160 = vpop.xlane.xlu0 %1159
  %v1161 = vsel %vm644, %v1148, 0.0
  %1162 = vadd.xlane.f32.xlu0 %v1161
  %v1163 = vpop.xlane.xlu0 %1162
  %v1164 = vrcp.pop %v1151
  %v1165 = vrcp.pop %v1154
  %v1166 = vrcp.pop %v1157
  %v1167 = vrcp.pop %v1160
  %v1168 = vrcp.pop %v1163
  %v1169 = vmul.f32 %v1140, %v1164
  %v1170 = vmul.f32 %v1142, %v1165
  %v1171 = vmul.f32 %v1144, %v1166
  %v1172 = vmul.f32 %v1146, %v1167
  %v1173 = vmul.f32 %v1148, %v1168
  %v1174 = vpack.c.bf16 %v1170, %v1169
  %v1175 = vpack.c.bf16 %v1172, %v1171
  %v1176 = vpack.c.bf16 %v1173, %v1173
  %1180 = vrot.lane.b32.xlu0 %v1084, 64
  %v1181 = vpop.permute.xlu0 %1180
  %1182 = vrot.lane.b32.xlu0 %v1085, 64
  %v1183 = vpop.permute.xlu0 %1182
  %1184 = vrot.lane.b32.xlu0 %v1086, 64
  %v1185 = vpop.permute.xlu0 %1184
  %v1189 = vsel %vm644, %v1174, 0
  %v1192 = vsel %vm644, %v1175, 0
  %v1195 = vsel %vm644, %v1176, 0
  %v1198 = vsel %vm833, %v1185, 0
  %1200 = vmatpush.bf16.msra.mxu0 0
  %1201 = vmatpush.bf16.msra.mxu0 0
  %1202 = vmatpush.bf16.msra.mxu0 0
  %1203 = vmatpush.bf16.msra.mxu0 0
  %1204 = vmatpush.bf16.msra.mxu0 0
  %1205 = vmatpush.bf16.msra.mxu0 %v1198
  %1206 = vmatpush.bf16.msra.mxu0 %v1183
  %1207 = vmatpush.bf16.msra.mxu0 %v1181
  %1208 = vmatmul.bf16.gmra.mxu0 %v1189
  %v1209 = vpop.f32.mrf.mxu0
  %v1210 = vadd.f32 0.0, %v1209
  %v1211 = vpop.f32.mrf.mxu0
  %v1212 = vadd.f32 0.0, %v1211
  %1213 = vmatmul.bf16.gmra.mxu0 %v1192
  %v1214 = vpop.f32.mrf.mxu0
  %v1215 = vadd.f32 0.0, %v1214
  %v1216 = vpop.f32.mrf.mxu0
  %v1217 = vadd.f32 0.0, %v1216
  %1218 = vmatmul.bf16.gmra.mxu0 %v1195
  %v1219 = vpop.f32.mrf.mxu0
  %v1220 = vadd.f32 0.0, %v1219
  %v1221 = vpop.f32.mrf.mxu0
  %1222 = vdwg.mxu0
  %v1223 = vadd.f32 %v1062, %v1210
  %v1224 = vadd.f32 %v1063, %v1212
  %v1225 = vadd.f32 %v1064, %v1215
  %v1226 = vadd.f32 %v1065, %v1217
  %v1227 = vadd.f32 %v1066, %v1220
  %v1228 = vpack.c.bf16 %v1224, %v1223
  %v1229 = vpack.c.bf16 %v1226, %v1225
  %v1230 = vpack.c.bf16 %v1227, %v1227
  %v1231 = vld [vmem:[%s7] sm:$0xf]
  %v1232 = vld [vmem:[%s7 + $0x4] sm:$0xf]
  %v1233 = vld [vmem:[%s7 + $0x8] sm:$0xf]
  %v1234 = vld [vmem:[%s7 + $0xc] sm:$0xf]
  %v1235 = vperm.slane %v391, 0
  %v1240 = vunpack.c.l.b16 %v1231
  %v1241 = vunpack.c.l.b16 %v1232
  %v1242 = vunpack.c.l.b16 %v1233
  %v1243 = vunpack.c.l.b16 %v1234
  %v1244 = vpack.c.b16 %v1241, %v1240
  %v1245 = vpack.c.b16 %v1243, %v1242
  %v1249 = vsel %vm232, %v1228, 0
  %v1252 = vsel %vm232, %v1229, 0
  %v1255 = vsel %vm232, %v1230, 0
  %1257 = vmatpush.bf16.msra.mxu0 0
  %1258 = vmatpush.bf16.msra.mxu0 0
  %1259 = vmatpush.bf16.msra.mxu0 0
  %1260 = vmatpush.bf16.msra.mxu0 0
  %1261 = vmatpush.bf16.msra.mxu0 0
  %1262 = vmatpush.bf16.msra.mxu0 0
  %1263 = vmatpush.bf16.msra.mxu0 %v1245
  %1264 = vmatpush.bf16.msra.mxu0 %v1244
  %1265 = vmatmul.bf16.gmra.mxu0 %v1249
  %v1266 = vpop.f32.mrf.mxu0
  %v1267 = vadd.f32 %v1235, %v1266
  %v1268 = vpop.f32.mrf.mxu0
  %v1269 = vadd.f32 %v1235, %v1268
  %1270 = vmatmul.bf16.gmra.mxu0 %v1252
  %v1271 = vpop.f32.mrf.mxu0
  %v1272 = vadd.f32 %v1235, %v1271
  %v1273 = vpop.f32.mrf.mxu0
  %v1274 = vadd.f32 %v1235, %v1273
  %1275 = vmatmul.bf16.gmra.mxu0 %v1255
  %v1276 = vpop.f32.mrf.mxu0
  %v1277 = vadd.f32 %v1235, %v1276
  %v1278 = vpop.f32.mrf.mxu0
  %1279 = vdwg.mxu0
  %v1280 = vadd.f32 %v357, %v1267
  %v1281 = vadd.f32 %v358, %v1269
  %v1282 = vadd.f32 %v359, %v1272
  %v1283 = vadd.f32 %v360, %v1274
  %v1284 = vadd.f32 %v361, %v1277
  %v1285 = vsel %vm232, %v1280, 0.0
  %1286 = vadd.xlane.f32.xlu0 %v1285
  %v1287 = vpop.xlane.xlu0 %1286
  %v1288 = vsel %vm232, %v1281, 0.0
  %1289 = vadd.xlane.f32.xlu0 %v1288
  %v1290 = vpop.xlane.xlu0 %1289
  %v1291 = vsel %vm232, %v1282, 0.0
  %1292 = vadd.xlane.f32.xlu0 %v1291
  %v1293 = vpop.xlane.xlu0 %1292
  %v1294 = vsel %vm232, %v1283, 0.0
  %1295 = vadd.xlane.f32.xlu0 %v1294
  %v1296 = vpop.xlane.xlu0 %1295
  %v1297 = vsel %vm232, %v1284, 0.0
  %1298 = vadd.xlane.f32.xlu0 %v1297
  %v1299 = vpop.xlane.xlu0 %1298
  %v1300 = vmul.f32 %v1287, %v254
  %v1301 = vmul.f32 %v1290, %v254
  %v1302 = vmul.f32 %v1293, %v254
  %v1303 = vmul.f32 %v1296, %v254
  %v1304 = vmul.f32 %v1299, %v254
  %v1305 = vsub.f32 %v1280, %v1300
  %v1306 = vsub.f32 %v1281, %v1301
  %v1307 = vsub.f32 %v1282, %v1302
  %v1308 = vsub.f32 %v1283, %v1303
  %v1309 = vsub.f32 %v1284, %v1304
  %v1310 = vmul.f32 %v1305, %v1305
  %v1311 = vmul.f32 %v1306, %v1306
  %v1312 = vmul.f32 %v1307, %v1307
  %v1313 = vmul.f32 %v1308, %v1308
  %v1314 = vmul.f32 %v1309, %v1309
  %v1315 = vsel %vm232, %v1310, 0.0
  %1316 = vadd.xlane.f32.xlu0 %v1315
  %v1317 = vpop.xlane.xlu0 %1316
  %v1318 = vsel %vm232, %v1311, 0.0
  %1319 = vadd.xlane.f32.xlu0 %v1318
  %v1320 = vpop.xlane.xlu0 %1319
  %v1321 = vsel %vm232, %v1312, 0.0
  %1322 = vadd.xlane.f32.xlu0 %v1321
  %v1323 = vpop.xlane.xlu0 %1322
  %v1324 = vsel %vm232, %v1313, 0.0
  %1325 = vadd.xlane.f32.xlu0 %v1324
  %v1326 = vpop.xlane.xlu0 %1325
  %v1327 = vsel %vm232, %v1314, 0.0
  %1328 = vadd.xlane.f32.xlu0 %v1327
  %v1329 = vpop.xlane.xlu0 %1328
  %v1330 = vmul.f32 %v1317, %v254
  %v1331 = vmul.f32 %v1320, %v254
  %v1332 = vmul.f32 %v1323, %v254
  %v1333 = vmul.f32 %v1326, %v254
  %v1334 = vmul.f32 %v1329, %v254
  %v1335 = vadd.f32 %v1330, 1e-05
  %v1336 = vadd.f32 %v1331, 1e-05
  %v1337 = vadd.f32 %v1332, 1e-05
  %v1338 = vadd.f32 %v1333, 1e-05
  %v1339 = vadd.f32 %v1334, 1e-05
  %v1340 = vrsqrt.pop %v1335
  %v1341 = vmul.f32 %v1340, %v1335
  %v1342 = vmul.f32 %v1341, %v1340
  %v1343 = vmul.f32 0.5, %v1342
  %v1344 = vsub.f32 1.5, %v1343
  %v1345 = vmul.f32 %v1340, %v1344
  %vm1346 = vweird.f32 %v1335
  %vm1347 = vweird.f32 %v1340
  %vm1348 = vmor %vm1346, %vm1347
  %v1349 = vsel %vm1348, %v1340, %v1345
  %v1350 = vrsqrt.pop %v1336
  %v1351 = vmul.f32 %v1350, %v1336
  %v1352 = vmul.f32 %v1351, %v1350
  %v1353 = vmul.f32 0.5, %v1352
  %v1354 = vsub.f32 1.5, %v1353
  %v1355 = vmul.f32 %v1350, %v1354
  %vm1356 = vweird.f32 %v1336
  %vm1357 = vweird.f32 %v1350
  %vm1358 = vmor %vm1356, %vm1357
  %v1359 = vsel %vm1358, %v1350, %v1355
  %v1360 = vrsqrt.pop %v1337
  %v1361 = vmul.f32 %v1360, %v1337
  %v1362 = vmul.f32 %v1361, %v1360
  %v1363 = vmul.f32 0.5, %v1362
  %v1364 = vsub.f32 1.5, %v1363
  %v1365 = vmul.f32 %v1360, %v1364
  %vm1366 = vweird.f32 %v1337
  %vm1367 = vweird.f32 %v1360
  %vm1368 = vmor %vm1366, %vm1367
  %v1369 = vsel %vm1368, %v1360, %v1365
  %v1370 = vrsqrt.pop %v1338
  %v1371 = vmul.f32 %v1370, %v1338
  %v1372 = vmul.f32 %v1371, %v1370
  %v1373 = vmul.f32 0.5, %v1372
  %v1374 = vsub.f32 1.5, %v1373
  %v1375 = vmul.f32 %v1370, %v1374
  %vm1376 = vweird.f32 %v1338
  %vm1377 = vweird.f32 %v1370
  %vm1378 = vmor %vm1376, %vm1377
  %v1379 = vsel %vm1378, %v1370, %v1375
  %v1380 = vrsqrt.pop %v1339
  %v1381 = vmul.f32 %v1380, %v1339
  %v1382 = vmul.f32 %v1381, %v1380
  %v1383 = vmul.f32 0.5, %v1382
  %v1384 = vsub.f32 1.5, %v1383
  %v1385 = vmul.f32 %v1380, %v1384
  %vm1386 = vweird.f32 %v1339
  %vm1387 = vweird.f32 %v1380
  %vm1388 = vmor %vm1386, %vm1387
  %v1389 = vsel %vm1388, %v1380, %v1385
  %v1390 = vmul.f32 %v1305, %v1349
  %v1391 = vmul.f32 %v1306, %v1359
  %v1392 = vmul.f32 %v1307, %v1369
  %v1393 = vmul.f32 %v1308, %v1379
  %v1394 = vmul.f32 %v1309, %v1389
  %v1395 = vperm.slane %v392, 0
  %v1396 = vmul.f32 %v1390, %v1395
  %v1397 = vmul.f32 %v1391, %v1395
  %v1398 = vmul.f32 %v1392, %v1395
  %v1399 = vmul.f32 %v1393, %v1395
  %v1400 = vmul.f32 %v1394, %v1395
  %v1401 = vperm.slane %v393, 0
  %v1402 = vadd.f32 %v1396, %v1401
  %v1403 = vadd.f32 %v1397, %v1401
  %v1404 = vadd.f32 %v1398, %v1401
  %v1405 = vadd.f32 %v1399, %v1401
  %v1406 = vadd.f32 %v1400, %v1401
  %v1407 = vpack.c.bf16 %v1403, %v1402
  %v1408 = vpack.c.bf16 %v1405, %v1404
  %v1409 = vpack.c.bf16 %v1406, %v1406
  %v1410 = vld [vmem:[%s8] sm:$0xf]
  %v1411 = vld [vmem:[%s8 + $0x4] sm:$0xf]
  %v1412 = vld [vmem:[%s8 + $0x8] sm:$0xf]
  %v1413 = vld [vmem:[%s8 + $0xc] sm:$0xf]
  %v1414 = vperm.slane %v396, 0
  %v1419 = vunpack.c.l.b16 %v1410
  %v1420 = vunpack.c.l.b16 %v1411
  %v1421 = vunpack.c.l.b16 %v1412
  %v1422 = vunpack.c.l.b16 %v1413
  %v1423 = vpack.c.b16 %v1420, %v1419
  %v1424 = vpack.c.b16 %v1422, %v1421
  %v1428 = vsel %vm232, %v1407, 0
  %v1431 = vsel %vm232, %v1408, 0
  %v1434 = vsel %vm232, %v1409, 0
  %1436 = vmatpush.bf16.msra.mxu0 0
  %1437 = vmatpush.bf16.msra.mxu0 0
  %1438 = vmatpush.bf16.msra.mxu0 0
  %1439 = vmatpush.bf16.msra.mxu0 0
  %1440 = vmatpush.bf16.msra.mxu0 0
  %1441 = vmatpush.bf16.msra.mxu0 0
  %1442 = vmatpush.bf16.msra.mxu0 %v1424
  %1443 = vmatpush.bf16.msra.mxu0 %v1423
  %1444 = vmatmul.bf16.gmra.mxu0 %v1428
  %v1445 = vpop.f32.mrf.mxu0
  %v1446 = vadd.f32 %v1414, %v1445
  %v1447 = vpop.f32.mrf.mxu0
  %v1448 = vadd.f32 %v1414, %v1447
  %1449 = vmatmul.bf16.gmra.mxu0 %v1431
  %v1450 = vpop.f32.mrf.mxu0
  %v1451 = vadd.f32 %v1414, %v1450
  %v1452 = vpop.f32.mrf.mxu0
  %v1453 = vadd.f32 %v1414, %v1452
  %1454 = vmatmul.bf16.gmra.mxu0 %v1434
  %v1455 = vpop.f32.mrf.mxu0
  %v1456 = vadd.f32 %v1414, %v1455
  %v1457 = vpop.f32.mrf.mxu0
  %1458 = vdwg.mxu0
  %v1459 = vmul.f32 %v1446, 1.702
  %v1460 = vmul.f32 %v1448, 1.702
  %v1461 = vmul.f32 %v1451, 1.702
  %v1462 = vmul.f32 %v1453, 1.702
  %v1463 = vmul.f32 %v1456, 1.702
  %v1464 = vxor.u32 %v1459, 2147483648
  %v1465 = vxor.u32 %v1460, 2147483648
  %v1466 = vxor.u32 %v1461, 2147483648
  %v1467 = vxor.u32 %v1462, 2147483648
  %v1468 = vxor.u32 %v1463, 2147483648
  %v1469 = vmul.f32 %v1464, 1.442695
  %v1470 = vpow.pop %v1469
  %v1471 = vmul.f32 %v1465, 1.442695
  %v1472 = vpow.pop %v1471
  %v1473 = vmul.f32 %v1466, 1.442695
  %v1474 = vpow.pop %v1473
  %v1475 = vmul.f32 %v1467, 1.442695
  %v1476 = vpow.pop %v1475
  %v1477 = vmul.f32 %v1468, 1.442695
  %v1478 = vpow.pop %v1477
  %v1479 = vadd.f32 %v1470, 1.0
  %v1480 = vadd.f32 %v1472, 1.0
  %v1481 = vadd.f32 %v1474, 1.0
  %v1482 = vadd.f32 %v1476, 1.0
  %v1483 = vadd.f32 %v1478, 1.0
  %v1484 = vrcp.pop %v1479
  %v1485 = vmul.f32 %v1479, %v1484
  %v1486 = vsub.f32 1.0, %v1485
  %v1487 = vmul.f32 %v1484, %v1486
  %v1488 = vadd.f32 %v1484, %v1487
  %vm1489 = vweird.f32 %v1479
  %vm1490 = vweird.f32 %v1484
  %vm1491 = vmor %vm1489, %vm1490
  %v1492 = vsel %vm1491, %v1484, %v1488
  %v1493 = vand.u32 2147483647, %v1479
  %vm1494 = vcmp.eq.f32.partialorder %v1493, 8.507059e+37
  %v1495 = vand.u32 %v1479, 2147483648
  %v1496 = vor.u32 1.1754944e-38, %v1495
  %v1497 = vsel %vm1494, %v1496, %v1492
  %v1498 = vmul.f32 1.0, %v1497
  %v1499 = vrcp.pop %v1480
  %v1500 = vmul.f32 %v1480, %v1499
  %v1501 = vsub.f32 1.0, %v1500
  %v1502 = vmul.f32 %v1499, %v1501
  %v1503 = vadd.f32 %v1499, %v1502
  %vm1504 = vweird.f32 %v1480
  %vm1505 = vweird.f32 %v1499
  %vm1506 = vmor %vm1504, %vm1505
  %v1507 = vsel %vm1506, %v1499, %v1503
  %v1508 = vand.u32 2147483647, %v1480
  %vm1509 = vcmp.eq.f32.partialorder %v1508, 8.507059e+37
  %v1510 = vand.u32 %v1480, 2147483648
  %v1511 = vor.u32 1.1754944e-38, %v1510
  %v1512 = vsel %vm1509, %v1511, %v1507
  %v1513 = vmul.f32 1.0, %v1512
  %v1514 = vrcp.pop %v1481
  %v1515 = vmul.f32 %v1481, %v1514
  %v1516 = vsub.f32 1.0, %v1515
  %v1517 = vmul.f32 %v1514, %v1516
  %v1518 = vadd.f32 %v1514, %v1517
  %vm1519 = vweird.f32 %v1481
  %vm1520 = vweird.f32 %v1514
  %vm1521 = vmor %vm1519, %vm1520
  %v1522 = vsel %vm1521, %v1514, %v1518
  %v1523 = vand.u32 2147483647, %v1481
  %vm1524 = vcmp.eq.f32.partialorder %v1523, 8.507059e+37
  %v1525 = vand.u32 %v1481, 2147483648
  %v1526 = vor.u32 1.1754944e-38, %v1525
  %v1527 = vsel %vm1524, %v1526, %v1522
  %v1528 = vmul.f32 1.0, %v1527
  %v1529 = vrcp.pop %v1482
  %v1530 = vmul.f32 %v1482, %v1529
  %v1531 = vsub.f32 1.0, %v1530
  %v1532 = vmul.f32 %v1529, %v1531
  %v1533 = vadd.f32 %v1529, %v1532
  %vm1534 = vweird.f32 %v1482
  %vm1535 = vweird.f32 %v1529
  %vm1536 = vmor %vm1534, %vm1535
  %v1537 = vsel %vm1536, %v1529, %v1533
  %v1538 = vand.u32 2147483647, %v1482
  %vm1539 = vcmp.eq.f32.partialorder %v1538, 8.507059e+37
  %v1540 = vand.u32 %v1482, 2147483648
  %v1541 = vor.u32 1.1754944e-38, %v1540
  %v1542 = vsel %vm1539, %v1541, %v1537
  %v1543 = vmul.f32 1.0, %v1542
  %v1544 = vrcp.pop %v1483
  %v1545 = vmul.f32 %v1483, %v1544
  %v1546 = vsub.f32 1.0, %v1545
  %v1547 = vmul.f32 %v1544, %v1546
  %v1548 = vadd.f32 %v1544, %v1547
  %vm1549 = vweird.f32 %v1483
  %vm1550 = vweird.f32 %v1544
  %vm1551 = vmor %vm1549, %vm1550
  %v1552 = vsel %vm1551, %v1544, %v1548
  %v1553 = vand.u32 2147483647, %v1483
  %vm1554 = vcmp.eq.f32.partialorder %v1553, 8.507059e+37
  %v1555 = vand.u32 %v1483, 2147483648
  %v1556 = vor.u32 1.1754944e-38, %v1555
  %v1557 = vsel %vm1554, %v1556, %v1552
  %v1558 = vmul.f32 1.0, %v1557
  %v1559 = vmul.f32 %v1446, %v1498
  %v1560 = vmul.f32 %v1448, %v1513
  %v1561 = vmul.f32 %v1451, %v1528
  %v1562 = vmul.f32 %v1453, %v1543
  %v1563 = vmul.f32 %v1456, %v1558
  %v1564 = vpack.c.bf16 %v1560, %v1559
  %v1565 = vpack.c.bf16 %v1562, %v1561
  %v1566 = vpack.c.bf16 %v1563, %v1563
  %v1567 = vld [vmem:[%s9] sm:$0xf]
  %v1568 = vld [vmem:[%s9 + $0x4] sm:$0xf]
  %v1569 = vld [vmem:[%s9 + $0x8] sm:$0xf]
  %v1570 = vld [vmem:[%s9 + $0xc] sm:$0xf]
  %v1571 = vld [vmem:[%s9 + $0x10] sm:$0xf]
  %v1572 = vld [vmem:[%s9 + $0x14] sm:$0xf]
  %v1573 = vld [vmem:[%s9 + $0x18] sm:$0xf]
  %v1574 = vld [vmem:[%s9 + $0x1c] sm:$0xf]
  %v1575 = vld [vmem:[%s9 + $0x20] sm:$0xf]
  %v1576 = vld [vmem:[%s9 + $0x24] sm:$0xf]
  %v1577 = vld [vmem:[%s9 + $0x28] sm:$0xf]
  %v1578 = vld [vmem:[%s9 + $0x2c] sm:$0xf]
  %v1579 = vld [vmem:[%s9 + $0x30] sm:$0xf]
  %v1580 = vld [vmem:[%s9 + $0x34] sm:$0xf]
  %v1581 = vld [vmem:[%s9 + $0x38] sm:$0xf]
  %v1582 = vld [vmem:[%s9 + $0x3c] sm:$0xf]
  %v1583 = vperm.slane %v394, 0
  %v1600 = vunpack.c.l.b16 %v1567
  %v1601 = vunpack.c.l.b16 %v1568
  %v1602 = vunpack.c.l.b16 %v1569
  %v1603 = vunpack.c.l.b16 %v1570
  %v1604 = vunpack.c.l.b16 %v1571
  %v1605 = vunpack.c.l.b16 %v1572
  %v1606 = vunpack.c.l.b16 %v1573
  %v1607 = vunpack.c.l.b16 %v1574
  %v1608 = vunpack.c.l.b16 %v1575
  %v1609 = vunpack.c.l.b16 %v1576
  %v1610 = vunpack.c.l.b16 %v1577
  %v1611 = vunpack.c.l.b16 %v1578
  %v1612 = vunpack.c.l.b16 %v1579
  %v1613 = vunpack.c.l.b16 %v1580
  %v1614 = vunpack.c.l.b16 %v1581
  %v1615 = vunpack.c.l.b16 %v1582
  %v1616 = vpack.c.b16 %v1601, %v1600
  %v1617 = vpack.c.b16 %v1603, %v1602
  %v1618 = vpack.c.b16 %v1605, %v1604
  %v1619 = vpack.c.b16 %v1607, %v1606
  %v1620 = vpack.c.b16 %v1609, %v1608
  %v1621 = vpack.c.b16 %v1611, %v1610
  %v1622 = vpack.c.b16 %v1613, %v1612
  %v1623 = vpack.c.b16 %v1615, %v1614
  %1632 = vmatpush.bf16.msra.mxu0 %v1623
  %1633 = vmatpush.bf16.msra.mxu0 %v1622
  %1634 = vmatpush.bf16.msra.mxu0 %v1621
  %1635 = vmatpush.bf16.msra.mxu0 %v1620
  %1636 = vmatpush.bf16.msra.mxu0 %v1619
  %1637 = vmatpush.bf16.msra.mxu0 %v1618
  %1638 = vmatpush.bf16.msra.mxu0 %v1617
  %1639 = vmatpush.bf16.msra.mxu0 %v1616
  %1640 = vmatmul.bf16.gmra.mxu0 %v1564
  %v1641 = vpop.f32.mrf.mxu0
  %v1642 = vadd.f32 %v1583, %v1641
  %v1643 = vpop.f32.mrf.mxu0
  %v1644 = vadd.f32 %v1583, %v1643
  %1645 = vmatmul.bf16.gmra.mxu0 %v1565
  %v1646 = vpop.f32.mrf.mxu0
  %v1647 = vadd.f32 %v1583, %v1646
  %v1648 = vpop.f32.mrf.mxu0
  %v1649 = vadd.f32 %v1583, %v1648
  %1650 = vmatmul.bf16.gmra.mxu0 %v1566
  %v1651 = vpop.f32.mrf.mxu0
  %v1652 = vadd.f32 %v1583, %v1651
  %v1653 = vpop.f32.mrf.mxu0
  %1654 = vdwg.mxu0
  %v1655 = vadd.f32 %v1280, %v1642
  %v1656 = vadd.f32 %v1281, %v1644
  %v1657 = vadd.f32 %v1282, %v1647
  %v1658 = vadd.f32 %v1283, %v1649
  %v1659 = vadd.f32 %v1284, %v1652
  %v1660 = vld [vmem:[%s4 + $0xa] sm:$0x1]
  %v1661 = vld [vmem:[%s4 + $0xb] sm:$0x1]
  %v1662 = vld [vmem:[%s4 + $0xc] sm:$0x1]
  %v1663 = vld [vmem:[%s4 + $0xd] sm:$0x1]
  %v1664 = vld [vmem:[%s4 + $0xe] sm:$0x1]
  %v1665 = vld [vmem:[%s4 + $0xf] sm:$0x1]
  %v1666 = vld [vmem:[%s5 + $0x2] sm:$0x1]
  %v1667 = vld [vmem:[%s5 + $0x3] sm:$0x1]
  %v1668 = vsel %vm232, %v1655, 0.0
  %1669 = vadd.xlane.f32.xlu0 %v1668
  %v1670 = vpop.xlane.xlu0 %1669
  %v1671 = vsel %vm232, %v1656, 0.0
  %1672 = vadd.xlane.f32.xlu0 %v1671
  %v1673 = vpop.xlane.xlu0 %1672
  %v1674 = vsel %vm232, %v1657, 0.0
  %1675 = vadd.xlane.f32.xlu0 %v1674
  %v1676 = vpop.xlane.xlu0 %1675
  %v1677 = vsel %vm232, %v1658, 0.0
  %1678 = vadd.xlane.f32.xlu0 %v1677
  %v1679 = vpop.xlane.xlu0 %1678
  %v1680 = vsel %vm232, %v1659, 0.0
  %1681 = vadd.xlane.f32.xlu0 %v1680
  %v1682 = vpop.xlane.xlu0 %1681
  %v1683 = vmul.f32 %v1670, %v254
  %v1684 = vmul.f32 %v1673, %v254
  %v1685 = vmul.f32 %v1676, %v254
  %v1686 = vmul.f32 %v1679, %v254
  %v1687 = vmul.f32 %v1682, %v254
  %v1688 = vsub.f32 %v1655, %v1683
  %v1689 = vsub.f32 %v1656, %v1684
  %v1690 = vsub.f32 %v1657, %v1685
  %v1691 = vsub.f32 %v1658, %v1686
  %v1692 = vsub.f32 %v1659, %v1687
  %v1693 = vmul.f32 %v1688, %v1688
  %v1694 = vmul.f32 %v1689, %v1689
  %v1695 = vmul.f32 %v1690, %v1690
  %v1696 = vmul.f32 %v1691, %v1691
  %v1697 = vmul.f32 %v1692, %v1692
  %v1698 = vsel %vm232, %v1693, 0.0
  %1699 = vadd.xlane.f32.xlu0 %v1698
  %v1700 = vpop.xlane.xlu0 %1699
  %v1701 = vsel %vm232, %v1694, 0.0
  %1702 = vadd.xlane.f32.xlu0 %v1701
  %v1703 = vpop.xlane.xlu0 %1702
  %v1704 = vsel %vm232, %v1695, 0.0
  %1705 = vadd.xlane.f32.xlu0 %v1704
  %v1706 = vpop.xlane.xlu0 %1705
  %v1707 = vsel %vm232, %v1696, 0.0
  %1708 = vadd.xlane.f32.xlu0 %v1707
  %v1709 = vpop.xlane.xlu0 %1708
  %v1710 = vsel %vm232, %v1697, 0.0
  %1711 = vadd.xlane.f32.xlu0 %v1710
  %v1712 = vpop.xlane.xlu0 %1711
  %v1713 = vmul.f32 %v1700, %v254
  %v1714 = vmul.f32 %v1703, %v254
  %v1715 = vmul.f32 %v1706, %v254
  %v1716 = vmul.f32 %v1709, %v254
  %v1717 = vmul.f32 %v1712, %v254
  %v1718 = vadd.f32 %v1713, 1e-05
  %v1719 = vadd.f32 %v1714, 1e-05
  %v1720 = vadd.f32 %v1715, 1e-05
  %v1721 = vadd.f32 %v1716, 1e-05
  %v1722 = vadd.f32 %v1717, 1e-05
  %v1723 = vrsqrt.pop %v1718
  %v1724 = vmul.f32 %v1723, %v1718
  %v1725 = vmul.f32 %v1724, %v1723
  %v1726 = vmul.f32 0.5, %v1725
  %v1727 = vsub.f32 1.5, %v1726
  %v1728 = vmul.f32 %v1723, %v1727
  %vm1729 = vweird.f32 %v1718
  %vm1730 = vweird.f32 %v1723
  %vm1731 = vmor %vm1729, %vm1730
  %v1732 = vsel %vm1731, %v1723, %v1728
  %v1733 = vrsqrt.pop %v1719
  %v1734 = vmul.f32 %v1733, %v1719
  %v1735 = vmul.f32 %v1734, %v1733
  %v1736 = vmul.f32 0.5, %v1735
  %v1737 = vsub.f32 1.5, %v1736
  %v1738 = vmul.f32 %v1733, %v1737
  %vm1739 = vweird.f32 %v1719
  %vm1740 = vweird.f32 %v1733
  %vm1741 = vmor %vm1739, %vm1740
  %v1742 = vsel %vm1741, %v1733, %v1738
  %v1743 = vrsqrt.pop %v1720
  %v1744 = vmul.f32 %v1743, %v1720
  %v1745 = vmul.f32 %v1744, %v1743
  %v1746 = vmul.f32 0.5, %v1745
  %v1747 = vsub.f32 1.5, %v1746
  %v1748 = vmul.f32 %v1743, %v1747
  %vm1749 = vweird.f32 %v1720
  %vm1750 = vweird.f32 %v1743
  %vm1751 = vmor %vm1749, %vm1750
  %v1752 = vsel %vm1751, %v1743, %v1748
  %v1753 = vrsqrt.pop %v1721
  %v1754 = vmul.f32 %v1753, %v1721
  %v1755 = vmul.f32 %v1754, %v1753
  %v1756 = vmul.f32 0.5, %v1755
  %v1757 = vsub.f32 1.5, %v1756
  %v1758 = vmul.f32 %v1753, %v1757
  %vm1759 = vweird.f32 %v1721
  %vm1760 = vweird.f32 %v1753
  %vm1761 = vmor %vm1759, %vm1760
  %v1762 = vsel %vm1761, %v1753, %v1758
  %v1763 = vrsqrt.pop %v1722
  %v1764 = vmul.f32 %v1763, %v1722
  %v1765 = vmul.f32 %v1764, %v1763
  %v1766 = vmul.f32 0.5, %v1765
  %v1767 = vsub.f32 1.5, %v1766
  %v1768 = vmul.f32 %v1763, %v1767
  %vm1769 = vweird.f32 %v1722
  %vm1770 = vweird.f32 %v1763
  %vm1771 = vmor %vm1769, %vm1770
  %v1772 = vsel %vm1771, %v1763, %v1768
  %v1773 = vmul.f32 %v1688, %v1732
  %v1774 = vmul.f32 %v1689, %v1742
  %v1775 = vmul.f32 %v1690, %v1752
  %v1776 = vmul.f32 %v1691, %v1762
  %v1777 = vmul.f32 %v1692, %v1772
  %v1778 = vperm.slane %v1660, 0
  %v1779 = vmul.f32 %v1773, %v1778
  %v1780 = vmul.f32 %v1774, %v1778
  %v1781 = vmul.f32 %v1775, %v1778
  %v1782 = vmul.f32 %v1776, %v1778
  %v1783 = vmul.f32 %v1777, %v1778
  %v1784 = vperm.slane %v1661, 0
  %v1785 = vadd.f32 %v1779, %v1784
  %v1786 = vadd.f32 %v1780, %v1784
  %v1787 = vadd.f32 %v1781, %v1784
  %v1788 = vadd.f32 %v1782, %v1784
  %v1789 = vadd.f32 %v1783, %v1784
  %v1790 = vpack.c.bf16 %v1786, %v1785
  %v1791 = vpack.c.bf16 %v1788, %v1787
  %v1792 = vpack.c.bf16 %v1789, %v1789
  %s1793 = scalar_lea.vmem %s6, 16
  %v1794 = vld [vmem:[%s1793] sm:$0xf]
  %v1795 = vld [vmem:[%s1793 + $0x4] sm:$0xf]
  %v1796 = vld [vmem:[%s1793 + $0x8] sm:$0xf]
  %v1797 = vld [vmem:[%s1793 + $0xc] sm:$0xf]
  %v1798 = vperm.slane %v1666, 0
  %v1803 = vunpack.c.l.b16 %v1794
  %v1804 = vunpack.c.l.b16 %v1795
  %v1805 = vunpack.c.l.b16 %v1796
  %v1806 = vunpack.c.l.b16 %v1797
  %v1807 = vpack.c.b16 %v1804, %v1803
  %v1808 = vpack.c.b16 %v1806, %v1805
  %v1812 = vsel %vm232, %v1790, 0
  %v1815 = vsel %vm232, %v1791, 0
  %v1818 = vsel %vm232, %v1792, 0
  %1820 = vmatpush.bf16.msra.mxu0 0
  %1821 = vmatpush.bf16.msra.mxu0 0
  %1822 = vmatpush.bf16.msra.mxu0 0
  %1823 = vmatpush.bf16.msra.mxu0 0
  %1824 = vmatpush.bf16.msra.mxu0 0
  %1825 = vmatpush.bf16.msra.mxu0 0
  %1826 = vmatpush.bf16.msra.mxu0 %v1808
  %1827 = vmatpush.bf16.msra.mxu0 %v1807
  %1828 = vmatmul.bf16.gmra.mxu0 %v1812
  %v1829 = vpop.f32.mrf.mxu0
  %v1830 = vadd.f32 %v1798, %v1829
  %v1831 = vpop.f32.mrf.mxu0
  %v1832 = vadd.f32 %v1798, %v1831
  %1833 = vmatmul.bf16.gmra.mxu0 %v1815
  %v1834 = vpop.f32.mrf.mxu0
  %v1835 = vadd.f32 %v1798, %v1834
  %v1836 = vpop.f32.mrf.mxu0
  %v1837 = vadd.f32 %v1798, %v1836
  %1838 = vmatmul.bf16.gmra.mxu0 %v1818
  %v1839 = vpop.f32.mrf.mxu0
  %v1840 = vadd.f32 %v1798, %v1839
  %v1841 = vpop.f32.mrf.mxu0
  %1842 = vdwg.mxu0
  %v1843 = vpack.c.bf16 %v1832, %v1830
  %v1844 = vpack.c.bf16 %v1837, %v1835
  %v1845 = vpack.c.bf16 %v1840, %v1840
  %v1846 = vmul.f32 %v1830, %v373
  %v1847 = vmul.f32 %v1832, %v373
  %v1848 = vmul.f32 %v1835, %v373
  %v1849 = vmul.f32 %v1837, %v373
  %v1850 = vmul.f32 %v1840, %v373
  %v1851 = vpack.c.bf16 %v1847, %v1846
  %v1852 = vpack.c.bf16 %v1849, %v1848
  %v1853 = vpack.c.bf16 %v1850, %v1850
  %v1854 = vmul.f32 %v1830, %v584
  %v1855 = vmul.f32 %v1832, %v584
  %v1856 = vmul.f32 %v1835, %v584
  %v1857 = vmul.f32 %v1837, %v584
  %v1858 = vmul.f32 %v1840, %v584
  %v1859 = vpack.c.bf16 %v1855, %v1854
  %v1860 = vpack.c.bf16 %v1857, %v1856
  %v1861 = vpack.c.bf16 %v1858, %v1858
  %1865 = vrot.lane.b32.xlu0 %v1843, 96
  %v1866 = vpop.permute.xlu0 %1865
  %1867 = vrot.lane.b32.xlu0 %v1844, 96
  %v1868 = vpop.permute.xlu0 %1867
  %1869 = vrot.lane.b32.xlu0 %v1845, 96
  %v1870 = vpop.permute.xlu0 %1869
  %v1872 = vsel %vm232, %v1851, 0
  %v1875 = vsel %vm232, %v1852, 0
  %v1878 = vsel %vm232, %v1853, 0
  %v1881 = vsel %vm232, %v1866, 0
  %v1884 = vsel %vm232, %v1868, 0
  %v1887 = vsel %vm232, %v1870, 0
  %1889 = vmatpush.bf16.xpose.msra.mxu0 0
  %1890 = vmatpush.bf16.xpose.msra.mxu0 0
  %1891 = vmatpush.bf16.xpose.msra.mxu0 0
  %1892 = vmatpush.bf16.xpose.msra.mxu0 0
  %1893 = vmatpush.bf16.xpose.msra.mxu0 0
  %1894 = vmatpush.bf16.xpose.msra.mxu0 %v1887
  %1895 = vmatpush.bf16.xpose.msra.mxu0 %v1884
  %1896 = vmatpush.bf16.xpose.msra.mxu0 %v1881
  %1897 = vmatmul.bf16.gmra.mxu0 %v1872
  %v1898 = vpop.f32.mrf.mxu0
  %v1899 = vadd.f32 %v362, %v1898
  %v1900 = vpop.f32.mrf.mxu0
  %v1901 = vadd.f32 %v363, %v1900
  %1902 = vmatmul.bf16.gmra.mxu0 %v1875
  %v1903 = vpop.f32.mrf.mxu0
  %v1904 = vadd.f32 %v364, %v1903
  %v1905 = vpop.f32.mrf.mxu0
  %v1906 = vadd.f32 %v365, %v1905
  %1907 = vmatmul.bf16.gmra.mxu0 %v1878
  %v1908 = vpop.f32.mrf.mxu0
  %v1909 = vadd.f32 %v366, %v1908
  %v1910 = vpop.f32.mrf.mxu0
  %1911 = vdwg.mxu0
  %v1912 = vsel %vm644, %v1899, -inf
  %1913 = vmax.xlane.f32.xlu0 %v1912
  %v1914 = vpop.xlane.xlu0 %1913
  %v1915 = vsel %vm644, %v1901, -inf
  %1916 = vmax.xlane.f32.xlu0 %v1915
  %v1917 = vpop.xlane.xlu0 %1916
  %v1918 = vsel %vm644, %v1904, -inf
  %1919 = vmax.xlane.f32.xlu0 %v1918
  %v1920 = vpop.xlane.xlu0 %1919
  %v1921 = vsel %vm644, %v1906, -inf
  %1922 = vmax.xlane.f32.xlu0 %v1921
  %v1923 = vpop.xlane.xlu0 %1922
  %v1924 = vsel %vm644, %v1909, -inf
  %1925 = vmax.xlane.f32.xlu0 %v1924
  %v1926 = vpop.xlane.xlu0 %1925
  %v1927 = vsub.f32 %v1899, %v1914
  %v1928 = vsub.f32 %v1901, %v1917
  %v1929 = vsub.f32 %v1904, %v1920
  %v1930 = vsub.f32 %v1906, %v1923
  %v1931 = vsub.f32 %v1909, %v1926
  %v1932 = vmul.f32 %v1927, 1.442695
  %v1933 = vpow.pop %v1932
  %v1934 = vmul.f32 %v1928, 1.442695
  %v1935 = vpow.pop %v1934
  %v1936 = vmul.f32 %v1929, 1.442695
  %v1937 = vpow.pop %v1936
  %v1938 = vmul.f32 %v1930, 1.442695
  %v1939 = vpow.pop %v1938
  %v1940 = vmul.f32 %v1931, 1.442695
  %v1941 = vpow.pop %v1940
  %v1942 = vsel %vm644, %v1933, 0.0
  %1943 = vadd.xlane.f32.xlu0 %v1942
  %v1944 = vpop.xlane.xlu0 %1943
  %v1945 = vsel %vm644, %v1935, 0.0
  %1946 = vadd.xlane.f32.xlu0 %v1945
  %v1947 = vpop.xlane.xlu0 %1946
  %v1948 = vsel %vm644, %v1937, 0.0
  %1949 = vadd.xlane.f32.xlu0 %v1948
  %v1950 = vpop.xlane.xlu0 %1949
  %v1951 = vsel %vm644, %v1939, 0.0
  %1952 = vadd.xlane.f32.xlu0 %v1951
  %v1953 = vpop.xlane.xlu0 %1952
  %v1954 = vsel %vm644, %v1941, 0.0
  %1955 = vadd.xlane.f32.xlu0 %v1954
  %v1956 = vpop.xlane.xlu0 %1955
  %v1957 = vrcp.pop %v1944
  %v1958 = vrcp.pop %v1947
  %v1959 = vrcp.pop %v1950
  %v1960 = vrcp.pop %v1953
  %v1961 = vrcp.pop %v1956
  %v1962 = vmul.f32 %v1933, %v1957
  %v1963 = vmul.f32 %v1935, %v1958
  %v1964 = vmul.f32 %v1937, %v1959
  %v1965 = vmul.f32 %v1939, %v1960
  %v1966 = vmul.f32 %v1941, %v1961
  %v1967 = vpack.c.bf16 %v1963, %v1962
  %v1968 = vpack.c.bf16 %v1965, %v1964
  %v1969 = vpack.c.bf16 %v1966, %v1966
  %v1970 = vmul.f32 %v1830, %v378
  %v1971 = vmul.f32 %v1832, %v378
  %v1972 = vmul.f32 %v1835, %v378
  %v1973 = vmul.f32 %v1837, %v378
  %v1974 = vmul.f32 %v1840, %v378
  %v1975 = vpack.c.bf16 %v1971, %v1970
  %v1976 = vpack.c.bf16 %v1973, %v1972
  %v1977 = vpack.c.bf16 %v1974, %v1974
  %v1978 = vmul.f32 %v1830, %v713
  %v1979 = vmul.f32 %v1832, %v713
  %v1980 = vmul.f32 %v1835, %v713
  %v1981 = vmul.f32 %v1837, %v713
  %v1982 = vmul.f32 %v1840, %v713
  %v1983 = vpack.c.bf16 %v1979, %v1978
  %v1984 = vpack.c.bf16 %v1981, %v1980
  %v1985 = vpack.c.bf16 %v1982, %v1982
  %v1987 = vsel %vm232, %v1975, 0
  %v1990 = vsel %vm232, %v1976, 0
  %v1993 = vsel %vm232, %v1977, 0
  %1995 = vmatpush.bf16.xpose.msra.mxu0 0
  %1996 = vmatpush.bf16.xpose.msra.mxu0 0
  %1997 = vmatpush.bf16.xpose.msra.mxu0 0
  %1998 = vmatpush.bf16.xpose.msra.mxu0 0
  %1999 = vmatpush.bf16.xpose.msra.mxu0 0
  %2000 = vmatpush.bf16.xpose.msra.mxu0 %v1887
  %2001 = vmatpush.bf16.xpose.msra.mxu0 %v1884
  %2002 = vmatpush.bf16.xpose.msra.mxu0 %v1881
  %2003 = vmatmul.bf16.gmra.mxu0 %v1987
  %v2004 = vpop.f32.mrf.mxu0
  %v2005 = vadd.f32 %v362, %v2004
  %v2006 = vpop.f32.mrf.mxu0
  %v2007 = vadd.f32 %v363, %v2006
  %2008 = vmatmul.bf16.gmra.mxu0 %v1990
  %v2009 = vpop.f32.mrf.mxu0
  %v2010 = vadd.f32 %v364, %v2009
  %v2011 = vpop.f32.mrf.mxu0
  %v2012 = vadd.f32 %v365, %v2011
  %2013 = vmatmul.bf16.gmra.mxu0 %v1993
  %v2014 = vpop.f32.mrf.mxu0
  %v2015 = vadd.f32 %v366, %v2014
  %v2016 = vpop.f32.mrf.mxu0
  %2017 = vdwg.mxu0
  %v2018 = vsel %vm644, %v2005, -inf
  %2019 = vmax.xlane.f32.xlu0 %v2018
  %v2020 = vpop.xlane.xlu0 %2019
  %v2021 = vsel %vm644, %v2007, -inf
  %2022 = vmax.xlane.f32.xlu0 %v2021
  %v2023 = vpop.xlane.xlu0 %2022
  %v2024 = vsel %vm644, %v2010, -inf
  %2025 = vmax.xlane.f32.xlu0 %v2024
  %v2026 = vpop.xlane.xlu0 %2025
  %v2027 = vsel %vm644, %v2012, -inf
  %2028 = vmax.xlane.f32.xlu0 %v2027
  %v2029 = vpop.xlane.xlu0 %2028
  %v2030 = vsel %vm644, %v2015, -inf
  %2031 = vmax.xlane.f32.xlu0 %v2030
  %v2032 = vpop.xlane.xlu0 %2031
  %v2033 = vsub.f32 %v2005, %v2020
  %v2034 = vsub.f32 %v2007, %v2023
  %v2035 = vsub.f32 %v2010, %v2026
  %v2036 = vsub.f32 %v2012, %v2029
  %v2037 = vsub.f32 %v2015, %v2032
  %v2038 = vmul.f32 %v2033, 1.442695
  %v2039 = vpow.pop %v2038
  %v2040 = vmul.f32 %v2034, 1.442695
  %v2041 = vpow.pop %v2040
  %v2042 = vmul.f32 %v2035, 1.442695
  %v2043 = vpow.pop %v2042
  %v2044 = vmul.f32 %v2036, 1.442695
  %v2045 = vpow.pop %v2044
  %v2046 = vmul.f32 %v2037, 1.442695
  %v2047 = vpow.pop %v2046
  %v2048 = vsel %vm644, %v2039, 0.0
  %2049 = vadd.xlane.f32.xlu0 %v2048
  %v2050 = vpop.xlane.xlu0 %2049
  %v2051 = vsel %vm644, %v2041, 0.0
  %2052 = vadd.xlane.f32.xlu0 %v2051
  %v2053 = vpop.xlane.xlu0 %2052
  %v2054 = vsel %vm644, %v2043, 0.0
  %2055 = vadd.xlane.f32.xlu0 %v2054
  %v2056 = vpop.xlane.xlu0 %2055
  %v2057 = vsel %vm644, %v2045, 0.0
  %2058 = vadd.xlane.f32.xlu0 %v2057
  %v2059 = vpop.xlane.xlu0 %2058
  %v2060 = vsel %vm644, %v2047, 0.0
  %2061 = vadd.xlane.f32.xlu0 %v2060
  %v2062 = vpop.xlane.xlu0 %2061
  %v2063 = vrcp.pop %v2050
  %v2064 = vrcp.pop %v2053
  %v2065 = vrcp.pop %v2056
  %v2066 = vrcp.pop %v2059
  %v2067 = vrcp.pop %v2062
  %v2068 = vmul.f32 %v2039, %v2063
  %v2069 = vmul.f32 %v2041, %v2064
  %v2070 = vmul.f32 %v2043, %v2065
  %v2071 = vmul.f32 %v2045, %v2066
  %v2072 = vmul.f32 %v2047, %v2067
  %v2073 = vpack.c.bf16 %v2069, %v2068
  %v2074 = vpack.c.bf16 %v2071, %v2070
  %v2075 = vpack.c.bf16 %v2072, %v2072
  %2079 = vrot.lane.b32.xlu0 %v1983, 64
  %v2080 = vpop.permute.xlu0 %2079
  %2081 = vrot.lane.b32.xlu0 %v1984, 64
  %v2082 = vpop.permute.xlu0 %2081
  %2083 = vrot.lane.b32.xlu0 %v1985, 64
  %v2084 = vpop.permute.xlu0 %2083
  %v2088 = vsel %vm644, %v2073, 0
  %v2091 = vsel %vm644, %v2074, 0
  %v2094 = vsel %vm644, %v2075, 0
  %v2097 = vsel %vm833, %v2084, 0
  %2099 = vmatpush.bf16.msra.mxu0 0
  %2100 = vmatpush.bf16.msra.mxu0 0
  %2101 = vmatpush.bf16.msra.mxu0 0
  %2102 = vmatpush.bf16.msra.mxu0 0
  %2103 = vmatpush.bf16.msra.mxu0 0
  %2104 = vmatpush.bf16.msra.mxu0 %v2097
  %2105 = vmatpush.bf16.msra.mxu0 %v2082
  %2106 = vmatpush.bf16.msra.mxu0 %v2080
  %2107 = vmatmul.bf16.gmra.mxu0 %v2088
  %v2108 = vpop.f32.mrf.mxu0
  %v2109 = vadd.f32 0.0, %v2108
  %v2110 = vpop.f32.mrf.mxu0
  %v2111 = vadd.f32 0.0, %v2110
  %2112 = vmatmul.bf16.gmra.mxu0 %v2091
  %v2113 = vpop.f32.mrf.mxu0
  %v2114 = vadd.f32 0.0, %v2113
  %v2115 = vpop.f32.mrf.mxu0
  %v2116 = vadd.f32 0.0, %v2115
  %2117 = vmatmul.bf16.gmra.mxu0 %v2094
  %v2118 = vpop.f32.mrf.mxu0
  %v2119 = vadd.f32 0.0, %v2118
  %v2120 = vpop.f32.mrf.mxu0
  %2121 = vdwg.mxu0
  %2125 = vrot.lane.b32.xlu0 %v1859, 64
  %v2126 = vpop.permute.xlu0 %2125
  %2127 = vrot.lane.b32.xlu0 %v1860, 64
  %v2128 = vpop.permute.xlu0 %2127
  %2129 = vrot.lane.b32.xlu0 %v1861, 64
  %v2130 = vpop.permute.xlu0 %2129
  %v2134 = vsel %vm644, %v1967, 0
  %v2137 = vsel %vm644, %v1968, 0
  %v2140 = vsel %vm644, %v1969, 0
  %v2143 = vsel %vm833, %v2130, 0
  %2145 = vmatpush.bf16.msra.mxu0 0
  %2146 = vmatpush.bf16.msra.mxu0 0
  %2147 = vmatpush.bf16.msra.mxu0 0
  %2148 = vmatpush.bf16.msra.mxu0 0
  %2149 = vmatpush.bf16.msra.mxu0 0
  %2150 = vmatpush.bf16.msra.mxu0 %v2143
  %2151 = vmatpush.bf16.msra.mxu0 %v2128
  %2152 = vmatpush.bf16.msra.mxu0 %v2126
  %2153 = vmatmul.bf16.gmra.mxu0 %v2134
  %v2154 = vpop.f32.mrf.mxu0
  %v2155 = vadd.f32 %v2109, %v2154
  %v2156 = vpop.f32.mrf.mxu0
  %v2157 = vadd.f32 %v2111, %v2156
  %2158 = vmatmul.bf16.gmra.mxu0 %v2137
  %v2159 = vpop.f32.mrf.mxu0
  %v2160 = vadd.f32 %v2114, %v2159
  %v2161 = vpop.f32.mrf.mxu0
  %v2162 = vadd.f32 %v2116, %v2161
  %2163 = vmatmul.bf16.gmra.mxu0 %v2140
  %v2164 = vpop.f32.mrf.mxu0
  %v2165 = vadd.f32 %v2119, %v2164
  %v2166 = vpop.f32.mrf.mxu0
  %2167 = vdwg.mxu0
  %v2168 = vmul.f32 %v1830, %v383
  %v2169 = vmul.f32 %v1832, %v383
  %v2170 = vmul.f32 %v1835, %v383
  %v2171 = vmul.f32 %v1837, %v383
  %v2172 = vmul.f32 %v1840, %v383
  %v2173 = vpack.c.bf16 %v2169, %v2168
  %v2174 = vpack.c.bf16 %v2171, %v2170
  %v2175 = vpack.c.bf16 %v2172, %v2172
  %v2176 = vmul.f32 %v1830, %v916
  %v2177 = vmul.f32 %v1832, %v916
  %v2178 = vmul.f32 %v1835, %v916
  %v2179 = vmul.f32 %v1837, %v916
  %v2180 = vmul.f32 %v1840, %v916
  %v2181 = vpack.c.bf16 %v2177, %v2176
  %v2182 = vpack.c.bf16 %v2179, %v2178
  %v2183 = vpack.c.bf16 %v2180, %v2180
  %v2185 = vsel %vm232, %v2173, 0
  %v2188 = vsel %vm232, %v2174, 0
  %v2191 = vsel %vm232, %v2175, 0
  %2193 = vmatpush.bf16.xpose.msra.mxu0 0
  %2194 = vmatpush.bf16.xpose.msra.mxu0 0
  %2195 = vmatpush.bf16.xpose.msra.mxu0 0
  %2196 = vmatpush.bf16.xpose.msra.mxu0 0
  %2197 = vmatpush.bf16.xpose.msra.mxu0 0
  %2198 = vmatpush.bf16.xpose.msra.mxu0 %v1887
  %2199 = vmatpush.bf16.xpose.msra.mxu0 %v1884
  %2200 = vmatpush.bf16.xpose.msra.mxu0 %v1881
  %2201 = vmatmul.bf16.gmra.mxu0 %v2185
  %v2202 = vpop.f32.mrf.mxu0
  %v2203 = vadd.f32 %v362, %v2202
  %v2204 = vpop.f32.mrf.mxu0
  %v2205 = vadd.f32 %v363, %v2204
  %2206 = vmatmul.bf16.gmra.mxu0 %v2188
  %v2207 = vpop.f32.mrf.mxu0
  %v2208 = vadd.f32 %v364, %v2207
  %v2209 = vpop.f32.mrf.mxu0
  %v2210 = vadd.f32 %v365, %v2209
  %2211 = vmatmul.bf16.gmra.mxu0 %v2191
  %v2212 = vpop.f32.mrf.mxu0
  %v2213 = vadd.f32 %v366, %v2212
  %v2214 = vpop.f32.mrf.mxu0
  %2215 = vdwg.mxu0
  %v2216 = vsel %vm644, %v2203, -inf
  %2217 = vmax.xlane.f32.xlu0 %v2216
  %v2218 = vpop.xlane.xlu0 %2217
  %v2219 = vsel %vm644, %v2205, -inf
  %2220 = vmax.xlane.f32.xlu0 %v2219
  %v2221 = vpop.xlane.xlu0 %2220
  %v2222 = vsel %vm644, %v2208, -inf
  %2223 = vmax.xlane.f32.xlu0 %v2222
  %v2224 = vpop.xlane.xlu0 %2223
  %v2225 = vsel %vm644, %v2210, -inf
  %2226 = vmax.xlane.f32.xlu0 %v2225
  %v2227 = vpop.xlane.xlu0 %2226
  %v2228 = vsel %vm644, %v2213, -inf
  %2229 = vmax.xlane.f32.xlu0 %v2228
  %v2230 = vpop.xlane.xlu0 %2229
  %v2231 = vsub.f32 %v2203, %v2218
  %v2232 = vsub.f32 %v2205, %v2221
  %v2233 = vsub.f32 %v2208, %v2224
  %v2234 = vsub.f32 %v2210, %v2227
  %v2235 = vsub.f32 %v2213, %v2230
  %v2236 = vmul.f32 %v2231, 1.442695
  %v2237 = vpow.pop %v2236
  %v2238 = vmul.f32 %v2232, 1.442695
  %v2239 = vpow.pop %v2238
  %v2240 = vmul.f32 %v2233, 1.442695
  %v2241 = vpow.pop %v2240
  %v2242 = vmul.f32 %v2234, 1.442695
  %v2243 = vpow.pop %v2242
  %v2244 = vmul.f32 %v2235, 1.442695
  %v2245 = vpow.pop %v2244
  %v2246 = vsel %vm644, %v2237, 0.0
  %2247 = vadd.xlane.f32.xlu0 %v2246
  %v2248 = vpop.xlane.xlu0 %2247
  %v2249 = vsel %vm644, %v2239, 0.0
  %2250 = vadd.xlane.f32.xlu0 %v2249
  %v2251 = vpop.xlane.xlu0 %2250
  %v2252 = vsel %vm644, %v2241, 0.0
  %2253 = vadd.xlane.f32.xlu0 %v2252
  %v2254 = vpop.xlane.xlu0 %2253
  %v2255 = vsel %vm644, %v2243, 0.0
  %2256 = vadd.xlane.f32.xlu0 %v2255
  %v2257 = vpop.xlane.xlu0 %2256
  %v2258 = vsel %vm644, %v2245, 0.0
  %2259 = vadd.xlane.f32.xlu0 %v2258
  %v2260 = vpop.xlane.xlu0 %2259
  %v2261 = vrcp.pop %v2248
  %v2262 = vrcp.pop %v2251
  %v2263 = vrcp.pop %v2254
  %v2264 = vrcp.pop %v2257
  %v2265 = vrcp.pop %v2260
  %v2266 = vmul.f32 %v2237, %v2261
  %v2267 = vmul.f32 %v2239, %v2262
  %v2268 = vmul.f32 %v2241, %v2263
  %v2269 = vmul.f32 %v2243, %v2264
  %v2270 = vmul.f32 %v2245, %v2265
  %v2271 = vpack.c.bf16 %v2267, %v2266
  %v2272 = vpack.c.bf16 %v2269, %v2268
  %v2273 = vpack.c.bf16 %v2270, %v2270
  %2277 = vrot.lane.b32.xlu0 %v2181, 64
  %v2278 = vpop.permute.xlu0 %2277
  %2279 = vrot.lane.b32.xlu0 %v2182, 64
  %v2280 = vpop.permute.xlu0 %2279
  %2281 = vrot.lane.b32.xlu0 %v2183, 64
  %v2282 = vpop.permute.xlu0 %2281
  %v2286 = vsel %vm644, %v2271, 0
  %v2289 = vsel %vm644, %v2272, 0
  %v2292 = vsel %vm644, %v2273, 0
  %v2295 = vsel %vm833, %v2282, 0
  %2297 = vmatpush.bf16.msra.mxu0 0
  %2298 = vmatpush.bf16.msra.mxu0 0
  %2299 = vmatpush.bf16.msra.mxu0 0
  %2300 = vmatpush.bf16.msra.mxu0 0
  %2301 = vmatpush.bf16.msra.mxu0 0
  %2302 = vmatpush.bf16.msra.mxu0 %v2295
  %2303 = vmatpush.bf16.msra.mxu0 %v2280
  %2304 = vmatpush.bf16.msra.mxu0 %v2278
  %2305 = vmatmul.bf16.gmra.mxu0 %v2286
  %v2306 = vpop.f32.mrf.mxu0
  %v2307 = vadd.f32 0.0, %v2306
  %v2308 = vpop.f32.mrf.mxu0
  %v2309 = vadd.f32 0.0, %v2308
  %2310 = vmatmul.bf16.gmra.mxu0 %v2289
  %v2311 = vpop.f32.mrf.mxu0
  %v2312 = vadd.f32 0.0, %v2311
  %v2313 = vpop.f32.mrf.mxu0
  %v2314 = vadd.f32 0.0, %v2313
  %2315 = vmatmul.bf16.gmra.mxu0 %v2292
  %v2316 = vpop.f32.mrf.mxu0
  %v2317 = vadd.f32 0.0, %v2316
  %v2318 = vpop.f32.mrf.mxu0
  %2319 = vdwg.mxu0
  %v2320 = vadd.f32 %v2155, %v2307
  %v2321 = vadd.f32 %v2157, %v2309
  %v2322 = vadd.f32 %v2160, %v2312
  %v2323 = vadd.f32 %v2162, %v2314
  %v2324 = vadd.f32 %v2165, %v2317
  %v2325 = vmul.f32 %v1830, %v388
  %v2326 = vmul.f32 %v1832, %v388
  %v2327 = vmul.f32 %v1835, %v388
  %v2328 = vmul.f32 %v1837, %v388
  %v2329 = vmul.f32 %v1840, %v388
  %v2330 = vpack.c.bf16 %v2326, %v2325
  %v2331 = vpack.c.bf16 %v2328, %v2327
  %v2332 = vpack.c.bf16 %v2329, %v2329
  %v2333 = vmul.f32 %v1830, %v1077
  %v2334 = vmul.f32 %v1832, %v1077
  %v2335 = vmul.f32 %v1835, %v1077
  %v2336 = vmul.f32 %v1837, %v1077
  %v2337 = vmul.f32 %v1840, %v1077
  %v2338 = vpack.c.bf16 %v2334, %v2333
  %v2339 = vpack.c.bf16 %v2336, %v2335
  %v2340 = vpack.c.bf16 %v2337, %v2337
  %v2342 = vsel %vm232, %v2330, 0
  %v2345 = vsel %vm232, %v2331, 0
  %v2348 = vsel %vm232, %v2332, 0
  %2350 = vmatpush.bf16.xpose.msra.mxu0 0
  %2351 = vmatpush.bf16.xpose.msra.mxu0 0
  %2352 = vmatpush.bf16.xpose.msra.mxu0 0
  %2353 = vmatpush.bf16.xpose.msra.mxu0 0
  %2354 = vmatpush.bf16.xpose.msra.mxu0 0
  %2355 = vmatpush.bf16.xpose.msra.mxu0 %v1887
  %2356 = vmatpush.bf16.xpose.msra.mxu0 %v1884
  %2357 = vmatpush.bf16.xpose.msra.mxu0 %v1881
  %2358 = vmatmul.bf16.gmra.mxu0 %v2342
  %v2359 = vpop.f32.mrf.mxu0
  %v2360 = vadd.f32 %v362, %v2359
  %v2361 = vpop.f32.mrf.mxu0
  %v2362 = vadd.f32 %v363, %v2361
  %2363 = vmatmul.bf16.gmra.mxu0 %v2345
  %v2364 = vpop.f32.mrf.mxu0
  %v2365 = vadd.f32 %v364, %v2364
  %v2366 = vpop.f32.mrf.mxu0
  %v2367 = vadd.f32 %v365, %v2366
  %2368 = vmatmul.bf16.gmra.mxu0 %v2348
  %v2369 = vpop.f32.mrf.mxu0
  %v2370 = vadd.f32 %v366, %v2369
  %v2371 = vpop.f32.mrf.mxu0
  %2372 = vdwg.mxu0
  %v2373 = vsel %vm644, %v2360, -inf
  %2374 = vmax.xlane.f32.xlu0 %v2373
  %v2375 = vpop.xlane.xlu0 %2374
  %v2376 = vsel %vm644, %v2362, -inf
  %2377 = vmax.xlane.f32.xlu0 %v2376
  %v2378 = vpop.xlane.xlu0 %2377
  %v2379 = vsel %vm644, %v2365, -inf
  %2380 = vmax.xlane.f32.xlu0 %v2379
  %v2381 = vpop.xlane.xlu0 %2380
  %v2382 = vsel %vm644, %v2367, -inf
  %2383 = vmax.xlane.f32.xlu0 %v2382
  %v2384 = vpop.xlane.xlu0 %2383
  %v2385 = vsel %vm644, %v2370, -inf
  %2386 = vmax.xlane.f32.xlu0 %v2385
  %v2387 = vpop.xlane.xlu0 %2386
  %v2388 = vsub.f32 %v2360, %v2375
  %v2389 = vsub.f32 %v2362, %v2378
  %v2390 = vsub.f32 %v2365, %v2381
  %v2391 = vsub.f32 %v2367, %v2384
  %v2392 = vsub.f32 %v2370, %v2387
  %v2393 = vmul.f32 %v2388, 1.442695
  %v2394 = vpow.pop %v2393
  %v2395 = vmul.f32 %v2389, 1.442695
  %v2396 = vpow.pop %v2395
  %v2397 = vmul.f32 %v2390, 1.442695
  %v2398 = vpow.pop %v2397
  %v2399 = vmul.f32 %v2391, 1.442695
  %v2400 = vpow.pop %v2399
  %v2401 = vmul.f32 %v2392, 1.442695
  %v2402 = vpow.pop %v2401
  %v2403 = vsel %vm644, %v2394, 0.0
  %2404 = vadd.xlane.f32.xlu0 %v2403
  %v2405 = vpop.xlane.xlu0 %2404
  %v2406 = vsel %vm644, %v2396, 0.0
  %2407 = vadd.xlane.f32.xlu0 %v2406
  %v2408 = vpop.xlane.xlu0 %2407
  %v2409 = vsel %vm644, %v2398, 0.0
  %2410 = vadd.xlane.f32.xlu0 %v2409
  %v2411 = vpop.xlane.xlu0 %2410
  %v2412 = vsel %vm644, %v2400, 0.0
  %2413 = vadd.xlane.f32.xlu0 %v2412
  %v2414 = vpop.xlane.xlu0 %2413
  %v2415 = vsel %vm644, %v2402, 0.0
  %2416 = vadd.xlane.f32.xlu0 %v2415
  %v2417 = vpop.xlane.xlu0 %2416
  %v2418 = vrcp.pop %v2405
  %v2419 = vrcp.pop %v2408
  %v2420 = vrcp.pop %v2411
  %v2421 = vrcp.pop %v2414
  %v2422 = vrcp.pop %v2417
  %v2423 = vmul.f32 %v2394, %v2418
  %v2424 = vmul.f32 %v2396, %v2419
  %v2425 = vmul.f32 %v2398, %v2420
  %v2426 = vmul.f32 %v2400, %v2421
  %v2427 = vmul.f32 %v2402, %v2422
  %v2428 = vpack.c.bf16 %v2424, %v2423
  %v2429 = vpack.c.bf16 %v2426, %v2425
  %v2430 = vpack.c.bf16 %v2427, %v2427
  %2434 = vrot.lane.b32.xlu0 %v2338, 64
  %v2435 = vpop.permute.xlu0 %2434
  %2436 = vrot.lane.b32.xlu0 %v2339, 64
  %v2437 = vpop.permute.xlu0 %2436
  %2438 = vrot.lane.b32.xlu0 %v2340, 64
  %v2439 = vpop.permute.xlu0 %2438
  %v2443 = vsel %vm644, %v2428, 0
  %v2446 = vsel %vm644, %v2429, 0
  %v2449 = vsel %vm644, %v2430, 0
  %v2452 = vsel %vm833, %v2439, 0
  %2454 = vmatpush.bf16.msra.mxu0 0
  %2455 = vmatpush.bf16.msra.mxu0 0
  %2456 = vmatpush.bf16.msra.mxu0 0
  %2457 = vmatpush.bf16.msra.mxu0 0
  %2458 = vmatpush.bf16.msra.mxu0 0
  %2459 = vmatpush.bf16.msra.mxu0 %v2452
  %2460 = vmatpush.bf16.msra.mxu0 %v2437
  %2461 = vmatpush.bf16.msra.mxu0 %v2435
  %2462 = vmatmul.bf16.gmra.mxu0 %v2443
  %v2463 = vpop.f32.mrf.mxu0
  %v2464 = vadd.f32 0.0, %v2463
  %v2465 = vpop.f32.mrf.mxu0
  %v2466 = vadd.f32 0.0, %v2465
  %2467 = vmatmul.bf16.gmra.mxu0 %v2446
  %v2468 = vpop.f32.mrf.mxu0
  %v2469 = vadd.f32 0.0, %v2468
  %v2470 = vpop.f32.mrf.mxu0
  %v2471 = vadd.f32 0.0, %v2470
  %2472 = vmatmul.bf16.gmra.mxu0 %v2449
  %v2473 = vpop.f32.mrf.mxu0
  %v2474 = vadd.f32 0.0, %v2473
  %v2475 = vpop.f32.mrf.mxu0
  %2476 = vdwg.mxu0
  %v2477 = vadd.f32 %v2320, %v2464
  %v2478 = vadd.f32 %v2321, %v2466
  %v2479 = vadd.f32 %v2322, %v2469
  %v2480 = vadd.f32 %v2323, %v2471
  %v2481 = vadd.f32 %v2324, %v2474
  %v2482 = vpack.c.bf16 %v2478, %v2477
  %v2483 = vpack.c.bf16 %v2480, %v2479
  %v2484 = vpack.c.bf16 %v2481, %v2481
  %s2485 = scalar_lea.vmem %s7, 16
  %v2486 = vld [vmem:[%s2485] sm:$0xf]
  %v2487 = vld [vmem:[%s2485 + $0x4] sm:$0xf]
  %v2488 = vld [vmem:[%s2485 + $0x8] sm:$0xf]
  %v2489 = vld [vmem:[%s2485 + $0xc] sm:$0xf]
  %v2490 = vperm.slane %v1662, 0
  %v2495 = vunpack.c.l.b16 %v2486
  %v2496 = vunpack.c.l.b16 %v2487
  %v2497 = vunpack.c.l.b16 %v2488
  %v2498 = vunpack.c.l.b16 %v2489
  %v2499 = vpack.c.b16 %v2496, %v2495
  %v2500 = vpack.c.b16 %v2498, %v2497
  %v2504 = vsel %vm232, %v2482, 0
  %v2507 = vsel %vm232, %v2483, 0
  %v2510 = vsel %vm232, %v2484, 0
  %2512 = vmatpush.bf16.msra.mxu0 0
  %2513 = vmatpush.bf16.msra.mxu0 0
  %2514 = vmatpush.bf16.msra.mxu0 0
  %2515 = vmatpush.bf16.msra.mxu0 0
  %2516 = vmatpush.bf16.msra.mxu0 0
  %2517 = vmatpush.bf16.msra.mxu0 0
  %2518 = vmatpush.bf16.msra.mxu0 %v2500
  %2519 = vmatpush.bf16.msra.mxu0 %v2499
  %2520 = vmatmul.bf16.gmra.mxu0 %v2504
  %v2521 = vpop.f32.mrf.mxu0
  %v2522 = vadd.f32 %v2490, %v2521
  %v2523 = vpop.f32.mrf.mxu0
  %v2524 = vadd.f32 %v2490, %v2523
  %2525 = vmatmul.bf16.gmra.mxu0 %v2507
  %v2526 = vpop.f32.mrf.mxu0
  %v2527 = vadd.f32 %v2490, %v2526
  %v2528 = vpop.f32.mrf.mxu0
  %v2529 = vadd.f32 %v2490, %v2528
  %2530 = vmatmul.bf16.gmra.mxu0 %v2510
  %v2531 = vpop.f32.mrf.mxu0
  %v2532 = vadd.f32 %v2490, %v2531
  %v2533 = vpop.f32.mrf.mxu0
  %2534 = vdwg.mxu0
  %v2535 = vadd.f32 %v1655, %v2522
  %v2536 = vadd.f32 %v1656, %v2524
  %v2537 = vadd.f32 %v1657, %v2527
  %v2538 = vadd.f32 %v1658, %v2529
  %v2539 = vadd.f32 %v1659, %v2532
  %v2540 = vsel %vm232, %v2535, 0.0
  %2541 = vadd.xlane.f32.xlu0 %v2540
  %v2542 = vpop.xlane.xlu0 %2541
  %v2543 = vsel %vm232, %v2536, 0.0
  %2544 = vadd.xlane.f32.xlu0 %v2543
  %v2545 = vpop.xlane.xlu0 %2544
  %v2546 = vsel %vm232, %v2537, 0.0
  %2547 = vadd.xlane.f32.xlu0 %v2546
  %v2548 = vpop.xlane.xlu0 %2547
  %v2549 = vsel %vm232, %v2538, 0.0
  %2550 = vadd.xlane.f32.xlu0 %v2549
  %v2551 = vpop.xlane.xlu0 %2550
  %v2552 = vsel %vm232, %v2539, 0.0
  %2553 = vadd.xlane.f32.xlu0 %v2552
  %v2554 = vpop.xlane.xlu0 %2553
  %v2555 = vmul.f32 %v2542, %v254
  %v2556 = vmul.f32 %v2545, %v254
  %v2557 = vmul.f32 %v2548, %v254
  %v2558 = vmul.f32 %v2551, %v254
  %v2559 = vmul.f32 %v2554, %v254
  %v2560 = vsub.f32 %v2535, %v2555
  %v2561 = vsub.f32 %v2536, %v2556
  %v2562 = vsub.f32 %v2537, %v2557
  %v2563 = vsub.f32 %v2538, %v2558
  %v2564 = vsub.f32 %v2539, %v2559
  %v2565 = vmul.f32 %v2560, %v2560
  %v2566 = vmul.f32 %v2561, %v2561
  %v2567 = vmul.f32 %v2562, %v2562
  %v2568 = vmul.f32 %v2563, %v2563
  %v2569 = vmul.f32 %v2564, %v2564
  %v2570 = vsel %vm232, %v2565, 0.0
  %2571 = vadd.xlane.f32.xlu0 %v2570
  %v2572 = vpop.xlane.xlu0 %2571
  %v2573 = vsel %vm232, %v2566, 0.0
  %2574 = vadd.xlane.f32.xlu0 %v2573
  %v2575 = vpop.xlane.xlu0 %2574
  %v2576 = vsel %vm232, %v2567, 0.0
  %2577 = vadd.xlane.f32.xlu0 %v2576
  %v2578 = vpop.xlane.xlu0 %2577
  %v2579 = vsel %vm232, %v2568, 0.0
  %2580 = vadd.xlane.f32.xlu0 %v2579
  %v2581 = vpop.xlane.xlu0 %2580
  %v2582 = vsel %vm232, %v2569, 0.0
  %2583 = vadd.xlane.f32.xlu0 %v2582
  %v2584 = vpop.xlane.xlu0 %2583
  %v2585 = vmul.f32 %v2572, %v254
  %v2586 = vmul.f32 %v2575, %v254
  %v2587 = vmul.f32 %v2578, %v254
  %v2588 = vmul.f32 %v2581, %v254
  %v2589 = vmul.f32 %v2584, %v254
  %v2590 = vadd.f32 %v2585, 1e-05
  %v2591 = vadd.f32 %v2586, 1e-05
  %v2592 = vadd.f32 %v2587, 1e-05
  %v2593 = vadd.f32 %v2588, 1e-05
  %v2594 = vadd.f32 %v2589, 1e-05
  %v2595 = vrsqrt.pop %v2590
  %v2596 = vmul.f32 %v2595, %v2590
  %v2597 = vmul.f32 %v2596, %v2595
  %v2598 = vmul.f32 0.5, %v2597
  %v2599 = vsub.f32 1.5, %v2598
  %v2600 = vmul.f32 %v2595, %v2599
  %vm2601 = vweird.f32 %v2590
  %vm2602 = vweird.f32 %v2595
  %vm2603 = vmor %vm2601, %vm2602
  %v2604 = vsel %vm2603, %v2595, %v2600
  %v2605 = vrsqrt.pop %v2591
  %v2606 = vmul.f32 %v2605, %v2591
  %v2607 = vmul.f32 %v2606, %v2605
  %v2608 = vmul.f32 0.5, %v2607
  %v2609 = vsub.f32 1.5, %v2608
  %v2610 = vmul.f32 %v2605, %v2609
  %vm2611 = vweird.f32 %v2591
  %vm2612 = vweird.f32 %v2605
  %vm2613 = vmor %vm2611, %vm2612
  %v2614 = vsel %vm2613, %v2605, %v2610
  %v2615 = vrsqrt.pop %v2592
  %v2616 = vmul.f32 %v2615, %v2592
  %v2617 = vmul.f32 %v2616, %v2615
  %v2618 = vmul.f32 0.5, %v2617
  %v2619 = vsub.f32 1.5, %v2618
  %v2620 = vmul.f32 %v2615, %v2619
  %vm2621 = vweird.f32 %v2592
  %vm2622 = vweird.f32 %v2615
  %vm2623 = vmor %vm2621, %vm2622
  %v2624 = vsel %vm2623, %v2615, %v2620
  %v2625 = vrsqrt.pop %v2593
  %v2626 = vmul.f32 %v2625, %v2593
  %v2627 = vmul.f32 %v2626, %v2625
  %v2628 = vmul.f32 0.5, %v2627
  %v2629 = vsub.f32 1.5, %v2628
  %v2630 = vmul.f32 %v2625, %v2629
  %vm2631 = vweird.f32 %v2593
  %vm2632 = vweird.f32 %v2625
  %vm2633 = vmor %vm2631, %vm2632
  %v2634 = vsel %vm2633, %v2625, %v2630
  %v2635 = vrsqrt.pop %v2594
  %v2636 = vmul.f32 %v2635, %v2594
  %v2637 = vmul.f32 %v2636, %v2635
  %v2638 = vmul.f32 0.5, %v2637
  %v2639 = vsub.f32 1.5, %v2638
  %v2640 = vmul.f32 %v2635, %v2639
  %vm2641 = vweird.f32 %v2594
  %vm2642 = vweird.f32 %v2635
  %vm2643 = vmor %vm2641, %vm2642
  %v2644 = vsel %vm2643, %v2635, %v2640
  %v2645 = vmul.f32 %v2560, %v2604
  %v2646 = vmul.f32 %v2561, %v2614
  %v2647 = vmul.f32 %v2562, %v2624
  %v2648 = vmul.f32 %v2563, %v2634
  %v2649 = vmul.f32 %v2564, %v2644
  %v2650 = vperm.slane %v1663, 0
  %v2651 = vmul.f32 %v2645, %v2650
  %v2652 = vmul.f32 %v2646, %v2650
  %v2653 = vmul.f32 %v2647, %v2650
  %v2654 = vmul.f32 %v2648, %v2650
  %v2655 = vmul.f32 %v2649, %v2650
  %v2656 = vperm.slane %v1664, 0
  %v2657 = vadd.f32 %v2651, %v2656
  %v2658 = vadd.f32 %v2652, %v2656
  %v2659 = vadd.f32 %v2653, %v2656
  %v2660 = vadd.f32 %v2654, %v2656
  %v2661 = vadd.f32 %v2655, %v2656
  %v2662 = vpack.c.bf16 %v2658, %v2657
  %v2663 = vpack.c.bf16 %v2660, %v2659
  %v2664 = vpack.c.bf16 %v2661, %v2661
  %s2665 = scalar_lea.vmem %s8, 16
  %v2666 = vld [vmem:[%s2665] sm:$0xf]
  %v2667 = vld [vmem:[%s2665 + $0x4] sm:$0xf]
  %v2668 = vld [vmem:[%s2665 + $0x8] sm:$0xf]
  %v2669 = vld [vmem:[%s2665 + $0xc] sm:$0xf]
  %v2670 = vperm.slane %v1667, 0
  %v2675 = vunpack.c.l.b16 %v2666
  %v2676 = vunpack.c.l.b16 %v2667
  %v2677 = vunpack.c.l.b16 %v2668
  %v2678 = vunpack.c.l.b16 %v2669
  %v2679 = vpack.c.b16 %v2676, %v2675
  %v2680 = vpack.c.b16 %v2678, %v2677
  %v2684 = vsel %vm232, %v2662, 0
  %v2687 = vsel %vm232, %v2663, 0
  %v2690 = vsel %vm232, %v2664, 0
  %2692 = vmatpush.bf16.msra.mxu0 0
  %2693 = vmatpush.bf16.msra.mxu0 0
  %2694 = vmatpush.bf16.msra.mxu0 0
  %2695 = vmatpush.bf16.msra.mxu0 0
  %2696 = vmatpush.bf16.msra.mxu0 0
  %2697 = vmatpush.bf16.msra.mxu0 0
  %2698 = vmatpush.bf16.msra.mxu0 %v2680
  %2699 = vmatpush.bf16.msra.mxu0 %v2679
  %2700 = vmatmul.bf16.gmra.mxu0 %v2684
  %v2701 = vpop.f32.mrf.mxu0
  %v2702 = vadd.f32 %v2670, %v2701
  %v2703 = vpop.f32.mrf.mxu0
  %v2704 = vadd.f32 %v2670, %v2703
  %2705 = vmatmul.bf16.gmra.mxu0 %v2687
  %v2706 = vpop.f32.mrf.mxu0
  %v2707 = vadd.f32 %v2670, %v2706
  %v2708 = vpop.f32.mrf.mxu0
  %v2709 = vadd.f32 %v2670, %v2708
  %2710 = vmatmul.bf16.gmra.mxu0 %v2690
  %v2711 = vpop.f32.mrf.mxu0
  %v2712 = vadd.f32 %v2670, %v2711
  %v2713 = vpop.f32.mrf.mxu0
  %2714 = vdwg.mxu0
  %v2715 = vmul.f32 %v2702, 1.702
  %v2716 = vmul.f32 %v2704, 1.702
  %v2717 = vmul.f32 %v2707, 1.702
  %v2718 = vmul.f32 %v2709, 1.702
  %v2719 = vmul.f32 %v2712, 1.702
  %v2720 = vxor.u32 %v2715, 2147483648
  %v2721 = vxor.u32 %v2716, 2147483648
  %v2722 = vxor.u32 %v2717, 2147483648
  %v2723 = vxor.u32 %v2718, 2147483648
  %v2724 = vxor.u32 %v2719, 2147483648
  %v2725 = vmul.f32 %v2720, 1.442695
  %v2726 = vpow.pop %v2725
  %v2727 = vmul.f32 %v2721, 1.442695
  %v2728 = vpow.pop %v2727
  %v2729 = vmul.f32 %v2722, 1.442695
  %v2730 = vpow.pop %v2729
  %v2731 = vmul.f32 %v2723, 1.442695
  %v2732 = vpow.pop %v2731
  %v2733 = vmul.f32 %v2724, 1.442695
  %v2734 = vpow.pop %v2733
  %v2735 = vadd.f32 %v2726, 1.0
  %v2736 = vadd.f32 %v2728, 1.0
  %v2737 = vadd.f32 %v2730, 1.0
  %v2738 = vadd.f32 %v2732, 1.0
  %v2739 = vadd.f32 %v2734, 1.0
  %v2740 = vrcp.pop %v2735
  %v2741 = vmul.f32 %v2735, %v2740
  %v2742 = vsub.f32 1.0, %v2741
  %v2743 = vmul.f32 %v2740, %v2742
  %v2744 = vadd.f32 %v2740, %v2743
  %vm2745 = vweird.f32 %v2735
  %vm2746 = vweird.f32 %v2740
  %vm2747 = vmor %vm2745, %vm2746
  %v2748 = vsel %vm2747, %v2740, %v2744
  %v2749 = vand.u32 2147483647, %v2735
  %vm2750 = vcmp.eq.f32.partialorder %v2749, 8.507059e+37
  %v2751 = vand.u32 %v2735, 2147483648
  %v2752 = vor.u32 1.1754944e-38, %v2751
  %v2753 = vsel %vm2750, %v2752, %v2748
  %v2754 = vmul.f32 1.0, %v2753
  %v2755 = vrcp.pop %v2736
  %v2756 = vmul.f32 %v2736, %v2755
  %v2757 = vsub.f32 1.0, %v2756
  %v2758 = vmul.f32 %v2755, %v2757
  %v2759 = vadd.f32 %v2755, %v2758
  %vm2760 = vweird.f32 %v2736
  %vm2761 = vweird.f32 %v2755
  %vm2762 = vmor %vm2760, %vm2761
  %v2763 = vsel %vm2762, %v2755, %v2759
  %v2764 = vand.u32 2147483647, %v2736
  %vm2765 = vcmp.eq.f32.partialorder %v2764, 8.507059e+37
  %v2766 = vand.u32 %v2736, 2147483648
  %v2767 = vor.u32 1.1754944e-38, %v2766
  %v2768 = vsel %vm2765, %v2767, %v2763
  %v2769 = vmul.f32 1.0, %v2768
  %v2770 = vrcp.pop %v2737
  %v2771 = vmul.f32 %v2737, %v2770
  %v2772 = vsub.f32 1.0, %v2771
  %v2773 = vmul.f32 %v2770, %v2772
  %v2774 = vadd.f32 %v2770, %v2773
  %vm2775 = vweird.f32 %v2737
  %vm2776 = vweird.f32 %v2770
  %vm2777 = vmor %vm2775, %vm2776
  %v2778 = vsel %vm2777, %v2770, %v2774
  %v2779 = vand.u32 2147483647, %v2737
  %vm2780 = vcmp.eq.f32.partialorder %v2779, 8.507059e+37
  %v2781 = vand.u32 %v2737, 2147483648
  %v2782 = vor.u32 1.1754944e-38, %v2781
  %v2783 = vsel %vm2780, %v2782, %v2778
  %v2784 = vmul.f32 1.0, %v2783
  %v2785 = vrcp.pop %v2738
  %v2786 = vmul.f32 %v2738, %v2785
  %v2787 = vsub.f32 1.0, %v2786
  %v2788 = vmul.f32 %v2785, %v2787
  %v2789 = vadd.f32 %v2785, %v2788
  %vm2790 = vweird.f32 %v2738
  %vm2791 = vweird.f32 %v2785
  %vm2792 = vmor %vm2790, %vm2791
  %v2793 = vsel %vm2792, %v2785, %v2789
  %v2794 = vand.u32 2147483647, %v2738
  %vm2795 = vcmp.eq.f32.partialorder %v2794, 8.507059e+37
  %v2796 = vand.u32 %v2738, 2147483648
  %v2797 = vor.u32 1.1754944e-38, %v2796
  %v2798 = vsel %vm2795, %v2797, %v2793
  %v2799 = vmul.f32 1.0, %v2798
  %v2800 = vrcp.pop %v2739
  %v2801 = vmul.f32 %v2739, %v2800
  %v2802 = vsub.f32 1.0, %v2801
  %v2803 = vmul.f32 %v2800, %v2802
  %v2804 = vadd.f32 %v2800, %v2803
  %vm2805 = vweird.f32 %v2739
  %vm2806 = vweird.f32 %v2800
  %vm2807 = vmor %vm2805, %vm2806
  %v2808 = vsel %vm2807, %v2800, %v2804
  %v2809 = vand.u32 2147483647, %v2739
  %vm2810 = vcmp.eq.f32.partialorder %v2809, 8.507059e+37
  %v2811 = vand.u32 %v2739, 2147483648
  %v2812 = vor.u32 1.1754944e-38, %v2811
  %v2813 = vsel %vm2810, %v2812, %v2808
  %v2814 = vmul.f32 1.0, %v2813
  %v2815 = vmul.f32 %v2702, %v2754
  %v2816 = vmul.f32 %v2704, %v2769
  %v2817 = vmul.f32 %v2707, %v2784
  %v2818 = vmul.f32 %v2709, %v2799
  %v2819 = vmul.f32 %v2712, %v2814
  %v2820 = vpack.c.bf16 %v2816, %v2815
  %v2821 = vpack.c.bf16 %v2818, %v2817
  %v2822 = vpack.c.bf16 %v2819, %v2819
  %s2823 = scalar_lea.vmem %s9, 64
  %v2824 = vld [vmem:[%s2823] sm:$0xf]
  %v2825 = vld [vmem:[%s2823 + $0x4] sm:$0xf]
  %v2826 = vld [vmem:[%s2823 + $0x8] sm:$0xf]
  %v2827 = vld [vmem:[%s2823 + $0xc] sm:$0xf]
  %v2828 = vld [vmem:[%s2823 + $0x10] sm:$0xf]
  %v2829 = vld [vmem:[%s2823 + $0x14] sm:$0xf]
  %v2830 = vld [vmem:[%s2823 + $0x18] sm:$0xf]
  %v2831 = vld [vmem:[%s2823 + $0x1c] sm:$0xf]
  %v2832 = vld [vmem:[%s2823 + $0x20] sm:$0xf]
  %v2833 = vld [vmem:[%s2823 + $0x24] sm:$0xf]
  %v2834 = vld [vmem:[%s2823 + $0x28] sm:$0xf]
  %v2835 = vld [vmem:[%s2823 + $0x2c] sm:$0xf]
  %v2836 = vld [vmem:[%s2823 + $0x30] sm:$0xf]
  %v2837 = vld [vmem:[%s2823 + $0x34] sm:$0xf]
  %v2838 = vld [vmem:[%s2823 + $0x38] sm:$0xf]
  %v2839 = vld [vmem:[%s2823 + $0x3c] sm:$0xf]
  %v2840 = vperm.slane %v1665, 0
  %v2857 = vunpack.c.l.b16 %v2824
  %v2858 = vunpack.c.l.b16 %v2825
  %v2859 = vunpack.c.l.b16 %v2826
  %v2860 = vunpack.c.l.b16 %v2827
  %v2861 = vunpack.c.l.b16 %v2828
  %v2862 = vunpack.c.l.b16 %v2829
  %v2863 = vunpack.c.l.b16 %v2830
  %v2864 = vunpack.c.l.b16 %v2831
  %v2865 = vunpack.c.l.b16 %v2832
  %v2866 = vunpack.c.l.b16 %v2833
  %v2867 = vunpack.c.l.b16 %v2834
  %v2868 = vunpack.c.l.b16 %v2835
  %v2869 = vunpack.c.l.b16 %v2836
  %v2870 = vunpack.c.l.b16 %v2837
  %v2871 = vunpack.c.l.b16 %v2838
  %v2872 = vunpack.c.l.b16 %v2839
  %v2873 = vpack.c.b16 %v2858, %v2857
  %v2874 = vpack.c.b16 %v2860, %v2859
  %v2875 = vpack.c.b16 %v2862, %v2861
  %v2876 = vpack.c.b16 %v2864, %v2863
  %v2877 = vpack.c.b16 %v2866, %v2865
  %v2878 = vpack.c.b16 %v2868, %v2867
  %v2879 = vpack.c.b16 %v2870, %v2869
  %v2880 = vpack.c.b16 %v2872, %v2871
  %2889 = vmatpush.bf16.msra.mxu0 %v2880
  %2890 = vmatpush.bf16.msra.mxu0 %v2879
  %2891 = vmatpush.bf16.msra.mxu0 %v2878
  %2892 = vmatpush.bf16.msra.mxu0 %v2877
  %2893 = vmatpush.bf16.msra.mxu0 %v2876
  %2894 = vmatpush.bf16.msra.mxu0 %v2875
  %2895 = vmatpush.bf16.msra.mxu0 %v2874
  %2896 = vmatpush.bf16.msra.mxu0 %v2873
  %2897 = vmatmul.bf16.gmra.mxu0 %v2820
  %v2898 = vpop.f32.mrf.mxu0
  %v2899 = vadd.f32 %v2840, %v2898
  %v2900 = vpop.f32.mrf.mxu0
  %v2901 = vadd.f32 %v2840, %v2900
  %2902 = vmatmul.bf16.gmra.mxu0 %v2821
  %v2903 = vpop.f32.mrf.mxu0
  %v2904 = vadd.f32 %v2840, %v2903
  %v2905 = vpop.f32.mrf.mxu0
  %v2906 = vadd.f32 %v2840, %v2905
  %2907 = vmatmul.bf16.gmra.mxu0 %v2822
  %v2908 = vpop.f32.mrf.mxu0
  %v2909 = vadd.f32 %v2840, %v2908
  %v2910 = vpop.f32.mrf.mxu0
  %2911 = vdwg.mxu0
  %v2912 = vadd.f32 %v2535, %v2899
  %v2913 = vadd.f32 %v2536, %v2901
  %v2914 = vadd.f32 %v2537, %v2904
  %v2915 = vadd.f32 %v2538, %v2906
  %v2916 = vadd.f32 %v2539, %v2909
  %v2917 = vlaneseq
  %v2918 = vshrl.u32 %v2917, 7
  %v2919 = vmul.u32 %v2918, 5
  %vm2920 = vcmp.eq.s32.totalorder %v368, %v2919
  %v2921 = vsel %vm2920, 1, 0
  %v2922 = vcvt.s32.f32 %v2921
  %v2923 = vpack.c.bf16 %v2922, %v2922
  %v2924 = vpack.c.bf16 %v2913, %v2912
  %v2925 = vpack.c.bf16 %v2915, %v2914
  %v2926 = vpack.c.bf16 %v2916, %v2916
  %v2928 = vsel %vm644, %v2923, 0
  %v2931 = vsel %vm833, %v2926, 0
  %2933 = vmatpush.bf16.msra.mxu0 0
  %2934 = vmatpush.bf16.msra.mxu0 0
  %2935 = vmatpush.bf16.msra.mxu0 0
  %2936 = vmatpush.bf16.msra.mxu0 0
  %2937 = vmatpush.bf16.msra.mxu0 0
  %2938 = vmatpush.bf16.msra.mxu0 %v2931
  %2939 = vmatpush.bf16.msra.mxu0 %v2925
  %2940 = vmatpush.bf16.msra.mxu0 %v2924
  %2941 = vmatmul.bf16.gmra.mxu0 %v2928
  %v2942 = vpop.f32.mrf.mxu0
  %v2943 = vadd.f32 0.0, %v2942
  %v2944 = vpop.f32.mrf.mxu0
  %2945 = vdwg.mxu0
  %v2946 = vsel %vm232, %v2943, 0.0
  %2947 = vadd.xlane.f32.xlu0 %v2946
  %v2948 = vpop.xlane.xlu0 %2947
  %v2949 = vmul.f32 %v2948, %v254
  %v2950 = vsub.f32 %v2943, %v2949
  %v2951 = vmul.f32 %v2950, %v2950
  %v2952 = vsel %vm232, %v2951, 0.0
  %2953 = vadd.xlane.f32.xlu0 %v2952
  %v2954 = vpop.xlane.xlu0 %2953
  %v2955 = vmul.f32 %v2954, %v254
  %v2956 = vadd.f32 %v2955, 1e-05
  %v2957 = vrsqrt.pop %v2956
  %v2958 = vmul.f32 %v2957, %v2956
  %v2959 = vmul.f32 %v2958, %v2957
  %v2960 = vmul.f32 0.5, %v2959
  %v2961 = vsub.f32 1.5, %v2960
  %v2962 = vmul.f32 %v2957, %v2961
  %vm2963 = vweird.f32 %v2956
  %vm2964 = vweird.f32 %v2957
  %vm2965 = vmor %vm2963, %vm2964
  %v2966 = vsel %vm2965, %v2957, %v2962
  %v2967 = vmul.f32 %v2950, %v2966
  %v2968 = vperm.slane %v44, 0
  %v2969 = vmul.f32 %v2967, %v2968
  %v2970 = vperm.slane %v45, 0
  %v2971 = vadd.f32 %v2969, %v2970
  %v2972 = vpack.c.bf16 %v2971, %v2971
  %v2973 = vld [vmem:[%s10] sm:$0xf]
  %v2974 = vld [vmem:[%s10 + $0x4] sm:$0xf]
  %v2975 = vld [vmem:[%s10 + $0x8] sm:$0xf]
  %v2976 = vld [vmem:[%s10 + $0xc] sm:$0xf]
  %v2981 = vunpack.c.l.b16 %v2973
  %v2982 = vunpack.c.l.b16 %v2974
  %v2983 = vunpack.c.l.b16 %v2975
  %v2984 = vunpack.c.l.b16 %v2976
  %v2985 = vpack.c.b16 %v2982, %v2981
  %v2986 = vpack.c.b16 %v2984, %v2983
  %v2990 = vsel %vm232, %v2972, 0
  %2992 = vmatpush.bf16.msra.mxu0 0
  %2993 = vmatpush.bf16.msra.mxu0 0
  %2994 = vmatpush.bf16.msra.mxu0 0
  %2995 = vmatpush.bf16.msra.mxu0 0
  %2996 = vmatpush.bf16.msra.mxu0 0
  %2997 = vmatpush.bf16.msra.mxu0 0
  %2998 = vmatpush.bf16.msra.mxu0 %v2986
  %2999 = vmatpush.bf16.msra.mxu0 %v2985
  %3000 = vmatmul.bf16.gmra.mxu0 %v2990
  %v3001 = vpop.f32.mrf.mxu0
  %v3002 = vadd.f32 0.0, %v3001
  %v3003 = vpop.f32.mrf.mxu0
  %3004 = vdwg.mxu0
  %v3005 = vld [vmem:[%s11] sm:$0xff]
  %v3006 = vld [vmem:[%s11 + $0x8] sm:$0xff]
  %v3007 = vld [vmem:[%s11 + $0x10] sm:$0xff]
  %v3008 = vld [vmem:[%s11 + $0x18] sm:$0xff]
  %v3009 = vld [vmem:[%s5 + $0x4] sm:$0x1]
  %v3010 = vperm.slane %v3009, 0
  %v3012 = vsel %vm232, %v3002, 0
  %3014 = vmatpush.msra.mxu0 0.0
  %3015 = vmatpush.msra.mxu0 0.0
  %3016 = vmatpush.msra.mxu0 0.0
  %3017 = vmatpush.msra.mxu0 0.0
  %3018 = vmatpush.msra.mxu0 0.0
  %3019 = vmatpush.msra.mxu0 0.0
  %3020 = vmatpush.msra.mxu0 0.0
  %3021 = vmatpush.msra.mxu0 0.0
  %3022 = vmatpush.msra.mxu0 0.0
  %3023 = vmatpush.msra.mxu0 0.0
  %3024 = vmatpush.msra.mxu0 0.0
  %3025 = vmatpush.msra.mxu0 0.0
  %3026 = vmatpush.msra.mxu0 %v3008
  %3027 = vmatpush.msra.mxu0 %v3007
  %3028 = vmatpush.msra.mxu0 %v3006
  %3029 = vmatpush.msra.mxu0 %v3005
  %3030 = vmatmul.f32.gmra.mxu0 %v3012
  %v3031 = vpop.f32.mrf.mxu0
  %v3032 = vadd.f32 %v3010, %v3031
  %3033 = vdwg.mxu0
  %3034 = vst [vmem:[%s12] sm:$0xff] %v3032
  // Predicated region
  $region50: #{clip_finetune_forward.1} parent=0 // pred_check
    _
  $region51: #{clip_finetune_forward.1} parent=0 // pred_check_branch
    %3036 = sbr.rel (0) target = $region53
  $region52: #{clip_finetune_forward.1} parent=0 // pred_region
    _
  $region53: #{clip_finetune_forward.1} parent=0 // pred_fallthru
    _
  // Predicated region
  $region54: #{clip_finetune_forward.1} parent=0 // pred_check
    _
  $region55: #{clip_finetune_forward.1} parent=0 // pred_check_branch
    %3038 = sbr.rel (0) target = $region57
  $region56: #{clip_finetune_forward.1} parent=0 // pred_region
    _
  $region57: #{clip_finetune_forward.1} parent=0 // pred_fallthru
    _

</llo_original>
